<compile_context>
chip_gen: v7x
topology: tpu7x:2x2x1
jax: 0.10.0
libtpu: 0.0.40
codegen_flags: <defaults>
</compile_context>

<pallas_src>
import functools

import jax
import jax.numpy as jnp
from jax.experimental import pallas as pl
from jax.experimental.pallas import tpu as pltpu


_COMPILER_PARAMS = pltpu.CompilerParams(dimension_semantics=("arbitrary",))


# ----------------------------------------------------------------------------
# Kernels 1/2: lane-dense conv-as-matmul   out = relu(W @ patches + b)  (bf16)
# ----------------------------------------------------------------------------
def _conv_relu_kernel(w_ref, x_ref, b_ref, o_ref):
    y = jnp.dot(w_ref[...], x_ref[...], preferred_element_type=jnp.float32)
    y = jnp.maximum(y + b_ref[...], 0.0)        # bias (Cout,1) broadcast on lanes
    o_ref[...] = y.astype(o_ref.dtype)          # bf16 store (halved writeback)


def conv_matmul_relu(w, x, b):
    """w:(Cout,K) bf16, x:(K,M) bf16, b:(Cout,1) f32 -> (Cout,M) bf16 lane-dense."""
    Cout, K = w.shape
    K2, M = x.shape
    assert K == K2 and b.shape == (Cout, 1)
    return pl.pallas_call(
        _conv_relu_kernel,
        grid=(1,),
        in_specs=[
            pl.BlockSpec((Cout, K), lambda i: (0, 0)),
            pl.BlockSpec((K, M), lambda i: (0, 0)),
            pl.BlockSpec((Cout, 1), lambda i: (0, 0)),
        ],
        out_specs=pl.BlockSpec((Cout, M), lambda i: (0, 0)),
        out_shape=jax.ShapeDtypeStruct((Cout, M), jnp.bfloat16),
        compiler_params=_COMPILER_PARAMS,
        cost_estimate=pl.CostEstimate(
            flops=2 * Cout * K * M,
            transcendentals=0,
            bytes_accessed=2 * (Cout * K + K * M + Cout * M) + 4 * Cout),
    )(w, x, b)


# ----------------------------------------------------------------------------
# Kernel 3: fused  [fc_mu|fc_logvar] -> reparameterize -> fc_decode ->
#                  ConvT(16,8,2,s2)+ReLU -> ConvT(8,1,2,s2)+Sigmoid
# fc_decode weights are padded so each of the 16 channels owns a 64-lane block,
# so the (B,16,.) -> (16, B*64) reorg uses only 64-aligned static windows and
# the decoder output is exactly (16, B*64 = 128): lane-dense unmasked stores.
# ----------------------------------------------------------------------------
def _latent_decoder_kernel(flat_ref, eps_ref, wcat_ref, bcat_ref,
                           wdec_ref, bdec_ref, w1_ref, b1_ref, w2_ref, b2_ref,
                           mu_ref, lv_ref, o_ref, d2_ref, *, latent_dim, batch):
    # fused fc_mu | fc_logvar: one (B, 784) @ (784, 2L) MXU pass
    y = jnp.dot(flat_ref[...], wcat_ref[...], preferred_element_type=jnp.float32)
    y = y + bcat_ref[...]
    mu = y[:, :latent_dim]                       # 128-aligned static lane slices
    logvar = y[:, latent_dim:2 * latent_dim]
    mu_ref[...] = mu
    lv_ref[...] = logvar

    # reparameterize: exp on the EUP slot, mul/add on the VPU (free vs MXU)
    std = jnp.exp(0.5 * logvar)
    z = mu + eps_ref[...] * std

    # fc_decode (no activation); lanes ordered (ch, p64) with 64-lane channel stride
    d = jnp.dot(z.astype(wdec_ref.dtype), wdec_ref[...],
                preferred_element_type=jnp.float32)
    d = d + bdec_ref[...]                        # (B, 16*64)

    # in-VMEM reorg (B, 16, 64) -> (16, B*64): d never leaves VMEM
    for ch in range(16):
        for b in range(batch):
            d2_ref[ch:ch + 1, b * 64:(b + 1) * 64] = \
                d[b:b + 1, ch * 64:(ch + 1) * 64]

    d2 = d2_ref[...].astype(w1_ref.dtype)        # (16, B*64) bf16

    # ConvT(16,8,k=2,s=2) + ReLU: rows ordered (a, c, co)
    y1 = jnp.dot(w1_ref[...], d2, preferred_element_type=jnp.float32)
    y1 = jnp.maximum(y1 + b1_ref[...], 0.0)      # (32, M) f32

    # ConvT(8,1,k=2,s=2) + Sigmoid: single block-diagonal (16,32) matmul,
    # output rows ordered (a, c, a2, c2); one sigmoid, one unmasked store.
    y2 = jnp.dot(w2_ref[...], y1.astype(w2_ref.dtype),
                 preferred_element_type=jnp.float32)
    o_ref[...] = jax.nn.sigmoid(y2 + b2_ref[...])


def latent_decoder_block(flat, eps, wcat, bcat, wdecp, bdecp, w1r, b1r,
                         w2bd, b2bd, latent_dim):
    B, F = flat.shape
    L2 = wcat.shape[1]
    Fp = wdecp.shape[1]                          # 16 * 64
    M = B * 64
    kern = functools.partial(_latent_decoder_kernel,
                             latent_dim=latent_dim, batch=B)
    return pl.pallas_call(
        kern,
        grid=(1,),
        in_specs=[
            pl.BlockSpec((B, F), lambda i: (0, 0)),
            pl.BlockSpec((B, latent_dim), lambda i: (0, 0)),
            pl.BlockSpec((F, L2), lambda i: (0, 0)),
            pl.BlockSpec((1, L2), lambda i: (0, 0)),
            pl.BlockSpec((latent_dim, Fp), lambda i: (0, 0)),
            pl.BlockSpec((1, Fp), lambda i: (0, 0)),
            pl.BlockSpec((32, 16), lambda i: (0, 0)),
            pl.BlockSpec((32, 1), lambda i: (0, 0)),
            pl.BlockSpec((16, 32), lambda i: (0, 0)),
            pl.BlockSpec((16, 1), lambda i: (0, 0)),
        ],
        out_specs=[
            pl.BlockSpec((B, latent_dim), lambda i: (0, 0)),
            pl.BlockSpec((B, latent_dim), lambda i: (0, 0)),
            pl.BlockSpec((16, M), lambda i: (0, 0)),
        ],
        out_shape=(
            jax.ShapeDtypeStruct((B, latent_dim), jnp.float32),
            jax.ShapeDtypeStruct((B, latent_dim), jnp.float32),
            jax.ShapeDtypeStruct((16, M), jnp.float32),
        ),
        scratch_shapes=[pltpu.VMEM((16, M), jnp.float32)],
        compiler_params=_COMPILER_PARAMS,
        cost_estimate=pl.CostEstimate(
            flops=(2 * B * F * L2 + 2 * B * latent_dim * Fp
                   + 2 * 32 * 16 * M + 2 * 16 * 32 * M),
            transcendentals=B * latent_dim + 16 * M,
            bytes_accessed=(2 * (B * F + F * L2 + latent_dim * Fp + 32 * 16 + 16 * 32)
                            + 4 * (B * latent_dim + L2 + Fp + 32 + 16
                                   + 2 * B * latent_dim + 16 * M))),
    )(flat, eps, wcat, bcat, wdecp, bdecp, w1r, b1r, w2bd, b2bd)


# ----------------------------------------------------------------------------
# XLA-side layout glue (im2col, 2x2 avgpool, final pixel scatter) — tiny & fused
# ----------------------------------------------------------------------------
def _im2col_3x3(x):
    """x:(B,C,H,W) -> (C*9, B*H*W); rows ci-major / (dh,dw)-minor, cols (b,i,j)."""
    B, C, H, W = x.shape
    xp = jnp.pad(x, ((0, 0), (0, 0), (1, 1), (1, 1)))
    cols = [xp[:, :, dh:dh + H, dw:dw + W] for dh in range(3) for dw in range(3)]
    p = jnp.stack(cols, axis=2)                 # (B, C, 9, H, W)
    p = p.transpose(1, 2, 0, 3, 4)              # (C, 9, B, H, W)
    return p.reshape(C * 9, B * H * W)


def _avgpool2_cm(y, B, H, W):
    """y:(C, B*H*W) lane-dense bf16 conv output -> NCHW (B, C, H//2, W//2) f32."""
    C = y.shape[0]
    y = y.astype(jnp.float32).reshape(C, B, H, W).transpose(1, 0, 2, 3)
    return y.reshape(B, C, H // 2, 2, W // 2, 2).mean(axis=(3, 5))


# ----------------------------------------------------------------------------
# Parameter init: raw PyTorch-layout weights, pre-packed ONCE here
# (reshape / transpose / concat / pad / block-diag hoisted out of the forward).
# ----------------------------------------------------------------------------
def _uniform(key, shape, fan_in):
    bound = 1.0 / jnp.sqrt(jnp.float32(fan_in))
    return jax.random.uniform(key, shape, jnp.float32, -bound, bound)


def init_params(key, latent_dim=256):
    ks = jax.random.split(key, 14)
    feat = 16 * 7 * 7
    # raw PyTorch-layout parameters
    enc1_w = _uniform(ks[0], (8, 1, 3, 3), 9)
    enc1_b = _uniform(ks[1], (8,), 9)
    enc2_w = _uniform(ks[2], (16, 8, 3, 3), 72)
    enc2_b = _uniform(ks[3], (16,), 72)
    fc_mu_w = _uniform(ks[4], (feat, latent_dim), feat)
    fc_mu_b = _uniform(ks[5], (latent_dim,), feat)
    fc_lv_w = _uniform(ks[6], (feat, latent_dim), feat)
    fc_lv_b = _uniform(ks[7], (latent_dim,), feat)
    fc_dec_w = _uniform(ks[8], (latent_dim, feat), latent_dim)
    fc_dec_b = _uniform(ks[9], (feat,), latent_dim)
    dec1_w = _uniform(ks[10], (16, 8, 2, 2), 64)     # (Cin, Cout, kh, kw)
    dec1_b = _uniform(ks[11], (8,), 64)
    dec2_w = _uniform(ks[12], (8, 1, 2, 2), 32)
    dec2_b = _uniform(ks[13], (1,), 32)

    p = {}
    # encoder convs: (Cout, Cin*9) bf16, bias as (Cout, 1) f32 column
    p["enc1_w"] = enc1_w.reshape(8, 9).astype(jnp.bfloat16)
    p["enc1_b"] = enc1_b.reshape(8, 1)
    p["enc2_w"] = enc2_w.reshape(16, 72).astype(jnp.bfloat16)
    p["enc2_b"] = enc2_b.reshape(16, 1)
    # fused fc_mu|fc_logvar: (784, 2L) bf16 + (1, 2L) f32
    p["fc_cat_w"] = jnp.concatenate([fc_mu_w, fc_lv_w], axis=1).astype(jnp.bfloat16)
    p["fc_cat_b"] = jnp.concatenate([fc_mu_b, fc_lv_b]).reshape(1, 2 * latent_dim)
    # fc_decode: pad per-channel pixel stride 49 -> 64 so the in-kernel
    # (B,16,.) -> (16,B*64) reorg uses only 64-aligned lane windows.
    wdec3 = fc_dec_w.reshape(latent_dim, 16, 49)
    wdec_p = jnp.zeros((latent_dim, 16, 64), jnp.float32).at[:, :, :49].set(wdec3)
    p["fc_dec_w"] = wdec_p.reshape(latent_dim, 16 * 64).astype(jnp.bfloat16)
    bdec_p = jnp.zeros((16, 64), jnp.float32).at[:, :49].set(fc_dec_b.reshape(16, 49))
    p["fc_dec_b"] = bdec_p.reshape(1, 16 * 64)
    # dec1: rows ordered (a, c, co) -> W1r[(a*2+c)*8+co, ci] = w[ci, co, a, c]
    p["dec1_w"] = dec1_w.transpose(2, 3, 1, 0).reshape(32, 16).astype(jnp.bfloat16)
    p["dec1_b"] = jnp.tile(dec1_b, 4).reshape(32, 1)
    # dec2 as ONE block-diagonal matmul over the four (a,c) groups:
    # W2bd[(a*2+c)*4 + (a2*2+c2), (a*2+c)*8 + ci] = w[ci, 0, a2, c2]
    w2r = dec2_w[:, 0].transpose(1, 2, 0).reshape(4, 8)
    w2bd = jnp.zeros((16, 32), jnp.float32)
    for k in range(4):
        w2bd = w2bd.at[k * 4:(k + 1) * 4, k * 8:(k + 1) * 8].set(w2r)
    p["dec2_w"] = w2bd.astype(jnp.bfloat16)
    p["dec2_b"] = jnp.full((16, 1), dec2_b[0], jnp.float32)
    return p


# ----------------------------------------------------------------------------
# Forward pass (== VAE.forward): returns (reconstruction, mu, logvar)
# ----------------------------------------------------------------------------
def vae_forward(params, x, eps):
    B = x.shape[0]
    L = eps.shape[1]

    # ---- encoder: conv1+ReLU -> avgpool -> conv2+ReLU -> avgpool -> flatten
    p1 = _im2col_3x3(x).astype(jnp.bfloat16)                          # (9, B*784)
    h1 = conv_matmul_relu(params["enc1_w"], p1, params["enc1_b"])     # (8, B*784) bf16
    h1 = _avgpool2_cm(h1, B, 28, 28)                                  # (B,8,14,14)
    p2 = _im2col_3x3(h1).astype(jnp.bfloat16)                         # (72, B*196)
    h2 = conv_matmul_relu(params["enc2_w"], p2, params["enc2_b"])     # (16, B*196) bf16
    h2 = _avgpool2_cm(h2, B, 14, 14)                                  # (B,16,7,7)
    flat = h2.reshape(B, 16 * 7 * 7).astype(jnp.bfloat16)             # (B, 784)

    # ---- ONE fused pallas_call: fc_mu/fc_logvar + reparameterize + fc_decode
    #      + ConvT+ReLU + ConvT+Sigmoid  (fc_decode output never leaves VMEM)
    mu, logvar, o = latent_decoder_block(
        flat, eps, params["fc_cat_w"], params["fc_cat_b"],
        params["fc_dec_w"], params["fc_dec_b"],
        params["dec1_w"], params["dec1_b"],
        params["dec2_w"], params["dec2_b"], L)

    # scatter rows (a,c,a2,c2) x cols (b, i*7+j | pad) -> pixel (b, 4i+2a+a2, 4j+2c+c2)
    o6 = o.reshape(2, 2, 2, 2, B, 64)[..., :49].reshape(2, 2, 2, 2, B, 7, 7)
    recon = o6.transpose(4, 5, 0, 2, 6, 1, 3).reshape(B, 1, 28, 28)
    return recon, mu, logvar


if __name__ == "__main__":
    key = jax.random.PRNGKey(0)
    k_param, k_x, k_eps = jax.random.split(key, 3)

    latent_dim = 256
    B = 2
    params = init_params(k_param, latent_dim)
    x = jax.random.uniform(k_x, (B, 1, 28, 28), jnp.float32)   # MNIST-like input
    eps = jax.random.normal(k_eps, (B, latent_dim), jnp.float32)

    fwd = jax.jit(vae_forward)
    recon, mu, logvar = fwd(params, x, eps)
    jax.block_until_ready((recon, mu, logvar))

    assert recon.shape == (B, 1, 28, 28)
    assert mu.shape == (B, latent_dim)
    assert logvar.shape == (B, latent_dim)
    assert bool(jnp.all(jnp.isfinite(recon)))
    assert bool(jnp.all((recon >= 0.0) & (recon <= 1.0)))  # sigmoid output range
    print("KERNEL_OK")
</pallas_src>

<mosaic_0001>
module attributes {stable_mosaic.version = 11 : i64} {
  func.func @_conv_relu_kernel(%arg0: i32, %arg1: memref<8x9xbf16, #tpu.memory_space<vmem>>, %arg2: memref<9x1568xbf16, #tpu.memory_space<vmem>>, %arg3: memref<8x1xf32, #tpu.memory_space<vmem>>, %arg4: memref<8x1568xbf16, #tpu.memory_space<vmem>>) attributes {dimension_semantics = [#tpu.dimension_semantics<arbitrary>], iteration_bounds = array<i64: 1>, scalar_prefetch = 0 : i64, scratch_operands = 0 : i64, tpu.core_type = #tpu.core_type<tc>, window_params = [{pipeline_mode = #tpu.pipeline_mode<synchronous>, transform_indices = @transform_0, window_bounds = array<i64: 8, 9>}, {pipeline_mode = #tpu.pipeline_mode<synchronous>, transform_indices = @transform_1, window_bounds = array<i64: 9, 1568>}, {pipeline_mode = #tpu.pipeline_mode<synchronous>, transform_indices = @transform_2, window_bounds = array<i64: 8, 1>}, {pipeline_mode = #tpu.pipeline_mode<synchronous>, transform_indices = @transform_3, window_bounds = array<i64: 8, 1568>}]} {
    %c0 = arith.constant 0 : index
    %c0_0 = arith.constant 0 : index
    %0 = vector.load %arg1[%c0, %c0_0] : memref<8x9xbf16, #tpu.memory_space<vmem>>, vector<8x9xbf16>
    %c0_1 = arith.constant 0 : index
    %c0_2 = arith.constant 0 : index
    %1 = vector.load %arg2[%c0_1, %c0_2] : memref<9x1568xbf16, #tpu.memory_space<vmem>>, vector<9x1568xbf16>
    %cst = arith.constant dense<0.000000e+00> : vector<8x1568xf32>
    %2 = tpu.matmul %0, %1, %cst {dimension_numbers = #tpu.dot_dimension_numbers<[1], [0], [0], [1], [0, 0, 1, 1], [], []>} : vector<8x9xbf16>, vector<9x1568xbf16>, vector<8x1568xf32> -> vector<8x1568xf32>
    %c0_3 = arith.constant 0 : index
    %c0_4 = arith.constant 0 : index
    %3 = vector.load %arg3[%c0_3, %c0_4] : memref<8x1xf32, #tpu.memory_space<vmem>>, vector<8x1xf32>
    %4 = vector.broadcast %3 : vector<8x1xf32> to vector<8x1568xf32>
    %5 = arith.addf %2, %4 : vector<8x1568xf32>
    %cst_5 = arith.constant 0.000000e+00 : f32
    %6 = vector.broadcast %cst_5 : f32 to vector<8x1568xf32>
    %7 = arith.maximumf %5, %6 : vector<8x1568xf32>
    %8 = arith.truncf %7 : vector<8x1568xf32> to vector<8x1568xbf16>
    %c0_6 = arith.constant 0 : index
    %c0_7 = arith.constant 0 : index
    %9 = vector.load %arg4[%c0_6, %c0_7] : memref<8x1568xbf16, #tpu.memory_space<vmem>>, vector<8x1568xbf16>
    tpu.vector_store %arg4[%c0_6, %c0_7], %8 {strides = array<i32>} : memref<8x1568xbf16, #tpu.memory_space<vmem>>, vector<8x1568xbf16>,
    return
  }
  func.func @transform_0(%arg0: i32) -> (i32, i32) {
    %c0_i32 = arith.constant 0 : i32
    %c0_i32_0 = arith.constant 0 : i32
    %c0_i32_1 = arith.constant 0 : i32
    return %c0_i32, %c0_i32_0 : i32, i32
  }
  func.func @transform_1(%arg0: i32) -> (i32, i32) {
    %c0_i32 = arith.constant 0 : i32
    %c0_i32_0 = arith.constant 0 : i32
    %c0_i32_1 = arith.constant 0 : i32
    return %c0_i32, %c0_i32_0 : i32, i32
  }
  func.func @transform_2(%arg0: i32) -> (i32, i32) {
    %c0_i32 = arith.constant 0 : i32
    %c0_i32_0 = arith.constant 0 : i32
    %c0_i32_1 = arith.constant 0 : i32
    return %c0_i32, %c0_i32_0 : i32, i32
  }
  func.func @transform_3(%arg0: i32) -> (i32, i32) {
    %c0_i32 = arith.constant 0 : i32
    %c0_i32_0 = arith.constant 0 : i32
    %c0_i32_1 = arith.constant 0 : i32
    return %c0_i32, %c0_i32_0 : i32, i32
  }
}

module attributes {stable_mosaic.version = 11 : i64} {
  func.func @_conv_relu_kernel(%arg0: i32, %arg1: memref<16x72xbf16, #tpu.memory_space<vmem>>, %arg2: memref<72x392xbf16, #tpu.memory_space<vmem>>, %arg3: memref<16x1xf32, #tpu.memory_space<vmem>>, %arg4: memref<16x392xbf16, #tpu.memory_space<vmem>>) attributes {dimension_semantics = [#tpu.dimension_semantics<arbitrary>], iteration_bounds = array<i64: 1>, scalar_prefetch = 0 : i64, scratch_operands = 0 : i64, tpu.core_type = #tpu.core_type<tc>, window_params = [{pipeline_mode = #tpu.pipeline_mode<synchronous>, transform_indices = @transform_0, window_bounds = array<i64: 16, 72>}, {pipeline_mode = #tpu.pipeline_mode<synchronous>, transform_indices = @transform_1, window_bounds = array<i64: 72, 392>}, {pipeline_mode = #tpu.pipeline_mode<synchronous>, transform_indices = @transform_2, window_bounds = array<i64: 16, 1>}, {pipeline_mode = #tpu.pipeline_mode<synchronous>, transform_indices = @transform_3, window_bounds = array<i64: 16, 392>}]} {
    %c0 = arith.constant 0 : index
    %c0_0 = arith.constant 0 : index
    %0 = vector.load %arg1[%c0, %c0_0] : memref<16x72xbf16, #tpu.memory_space<vmem>>, vector<16x72xbf16>
    %c0_1 = arith.constant 0 : index
    %c0_2 = arith.constant 0 : index
    %1 = vector.load %arg2[%c0_1, %c0_2] : memref<72x392xbf16, #tpu.memory_space<vmem>>, vector<72x392xbf16>
    %cst = arith.constant dense<0.000000e+00> : vector<16x392xf32>
    %2 = tpu.matmul %0, %1, %cst {dimension_numbers = #tpu.dot_dimension_numbers<[1], [0], [0], [1], [0, 0, 1, 1], [], []>} : vector<16x72xbf16>, vector<72x392xbf16>, vector<16x392xf32> -> vector<16x392xf32>
    %c0_3 = arith.constant 0 : index
    %c0_4 = arith.constant 0 : index
    %3 = vector.load %arg3[%c0_3, %c0_4] : memref<16x1xf32, #tpu.memory_space<vmem>>, vector<16x1xf32>
    %4 = vector.broadcast %3 : vector<16x1xf32> to vector<16x392xf32>
    %5 = arith.addf %2, %4 : vector<16x392xf32>
    %cst_5 = arith.constant 0.000000e+00 : f32
    %6 = vector.broadcast %cst_5 : f32 to vector<16x392xf32>
    %7 = arith.maximumf %5, %6 : vector<16x392xf32>
    %8 = arith.truncf %7 : vector<16x392xf32> to vector<16x392xbf16>
    %c0_6 = arith.constant 0 : index
    %c0_7 = arith.constant 0 : index
    %9 = vector.load %arg4[%c0_6, %c0_7] : memref<16x392xbf16, #tpu.memory_space<vmem>>, vector<16x392xbf16>
    tpu.vector_store %arg4[%c0_6, %c0_7], %8 {strides = array<i32>} : memref<16x392xbf16, #tpu.memory_space<vmem>>, vector<16x392xbf16>,
    return
  }
  func.func @transform_0(%arg0: i32) -> (i32, i32) {
    %c0_i32 = arith.constant 0 : i32
    %c0_i32_0 = arith.constant 0 : i32
    %c0_i32_1 = arith.constant 0 : i32
    return %c0_i32, %c0_i32_0 : i32, i32
  }
  func.func @transform_1(%arg0: i32) -> (i32, i32) {
    %c0_i32 = arith.constant 0 : i32
    %c0_i32_0 = arith.constant 0 : i32
    %c0_i32_1 = arith.constant 0 : i32
    return %c0_i32, %c0_i32_0 : i32, i32
  }
  func.func @transform_2(%arg0: i32) -> (i32, i32) {
    %c0_i32 = arith.constant 0 : i32
    %c0_i32_0 = arith.constant 0 : i32
    %c0_i32_1 = arith.constant 0 : i32
    return %c0_i32, %c0_i32_0 : i32, i32
  }
  func.func @transform_3(%arg0: i32) -> (i32, i32) {
    %c0_i32 = arith.constant 0 : i32
    %c0_i32_0 = arith.constant 0 : i32
    %c0_i32_1 = arith.constant 0 : i32
    return %c0_i32, %c0_i32_0 : i32, i32
  }
}

module attributes {stable_mosaic.version = 11 : i64} {
  func.func @_latent_decoder_kernel(%arg0: i32, %arg1: memref<2x784xbf16, #tpu.memory_space<vmem>>, %arg2: memref<2x256xf32, #tpu.memory_space<vmem>>, %arg3: memref<784x512xbf16, #tpu.memory_space<vmem>>, %arg4: memref<1x512xf32, #tpu.memory_space<vmem>>, %arg5: memref<256x1024xbf16, #tpu.memory_space<vmem>>, %arg6: memref<1x1024xf32, #tpu.memory_space<vmem>>, %arg7: memref<32x16xbf16, #tpu.memory_space<vmem>>, %arg8: memref<32x1xf32, #tpu.memory_space<vmem>>, %arg9: memref<16x32xbf16, #tpu.memory_space<vmem>>, %arg10: memref<16x1xf32, #tpu.memory_space<vmem>>, %arg11: memref<2x256xf32, #tpu.memory_space<vmem>>, %arg12: memref<2x256xf32, #tpu.memory_space<vmem>>, %arg13: memref<16x128xf32, #tpu.memory_space<vmem>>, %arg14: memref<16x128xf32, #tpu.memory_space<vmem>>) attributes {dimension_semantics = [#tpu.dimension_semantics<arbitrary>], iteration_bounds = array<i64: 1>, scalar_prefetch = 0 : i64, scratch_operands = 1 : i64, tpu.core_type = #tpu.core_type<tc>, window_params = [{pipeline_mode = #tpu.pipeline_mode<synchronous>, transform_indices = @transform_0, window_bounds = array<i64: 2, 784>}, {pipeline_mode = #tpu.pipeline_mode<synchronous>, transform_indices = @transform_1, window_bounds = array<i64: 2, 256>}, {pipeline_mode = #tpu.pipeline_mode<synchronous>, transform_indices = @transform_2, window_bounds = array<i64: 784, 512>}, {pipeline_mode = #tpu.pipeline_mode<synchronous>, transform_indices = @transform_3, window_bounds = array<i64: 1, 512>}, {pipeline_mode = #tpu.pipeline_mode<synchronous>, transform_indices = @transform_4, window_bounds = array<i64: 256, 1024>}, {pipeline_mode = #tpu.pipeline_mode<synchronous>, transform_indices = @transform_5, window_bounds = array<i64: 1, 1024>}, {pipeline_mode = #tpu.pipeline_mode<synchronous>, transform_indices = @transform_6, window_bounds = array<i64: 32, 16>}, {pipeline_mode = #tpu.pipeline_mode<synchronous>, transform_indices = @transform_7, window_bounds = array<i64: 32, 1>}, {pipeline_mode = #tpu.pipeline_mode<synchronous>, transform_indices = @transform_8, window_bounds = array<i64: 16, 32>}, {pipeline_mode = #tpu.pipeline_mode<synchronous>, transform_indices = @transform_9, window_bounds = array<i64: 16, 1>}, {pipeline_mode = #tpu.pipeline_mode<synchronous>, transform_indices = @transform_10, window_bounds = array<i64: 2, 256>}, {pipeline_mode = #tpu.pipeline_mode<synchronous>, transform_indices = @transform_11, window_bounds = array<i64: 2, 256>}, {pipeline_mode = #tpu.pipeline_mode<synchronous>, transform_indices = @transform_12, window_bounds = array<i64: 16, 128>}]} {
    %c0 = arith.constant 0 : index
    %c0_0 = arith.constant 0 : index
    %0 = vector.load %arg1[%c0, %c0_0] : memref<2x784xbf16, #tpu.memory_space<vmem>>, vector<2x784xbf16>
    %c0_1 = arith.constant 0 : index
    %c0_2 = arith.constant 0 : index
    %1 = vector.load %arg3[%c0_1, %c0_2] : memref<784x512xbf16, #tpu.memory_space<vmem>>, vector<784x512xbf16>
    %cst = arith.constant dense<0.000000e+00> : vector<2x512xf32>
    %2 = tpu.matmul %0, %1, %cst {dimension_numbers = #tpu.dot_dimension_numbers<[1], [0], [0], [1], [0, 0, 1, 1], [], []>} : vector<2x784xbf16>, vector<784x512xbf16>, vector<2x512xf32> -> vector<2x512xf32>
    %c0_3 = arith.constant 0 : index
    %c0_4 = arith.constant 0 : index
    %3 = vector.load %arg4[%c0_3, %c0_4] : memref<1x512xf32, #tpu.memory_space<vmem>>, vector<1x512xf32>
    %4 = vector.broadcast %3 : vector<1x512xf32> to vector<2x512xf32>
    %5 = arith.addf %2, %4 : vector<2x512xf32>
    %6 = vector.extract_strided_slice %5 {offsets = [0, 0], sizes = [2, 256], strides = [1, 1]} : vector<2x512xf32> to vector<2x256xf32>
    %7 = vector.extract_strided_slice %5 {offsets = [0, 256], sizes = [2, 256], strides = [1, 1]} : vector<2x512xf32> to vector<2x256xf32>
    %c0_5 = arith.constant 0 : index
    %c0_6 = arith.constant 0 : index
    %8 = vector.load %arg11[%c0_5, %c0_6] : memref<2x256xf32, #tpu.memory_space<vmem>>, vector<2x256xf32>
    tpu.vector_store %arg11[%c0_5, %c0_6], %6 {strides = array<i32>} : memref<2x256xf32, #tpu.memory_space<vmem>>, vector<2x256xf32>,
    %c0_7 = arith.constant 0 : index
    %c0_8 = arith.constant 0 : index
    %9 = vector.load %arg12[%c0_7, %c0_8] : memref<2x256xf32, #tpu.memory_space<vmem>>, vector<2x256xf32>
    tpu.vector_store %arg12[%c0_7, %c0_8], %7 {strides = array<i32>} : memref<2x256xf32, #tpu.memory_space<vmem>>, vector<2x256xf32>,
    %cst_9 = arith.constant 5.000000e-01 : f32
    %10 = vector.broadcast %cst_9 : f32 to vector<2x256xf32>
    %11 = arith.mulf %10, %7 : vector<2x256xf32>
    %12 = math.exp %11 : vector<2x256xf32>
    %c0_10 = arith.constant 0 : index
    %c0_11 = arith.constant 0 : index
    %13 = vector.load %arg2[%c0_10, %c0_11] : memref<2x256xf32, #tpu.memory_space<vmem>>, vector<2x256xf32>
    %14 = arith.mulf %13, %12 : vector<2x256xf32>
    %15 = arith.addf %6, %14 : vector<2x256xf32>
    %16 = arith.truncf %15 : vector<2x256xf32> to vector<2x256xbf16>
    %c0_12 = arith.constant 0 : index
    %c0_13 = arith.constant 0 : index
    %17 = vector.load %arg5[%c0_12, %c0_13] : memref<256x1024xbf16, #tpu.memory_space<vmem>>, vector<256x1024xbf16>
    %cst_14 = arith.constant dense<0.000000e+00> : vector<2x1024xf32>
    %18 = tpu.matmul %16, %17, %cst_14 {dimension_numbers = #tpu.dot_dimension_numbers<[1], [0], [0], [1], [0, 0, 1, 1], [], []>} : vector<2x256xbf16>, vector<256x1024xbf16>, vector<2x1024xf32> -> vector<2x1024xf32>
    %c0_15 = arith.constant 0 : index
    %c0_16 = arith.constant 0 : index
    %19 = vector.load %arg6[%c0_15, %c0_16] : memref<1x1024xf32, #tpu.memory_space<vmem>>, vector<1x1024xf32>
    %20 = vector.broadcast %19 : vector<1x1024xf32> to vector<2x1024xf32>
    %21 = arith.addf %18, %20 : vector<2x1024xf32>
    %22 = vector.extract_strided_slice %21 {offsets = [0, 0], sizes = [1, 64], strides = [1, 1]} : vector<2x1024xf32> to vector<1x64xf32>
    %c0_17 = arith.constant 0 : index
    %c0_18 = arith.constant 0 : index
    %23 = vector.load %arg14[%c0_17, %c0_18] : memref<16x128xf32, #tpu.memory_space<vmem>>, vector<1x64xf32>
    tpu.vector_store %arg14[%c0_17, %c0_18], %22 {strides = array<i32>} : memref<16x128xf32, #tpu.memory_space<vmem>>, vector<1x64xf32>,
    %24 = vector.extract_strided_slice %21 {offsets = [1, 0], sizes = [1, 64], strides = [1, 1]} : vector<2x1024xf32> to vector<1x64xf32>
    %c0_19 = arith.constant 0 : index
    %c64 = arith.constant 64 : index
    %25 = vector.load %arg14[%c0_19, %c64] : memref<16x128xf32, #tpu.memory_space<vmem>>, vector<1x64xf32>
    tpu.vector_store %arg14[%c0_19, %c64], %24 {strides = array<i32>} : memref<16x128xf32, #tpu.memory_space<vmem>>, vector<1x64xf32>,
    %26 = vector.extract_strided_slice %21 {offsets = [0, 64], sizes = [1, 64], strides = [1, 1]} : vector<2x1024xf32> to vector<1x64xf32>
    %c1 = arith.constant 1 : index
    %c0_20 = arith.constant 0 : index
    %27 = vector.load %arg14[%c1, %c0_20] : memref<16x128xf32, #tpu.memory_space<vmem>>, vector<1x64xf32>
    tpu.vector_store %arg14[%c1, %c0_20], %26 {strides = array<i32>} : memref<16x128xf32, #tpu.memory_space<vmem>>, vector<1x64xf32>,
    %28 = vector.extract_strided_slice %21 {offsets = [1, 64], sizes = [1, 64], strides = [1, 1]} : vector<2x1024xf32> to vector<1x64xf32>
    %c1_21 = arith.constant 1 : index
    %c64_22 = arith.constant 64 : index
    %29 = vector.load %arg14[%c1_21, %c64_22] : memref<16x128xf32, #tpu.memory_space<vmem>>, vector<1x64xf32>
    tpu.vector_store %arg14[%c1_21, %c64_22], %28 {strides = array<i32>} : memref<16x128xf32, #tpu.memory_space<vmem>>, vector<1x64xf32>,
    %30 = vector.extract_strided_slice %21 {offsets = [0, 128], sizes = [1, 64], strides = [1, 1]} : vector<2x1024xf32> to vector<1x64xf32>
    %c2 = arith.constant 2 : index
    %c0_23 = arith.constant 0 : index
    %31 = vector.load %arg14[%c2, %c0_23] : memref<16x128xf32, #tpu.memory_space<vmem>>, vector<1x64xf32>
    tpu.vector_store %arg14[%c2, %c0_23], %30 {strides = array<i32>} : memref<16x128xf32, #tpu.memory_space<vmem>>, vector<1x64xf32>,
    %32 = vector.extract_strided_slice %21 {offsets = [1, 128], sizes = [1, 64], strides = [1, 1]} : vector<2x1024xf32> to vector<1x64xf32>
    %c2_24 = arith.constant 2 : index
    %c64_25 = arith.constant 64 : index
    %33 = vector.load %arg14[%c2_24, %c64_25] : memref<16x128xf32, #tpu.memory_space<vmem>>, vector<1x64xf32>
    tpu.vector_store %arg14[%c2_24, %c64_25], %32 {strides = array<i32>} : memref<16x128xf32, #tpu.memory_space<vmem>>, vector<1x64xf32>,
    %34 = vector.extract_strided_slice %21 {offsets = [0, 192], sizes = [1, 64], strides = [1, 1]} : vector<2x1024xf32> to vector<1x64xf32>
    %c3 = arith.constant 3 : index
    %c0_26 = arith.constant 0 : index
    %35 = vector.load %arg14[%c3, %c0_26] : memref<16x128xf32, #tpu.memory_space<vmem>>, vector<1x64xf32>
    tpu.vector_store %arg14[%c3, %c0_26], %34 {strides = array<i32>} : memref<16x128xf32, #tpu.memory_space<vmem>>, vector<1x64xf32>,
    %36 = vector.extract_strided_slice %21 {offsets = [1, 192], sizes = [1, 64], strides = [1, 1]} : vector<2x1024xf32> to vector<1x64xf32>
    %c3_27 = arith.constant 3 : index
    %c64_28 = arith.constant 64 : index
    %37 = vector.load %arg14[%c3_27, %c64_28] : memref<16x128xf32, #tpu.memory_space<vmem>>, vector<1x64xf32>
    tpu.vector_store %arg14[%c3_27, %c64_28], %36 {strides = array<i32>} : memref<16x128xf32, #tpu.memory_space<vmem>>, vector<1x64xf32>,
    %38 = vector.extract_strided_slice %21 {offsets = [0, 256], sizes = [1, 64], strides = [1, 1]} : vector<2x1024xf32> to vector<1x64xf32>
    %c4 = arith.constant 4 : index
    %c0_29 = arith.constant 0 : index
    %39 = vector.load %arg14[%c4, %c0_29] : memref<16x128xf32, #tpu.memory_space<vmem>>, vector<1x64xf32>
    tpu.vector_store %arg14[%c4, %c0_29], %38 {strides = array<i32>} : memref<16x128xf32, #tpu.memory_space<vmem>>, vector<1x64xf32>,
    %40 = vector.extract_strided_slice %21 {offsets = [1, 256], sizes = [1, 64], strides = [1, 1]} : vector<2x1024xf32> to vector<1x64xf32>
    %c4_30 = arith.constant 4 : index
    %c64_31 = arith.constant 64 : index
    %41 = vector.load %arg14[%c4_30, %c64_31] : memref<16x128xf32, #tpu.memory_space<vmem>>, vector<1x64xf32>
    tpu.vector_store %arg14[%c4_30, %c64_31], %40 {strides = array<i32>} : memref<16x128xf32, #tpu.memory_space<vmem>>, vector<1x64xf32>,
    %42 = vector.extract_strided_slice %21 {offsets = [0, 320], sizes = [1, 64], strides = [1, 1]} : vector<2x1024xf32> to vector<1x64xf32>
    %c5 = arith.constant 5 : index
    %c0_32 = arith.constant 0 : index
    %43 = vector.load %arg14[%c5, %c0_32] : memref<16x128xf32, #tpu.memory_space<vmem>>, vector<1x64xf32>
    tpu.vector_store %arg14[%c5, %c0_32], %42 {strides = array<i32>} : memref<16x128xf32, #tpu.memory_space<vmem>>, vector<1x64xf32>,
    %44 = vector.extract_strided_slice %21 {offsets = [1, 320], sizes = [1, 64], strides = [1, 1]} : vector<2x1024xf32> to vector<1x64xf32>
    %c5_33 = arith.constant 5 : index
    %c64_34 = arith.constant 64 : index
    %45 = vector.load %arg14[%c5_33, %c64_34] : memref<16x128xf32, #tpu.memory_space<vmem>>, vector<1x64xf32>
    tpu.vector_store %arg14[%c5_33, %c64_34], %44 {strides = array<i32>} : memref<16x128xf32, #tpu.memory_space<vmem>>, vector<1x64xf32>,
    %46 = vector.extract_strided_slice %21 {offsets = [0, 384], sizes = [1, 64], strides = [1, 1]} : vector<2x1024xf32> to vector<1x64xf32>
    %c6 = arith.constant 6 : index
    %c0_35 = arith.constant 0 : index
    %47 = vector.load %arg14[%c6, %c0_35] : memref<16x128xf32, #tpu.memory_space<vmem>>, vector<1x64xf32>
    tpu.vector_store %arg14[%c6, %c0_35], %46 {strides = array<i32>} : memref<16x128xf32, #tpu.memory_space<vmem>>, vector<1x64xf32>,
    %48 = vector.extract_strided_slice %21 {offsets = [1, 384], sizes = [1, 64], strides = [1, 1]} : vector<2x1024xf32> to vector<1x64xf32>
    %c6_36 = arith.constant 6 : index
    %c64_37 = arith.constant 64 : index
    %49 = vector.load %arg14[%c6_36, %c64_37] : memref<16x128xf32, #tpu.memory_space<vmem>>, vector<1x64xf32>
    tpu.vector_store %arg14[%c6_36, %c64_37], %48 {strides = array<i32>} : memref<16x128xf32, #tpu.memory_space<vmem>>, vector<1x64xf32>,
    %50 = vector.extract_strided_slice %21 {offsets = [0, 448], sizes = [1, 64], strides = [1, 1]} : vector<2x1024xf32> to vector<1x64xf32>
    %c7 = arith.constant 7 : index
    %c0_38 = arith.constant 0 : index
    %51 = vector.load %arg14[%c7, %c0_38] : memref<16x128xf32, #tpu.memory_space<vmem>>, vector<1x64xf32>
    tpu.vector_store %arg14[%c7, %c0_38], %50 {strides = array<i32>} : memref<16x128xf32, #tpu.memory_space<vmem>>, vector<1x64xf32>,
    %52 = vector.extract_strided_slice %21 {offsets = [1, 448], sizes = [1, 64], strides = [1, 1]} : vector<2x1024xf32> to vector<1x64xf32>
    %c7_39 = arith.constant 7 : index
    %c64_40 = arith.constant 64 : index
    %53 = vector.load %arg14[%c7_39, %c64_40] : memref<16x128xf32, #tpu.memory_space<vmem>>, vector<1x64xf32>
    tpu.vector_store %arg14[%c7_39, %c64_40], %52 {strides = array<i32>} : memref<16x128xf32, #tpu.memory_space<vmem>>, vector<1x64xf32>,
    %54 = vector.extract_strided_slice %21 {offsets = [0, 512], sizes = [1, 64], strides = [1, 1]} : vector<2x1024xf32> to vector<1x64xf32>
    %c8 = arith.constant 8 : index
    %c0_41 = arith.constant 0 : index
    %55 = vector.load %arg14[%c8, %c0_41] : memref<16x128xf32, #tpu.memory_space<vmem>>, vector<1x64xf32>
    tpu.vector_store %arg14[%c8, %c0_41], %54 {strides = array<i32>} : memref<16x128xf32, #tpu.memory_space<vmem>>, vector<1x64xf32>,
    %56 = vector.extract_strided_slice %21 {offsets = [1, 512], sizes = [1, 64], strides = [1, 1]} : vector<2x1024xf32> to vector<1x64xf32>
    %c8_42 = arith.constant 8 : index
    %c64_43 = arith.constant 64 : index
    %57 = vector.load %arg14[%c8_42, %c64_43] : memref<16x128xf32, #tpu.memory_space<vmem>>, vector<1x64xf32>
    tpu.vector_store %arg14[%c8_42, %c64_43], %56 {strides = array<i32>} : memref<16x128xf32, #tpu.memory_space<vmem>>, vector<1x64xf32>,
    %58 = vector.extract_strided_slice %21 {offsets = [0, 576], sizes = [1, 64], strides = [1, 1]} : vector<2x1024xf32> to vector<1x64xf32>
    %c9 = arith.constant 9 : index
    %c0_44 = arith.constant 0 : index
    %59 = vector.load %arg14[%c9, %c0_44] : memref<16x128xf32, #tpu.memory_space<vmem>>, vector<1x64xf32>
    tpu.vector_store %arg14[%c9, %c0_44], %58 {strides = array<i32>} : memref<16x128xf32, #tpu.memory_space<vmem>>, vector<1x64xf32>,
    %60 = vector.extract_strided_slice %21 {offsets = [1, 576], sizes = [1, 64], strides = [1, 1]} : vector<2x1024xf32> to vector<1x64xf32>
    %c9_45 = arith.constant 9 : index
    %c64_46 = arith.constant 64 : index
    %61 = vector.load %arg14[%c9_45, %c64_46] : memref<16x128xf32, #tpu.memory_space<vmem>>, vector<1x64xf32>
    tpu.vector_store %arg14[%c9_45, %c64_46], %60 {strides = array<i32>} : memref<16x128xf32, #tpu.memory_space<vmem>>, vector<1x64xf32>,
    %62 = vector.extract_strided_slice %21 {offsets = [0, 640], sizes = [1, 64], strides = [1, 1]} : vector<2x1024xf32> to vector<1x64xf32>
    %c10 = arith.constant 10 : index
    %c0_47 = arith.constant 0 : index
    %63 = vector.load %arg14[%c10, %c0_47] : memref<16x128xf32, #tpu.memory_space<vmem>>, vector<1x64xf32>
    tpu.vector_store %arg14[%c10, %c0_47], %62 {strides = array<i32>} : memref<16x128xf32, #tpu.memory_space<vmem>>, vector<1x64xf32>,
    %64 = vector.extract_strided_slice %21 {offsets = [1, 640], sizes = [1, 64], strides = [1, 1]} : vector<2x1024xf32> to vector<1x64xf32>
    %c10_48 = arith.constant 10 : index
    %c64_49 = arith.constant 64 : index
    %65 = vector.load %arg14[%c10_48, %c64_49] : memref<16x128xf32, #tpu.memory_space<vmem>>, vector<1x64xf32>
    tpu.vector_store %arg14[%c10_48, %c64_49], %64 {strides = array<i32>} : memref<16x128xf32, #tpu.memory_space<vmem>>, vector<1x64xf32>,
    %66 = vector.extract_strided_slice %21 {offsets = [0, 704], sizes = [1, 64], strides = [1, 1]} : vector<2x1024xf32> to vector<1x64xf32>
    %c11 = arith.constant 11 : index
    %c0_50 = arith.constant 0 : index
    %67 = vector.load %arg14[%c11, %c0_50] : memref<16x128xf32, #tpu.memory_space<vmem>>, vector<1x64xf32>
    tpu.vector_store %arg14[%c11, %c0_50], %66 {strides = array<i32>} : memref<16x128xf32, #tpu.memory_space<vmem>>, vector<1x64xf32>,
    %68 = vector.extract_strided_slice %21 {offsets = [1, 704], sizes = [1, 64], strides = [1, 1]} : vector<2x1024xf32> to vector<1x64xf32>
    %c11_51 = arith.constant 11 : index
    %c64_52 = arith.constant 64 : index
    %69 = vector.load %arg14[%c11_51, %c64_52] : memref<16x128xf32, #tpu.memory_space<vmem>>, vector<1x64xf32>
    tpu.vector_store %arg14[%c11_51, %c64_52], %68 {strides = array<i32>} : memref<16x128xf32, #tpu.memory_space<vmem>>, vector<1x64xf32>,
    %70 = vector.extract_strided_slice %21 {offsets = [0, 768], sizes = [1, 64], strides = [1, 1]} : vector<2x1024xf32> to vector<1x64xf32>
    %c12 = arith.constant 12 : index
    %c0_53 = arith.constant 0 : index
    %71 = vector.load %arg14[%c12, %c0_53] : memref<16x128xf32, #tpu.memory_space<vmem>>, vector<1x64xf32>
    tpu.vector_store %arg14[%c12, %c0_53], %70 {strides = array<i32>} : memref<16x128xf32, #tpu.memory_space<vmem>>, vector<1x64xf32>,
    %72 = vector.extract_strided_slice %21 {offsets = [1, 768], sizes = [1, 64], strides = [1, 1]} : vector<2x1024xf32> to vector<1x64xf32>
    %c12_54 = arith.constant 12 : index
    %c64_55 = arith.constant 64 : index
    %73 = vector.load %arg14[%c12_54, %c64_55] : memref<16x128xf32, #tpu.memory_space<vmem>>, vector<1x64xf32>
    tpu.vector_store %arg14[%c12_54, %c64_55], %72 {strides = array<i32>} : memref<16x128xf32, #tpu.memory_space<vmem>>, vector<1x64xf32>,
    %74 = vector.extract_strided_slice %21 {offsets = [0, 832], sizes = [1, 64], strides = [1, 1]} : vector<2x1024xf32> to vector<1x64xf32>
    %c13 = arith.constant 13 : index
    %c0_56 = arith.constant 0 : index
    %75 = vector.load %arg14[%c13, %c0_56] : memref<16x128xf32, #tpu.memory_space<vmem>>, vector<1x64xf32>
    tpu.vector_store %arg14[%c13, %c0_56], %74 {strides = array<i32>} : memref<16x128xf32, #tpu.memory_space<vmem>>, vector<1x64xf32>,
    %76 = vector.extract_strided_slice %21 {offsets = [1, 832], sizes = [1, 64], strides = [1, 1]} : vector<2x1024xf32> to vector<1x64xf32>
    %c13_57 = arith.constant 13 : index
    %c64_58 = arith.constant 64 : index
    %77 = vector.load %arg14[%c13_57, %c64_58] : memref<16x128xf32, #tpu.memory_space<vmem>>, vector<1x64xf32>
    tpu.vector_store %arg14[%c13_57, %c64_58], %76 {strides = array<i32>} : memref<16x128xf32, #tpu.memory_space<vmem>>, vector<1x64xf32>,
    %78 = vector.extract_strided_slice %21 {offsets = [0, 896], sizes = [1, 64], strides = [1, 1]} : vector<2x1024xf32> to vector<1x64xf32>
    %c14 = arith.constant 14 : index
    %c0_59 = arith.constant 0 : index
    %79 = vector.load %arg14[%c14, %c0_59] : memref<16x128xf32, #tpu.memory_space<vmem>>, vector<1x64xf32>
    tpu.vector_store %arg14[%c14, %c0_59], %78 {strides = array<i32>} : memref<16x128xf32, #tpu.memory_space<vmem>>, vector<1x64xf32>,
    %80 = vector.extract_strided_slice %21 {offsets = [1, 896], sizes = [1, 64], strides = [1, 1]} : vector<2x1024xf32> to vector<1x64xf32>
    %c14_60 = arith.constant 14 : index
    %c64_61 = arith.constant 64 : index
    %81 = vector.load %arg14[%c14_60, %c64_61] : memref<16x128xf32, #tpu.memory_space<vmem>>, vector<1x64xf32>
    tpu.vector_store %arg14[%c14_60, %c64_61], %80 {strides = array<i32>} : memref<16x128xf32, #tpu.memory_space<vmem>>, vector<1x64xf32>,
    %82 = vector.extract_strided_slice %21 {offsets = [0, 960], sizes = [1, 64], strides = [1, 1]} : vector<2x1024xf32> to vector<1x64xf32>
    %c15 = arith.constant 15 : index
    %c0_62 = arith.constant 0 : index
    %83 = vector.load %arg14[%c15, %c0_62] : memref<16x128xf32, #tpu.memory_space<vmem>>, vector<1x64xf32>
    tpu.vector_store %arg14[%c15, %c0_62], %82 {strides = array<i32>} : memref<16x128xf32, #tpu.memory_space<vmem>>, vector<1x64xf32>,
    %84 = vector.extract_strided_slice %21 {offsets = [1, 960], sizes = [1, 64], strides = [1, 1]} : vector<2x1024xf32> to vector<1x64xf32>
    %c15_63 = arith.constant 15 : index
    %c64_64 = arith.constant 64 : index
    %85 = vector.load %arg14[%c15_63, %c64_64] : memref<16x128xf32, #tpu.memory_space<vmem>>, vector<1x64xf32>
    tpu.vector_store %arg14[%c15_63, %c64_64], %84 {strides = array<i32>} : memref<16x128xf32, #tpu.memory_space<vmem>>, vector<1x64xf32>,
    %c0_65 = arith.constant 0 : index
    %c0_66 = arith.constant 0 : index
    %86 = vector.load %arg14[%c0_65, %c0_66] : memref<16x128xf32, #tpu.memory_space<vmem>>, vector<16x128xf32>
    %87 = arith.truncf %86 : vector<16x128xf32> to vector<16x128xbf16>
    %c0_67 = arith.constant 0 : index
    %c0_68 = arith.constant 0 : index
    %88 = vector.load %arg7[%c0_67, %c0_68] : memref<32x16xbf16, #tpu.memory_space<vmem>>, vector<32x16xbf16>
    %cst_69 = arith.constant dense<0.000000e+00> : vector<32x128xf32>
    %89 = tpu.matmul %88, %87, %cst_69 {dimension_numbers = #tpu.dot_dimension_numbers<[1], [0], [0], [1], [0, 0, 1, 1], [], []>} : vector<32x16xbf16>, vector<16x128xbf16>, vector<32x128xf32> -> vector<32x128xf32>
    %c0_70 = arith.constant 0 : index
    %c0_71 = arith.constant 0 : index
    %90 = vector.load %arg8[%c0_70, %c0_71] : memref<32x1xf32, #tpu.memory_space<vmem>>, vector<32x1xf32>
    %91 = vector.broadcast %90 : vector<32x1xf32> to vector<32x128xf32>
    %92 = arith.addf %89, %91 : vector<32x128xf32>
    %cst_72 = arith.constant 0.000000e+00 : f32
    %93 = vector.broadcast %cst_72 : f32 to vector<32x128xf32>
    %94 = arith.maximumf %92, %93 : vector<32x128xf32>
    %c0_73 = arith.constant 0 : index
    %c0_74 = arith.constant 0 : index
    %95 = vector.load %arg9[%c0_73, %c0_74] : memref<16x32xbf16, #tpu.memory_space<vmem>>, vector<16x32xbf16>
    %96 = arith.truncf %94 : vector<32x128xf32> to vector<32x128xbf16>
    %cst_75 = arith.constant dense<0.000000e+00> : vector<16x128xf32>
    %97 = tpu.matmul %95, %96, %cst_75 {dimension_numbers = #tpu.dot_dimension_numbers<[1], [0], [0], [1], [0, 0, 1, 1], [], []>} : vector<16x32xbf16>, vector<32x128xbf16>, vector<16x128xf32> -> vector<16x128xf32>
    %c0_76 = arith.constant 0 : index
    %c0_77 = arith.constant 0 : index
    %98 = vector.load %arg10[%c0_76, %c0_77] : memref<16x1xf32, #tpu.memory_space<vmem>>, vector<16x1xf32>
    %99 = vector.broadcast %98 : vector<16x1xf32> to vector<16x128xf32>
    %100 = arith.addf %97, %99 : vector<16x128xf32>
    %101 = arith.negf %100 : vector<16x128xf32>
    %102 = math.exp %101 : vector<16x128xf32>
    %cst_78 = arith.constant 1.000000e+00 : f32
    %103 = vector.broadcast %cst_78 : f32 to vector<16x128xf32>
    %104 = arith.addf %103, %102 : vector<16x128xf32>
    %105 = arith.divf %103, %104 : vector<16x128xf32>
    %c0_79 = arith.constant 0 : index
    %c0_80 = arith.constant 0 : index
    %106 = vector.load %arg13[%c0_79, %c0_80] : memref<16x128xf32, #tpu.memory_space<vmem>>, vector<16x128xf32>
    tpu.vector_store %arg13[%c0_79, %c0_80], %105 {strides = array<i32>} : memref<16x128xf32, #tpu.memory_space<vmem>>, vector<16x128xf32>,
    return
  }
  func.func @transform_0(%arg0: i32) -> (i32, i32) {
    %c0_i32 = arith.constant 0 : i32
    %c0_i32_0 = arith.constant 0 : i32
    %c0_i32_1 = arith.constant 0 : i32
    return %c0_i32, %c0_i32_0 : i32, i32
  }
  func.func @transform_1(%arg0: i32) -> (i32, i32) {
    %c0_i32 = arith.constant 0 : i32
    %c0_i32_0 = arith.constant 0 : i32
    %c0_i32_1 = arith.constant 0 : i32
    return %c0_i32, %c0_i32_0 : i32, i32
  }
  func.func @transform_2(%arg0: i32) -> (i32, i32) {
    %c0_i32 = arith.constant 0 : i32
    %c0_i32_0 = arith.constant 0 : i32
    %c0_i32_1 = arith.constant 0 : i32
    return %c0_i32, %c0_i32_0 : i32, i32
  }
  func.func @transform_3(%arg0: i32) -> (i32, i32) {
    %c0_i32 = arith.constant 0 : i32
    %c0_i32_0 = arith.constant 0 : i32
    %c0_i32_1 = arith.constant 0 : i32
    return %c0_i32, %c0_i32_0 : i32, i32
  }
  func.func @transform_4(%arg0: i32) -> (i32, i32) {
    %c0_i32 = arith.constant 0 : i32
    %c0_i32_0 = arith.constant 0 : i32
    %c0_i32_1 = arith.constant 0 : i32
    return %c0_i32, %c0_i32_0 : i32, i32
  }
  func.func @transform_5(%arg0: i32) -> (i32, i32) {
    %c0_i32 = arith.constant 0 : i32
    %c0_i32_0 = arith.constant 0 : i32
    %c0_i32_1 = arith.constant 0 : i32
    return %c0_i32, %c0_i32_0 : i32, i32
  }
  func.func @transform_6(%arg0: i32) -> (i32, i32) {
    %c0_i32 = arith.constant 0 : i32
    %c0_i32_0 = arith.constant 0 : i32
    %c0_i32_1 = arith.constant 0 : i32
    return %c0_i32, %c0_i32_0 : i32, i32
  }
  func.func @transform_7(%arg0: i32) -> (i32, i32) {
    %c0_i32 = arith.constant 0 : i32
    %c0_i32_0 = arith.constant 0 : i32
    %c0_i32_1 = arith.constant 0 : i32
    return %c0_i32, %c0_i32_0 : i32, i32
  }
  func.func @transform_8(%arg0: i32) -> (i32, i32) {
    %c0_i32 = arith.constant 0 : i32
    %c0_i32_0 = arith.constant 0 : i32
    %c0_i32_1 = arith.constant 0 : i32
    return %c0_i32, %c0_i32_0 : i32, i32
  }
  func.func @transform_9(%arg0: i32) -> (i32, i32) {
    %c0_i32 = arith.constant 0 : i32
    %c0_i32_0 = arith.constant 0 : i32
    %c0_i32_1 = arith.constant 0 : i32
    return %c0_i32, %c0_i32_0 : i32, i32
  }
  func.func @transform_10(%arg0: i32) -> (i32, i32) {
    %c0_i32 = arith.constant 0 : i32
    %c0_i32_0 = arith.constant 0 : i32
    %c0_i32_1 = arith.constant 0 : i32
    return %c0_i32, %c0_i32_0 : i32, i32
  }
  func.func @transform_11(%arg0: i32) -> (i32, i32) {
    %c0_i32 = arith.constant 0 : i32
    %c0_i32_0 = arith.constant 0 : i32
    %c0_i32_1 = arith.constant 0 : i32
    return %c0_i32, %c0_i32_0 : i32, i32
  }
  func.func @transform_12(%arg0: i32) -> (i32, i32) {
    %c0_i32 = arith.constant 0 : i32
    %c0_i32_0 = arith.constant 0 : i32
    %c0_i32_1 = arith.constant 0 : i32
    return %c0_i32, %c0_i32_0 : i32, i32
  }
}

</mosaic_0001>

<llo_original>
// kernel: vae_forward.3
$region0: #{vae_forward.3}
  #allocation0 [shape = 'u32[]', space=smem, size = 0x4, offset = 0x4, fixed_abs, tag = 'smem constant byte address 0x4 - core index']
  #allocation1 [shape = 'u32[144,128]{1,0:T(1,128)}', space=vmem, size = 0x12000, scoped, tag = 'internal scratch']
  %s0 = inlined_call_operand.vmem [shape: bf16[8,9], index: 0, kind: input, shape index: {}]
  %s1 = inlined_call_operand.vmem [shape: bf16[9,1568], index: 1, kind: input, shape index: {}]
  %s2 = inlined_call_operand.vmem [shape: f32[8,1], index: 2, kind: input, shape index: {}]
  %s3 = inlined_call_operand.vmem [shape: bf16[8,1568], index: 3, kind: output, shape index: {}]
  %s4 = sld [smem:[#allocation0]]
  $region22: #{vae_forward.3} parent=0
    _
  %s6 = ssub.s32 1, %s4
  %s7 = scalar_select 0, %s6, %s4
  // Predicated region
  $region2: #{vae_forward.3} parent=0 // pred_check
    _
  $region3: #{vae_forward.3} parent=0 // pred_check_branch
    %9 = sbr.rel (0) target = $region5
  $region4: #{vae_forward.3} parent=0 // pred_region
    _
  $region5: #{vae_forward.3} parent=0 // pred_fallthru
    _
  // Predicated region
  $region6: #{vae_forward.3} parent=0 // pred_check
    _
  $region7: #{vae_forward.3} parent=0 // pred_check_branch
    %11 = sbr.rel (0) target = $region9
  $region8: #{vae_forward.3} parent=0 // pred_region
    _
  $region9: #{vae_forward.3} parent=0 // pred_fallthru
    _
  // Predicated region
  $region10: #{vae_forward.3} parent=0 // pred_check
    _
  $region11: #{vae_forward.3} parent=0 // pred_check_branch
    %13 = sbr.rel (0) target = $region13
  $region12: #{vae_forward.3} parent=0 // pred_region
    _
  $region13: #{vae_forward.3} parent=0 // pred_fallthru
    _
  %v15 = vld [vmem:[%s0] sm:$0xf]
  %v16 = vld [vmem:[%s1] sm:$0xff]
  %v17 = vld [vmem:[%s1 + $0x8] sm:$0xff]
  %v18 = vld [vmem:[%s1 + $0x10] sm:$0xff]
  %v19 = vld [vmem:[%s1 + $0x18] sm:$0xff]
  %v20 = vld [vmem:[%s1 + $0x20] sm:$0xff]
  %v21 = vld [vmem:[%s1 + $0x28] sm:$0xff]
  %v22 = vld [vmem:[%s1 + $0x30] sm:$0xf]
  %v23 = vld [vmem:[%s1 + $0x34] sm:$0x11]
  %v24 = vld [vmem:[%s1 + $0x3c] sm:$0x11]
  %v25 = vld [vmem:[%s1 + $0x44] sm:$0x11]
  %v26 = vld [vmem:[%s1 + $0x4c] sm:$0x11]
  %v27 = vld [vmem:[%s1 + $0x54] sm:$0x11]
  %v28 = vld [vmem:[%s1 + $0x5c] sm:$0x11]
  %v29 = vld [vmem:[%s1 + $0x64] sm:$0x1]
  %v30 = vld [vmem:[%s2] sm:$0xff]
  %32 = vset.pattern.permute.xlu0 0
  %33 = vperm.xlu0 %32, %v30
  %v34 = vpop.permute.xlu0 %33
  %v50 = vunpack.c.l.b16 %v16
  %v51 = vunpack.c.h.b16 %v16
  %v52 = vunpack.c.l.b16 %v17
  %v53 = vunpack.c.h.b16 %v17
  %v54 = vunpack.c.l.b16 %v18
  %v55 = vunpack.c.h.b16 %v18
  %v56 = vunpack.c.l.b16 %v19
  %v57 = vunpack.c.h.b16 %v19
  %v58 = vunpack.c.l.b16 %v20
  %v59 = vunpack.c.h.b16 %v20
  %v60 = vunpack.c.l.b16 %v21
  %v61 = vunpack.c.h.b16 %v21
  %v62 = vunpack.c.l.b16 %v22
  %v63 = vunpack.c.l.b16 %v23
  %v64 = vunpack.c.h.b16 %v23
  %v65 = vunpack.c.l.b16 %v24
  %v66 = vunpack.c.h.b16 %v24
  %v67 = vunpack.c.l.b16 %v25
  %v68 = vunpack.c.h.b16 %v25
  %v69 = vunpack.c.l.b16 %v26
  %v70 = vunpack.c.h.b16 %v26
  %v71 = vunpack.c.l.b16 %v27
  %v72 = vunpack.c.h.b16 %v27
  %v73 = vunpack.c.l.b16 %v28
  %v74 = vunpack.c.h.b16 %v28
  %v75 = vunpack.c.l.b16 %v29
  %v76 = vpack.c.b16 %v63, %v50
  %v77 = vpack.c.b16 %v64, %v51
  %v78 = vpack.c.b16 %v65, %v52
  %v79 = vpack.c.b16 %v66, %v53
  %v80 = vpack.c.b16 %v67, %v54
  %v81 = vpack.c.b16 %v68, %v55
  %v82 = vpack.c.b16 %v69, %v56
  %v83 = vpack.c.b16 %v70, %v57
  %v84 = vpack.c.b16 %v71, %v58
  %v85 = vpack.c.b16 %v72, %v59
  %v86 = vpack.c.b16 %v73, %v60
  %v87 = vpack.c.b16 %v74, %v61
  %v88 = vpack.c.b16 %v75, %v62
  %vm89 = vcmask 72704
  %v91 = vsel %vm89, %v15, 0
  %vm93 = vcmask 1043456
  %vm94 = vcmask 1044480
  %v95 = vsel %vm93, 4294967295, 65535
  %v96 = vsel %vm94, %v95, 0
  %v98 = vand.u32 %v76, %v96
  %v101 = vand.u32 %v77, %v96
  %v104 = vand.u32 %v78, %v96
  %v107 = vand.u32 %v79, %v96
  %v110 = vand.u32 %v80, %v96
  %v113 = vand.u32 %v81, %v96
  %v116 = vand.u32 %v82, %v96
  %v119 = vand.u32 %v83, %v96
  %v122 = vand.u32 %v84, %v96
  %v125 = vand.u32 %v85, %v96
  %v128 = vand.u32 %v86, %v96
  %v131 = vand.u32 %v87, %v96
  %v134 = vand.u32 %v88, %v96
  %136 = vmatprep.subr.bf16.mxu0 %v101
  %137 = vmatpush1.bf16.msra.mxu0 %v98
  %138 = vmatprep.subr.bf16.mxu0 0
  %139 = vmatpush1.bf16.msra.mxu0 0
  %140 = vmatprep.subr.bf16.mxu0 0
  %141 = vmatpush1.bf16.msra.mxu0 0
  %142 = vmatprep.subr.bf16.mxu0 0
  %143 = vmatpush1.bf16.msra.mxu0 0
  %144 = vmatprep.subr.bf16.mxu0 0
  %145 = vmatpush1.bf16.msra.mxu0 0
  %146 = vmatprep.subr.bf16.mxu0 0
  %147 = vmatpush1.bf16.msra.mxu0 0
  %148 = vmatprep.subr.bf16.mxu0 0
  %149 = vmatpush1.bf16.msra.mxu0 0
  %150 = vmatprep.subr.bf16.mxu0 0
  %151 = vmatpush1.bf16.msra.mxu0 0
  %152 = vmatprep.subr.bf16.mxu0 0
  %153 = vmatpush1.bf16.msra.mxu0 0
  %154 = vmatprep.subr.bf16.mxu0 0
  %155 = vmatpush1.bf16.msra.mxu0 0
  %156 = vmatprep.subr.bf16.mxu0 0
  %157 = vmatpush1.bf16.msra.mxu0 0
  %158 = vmatprep.subr.bf16.mxu0 0
  %159 = vmatpush1.bf16.msra.mxu0 0
  %160 = vmatprep.subr.bf16.mxu0 0
  %161 = vmatpush1.bf16.msra.mxu0 0
  %162 = vmatprep.subr.bf16.mxu0 0
  %163 = vmatpush1.bf16.msra.mxu0 0
  %164 = vmatprep.subr.bf16.mxu0 0
  %165 = vmatpush1.bf16.msra.mxu0 0
  %166 = vmatprep.subr.bf16.mxu0 0
  %167 = vmatpush1.bf16.msra.mxu0 0
  %168 = vmatprep.mubr.bf16.mxu0 0
  %169 = vmatmul.mubr.bf16.gmra.mrb[0].mxu0 %v91
  %v170 = vpop.f32.mrb[0].mxu0
  %v171 = vadd.f32 %v34, %v170
  %v172 = vpop.f32.mrb[0].mxu0
  %v173 = vadd.f32 %v34, %v172
  %v174 = vpop.f32.mrb[0].mxu0
  %v175 = vpop.f32.mrb[0].mxu0
  %176 = vdwg.mxu0
  %177 = vmatprep.subr.bf16.mxu0 %v107
  %178 = vmatpush1.bf16.msra.mxu0 %v104
  %179 = vmatprep.subr.bf16.mxu0 0
  %180 = vmatpush1.bf16.msra.mxu0 0
  %181 = vmatprep.subr.bf16.mxu0 0
  %182 = vmatpush1.bf16.msra.mxu0 0
  %183 = vmatprep.subr.bf16.mxu0 0
  %184 = vmatpush1.bf16.msra.mxu0 0
  %185 = vmatprep.subr.bf16.mxu0 0
  %186 = vmatpush1.bf16.msra.mxu0 0
  %187 = vmatprep.subr.bf16.mxu0 0
  %188 = vmatpush1.bf16.msra.mxu0 0
  %189 = vmatprep.subr.bf16.mxu0 0
  %190 = vmatpush1.bf16.msra.mxu0 0
  %191 = vmatprep.subr.bf16.mxu0 0
  %192 = vmatpush1.bf16.msra.mxu0 0
  %193 = vmatprep.subr.bf16.mxu0 0
  %194 = vmatpush1.bf16.msra.mxu0 0
  %195 = vmatprep.subr.bf16.mxu0 0
  %196 = vmatpush1.bf16.msra.mxu0 0
  %197 = vmatprep.subr.bf16.mxu0 0
  %198 = vmatpush1.bf16.msra.mxu0 0
  %199 = vmatprep.subr.bf16.mxu0 0
  %200 = vmatpush1.bf16.msra.mxu0 0
  %201 = vmatprep.subr.bf16.mxu0 0
  %202 = vmatpush1.bf16.msra.mxu0 0
  %203 = vmatprep.subr.bf16.mxu0 0
  %204 = vmatpush1.bf16.msra.mxu0 0
  %205 = vmatprep.subr.bf16.mxu0 0
  %206 = vmatpush1.bf16.msra.mxu0 0
  %207 = vmatprep.subr.bf16.mxu0 0
  %208 = vmatpush1.bf16.msra.mxu0 0
  %209 = vmatprep.mubr.bf16.mxu0 0
  %210 = vmatmul.mubr.bf16.gmra.mrb[0].mxu0 %v91
  %v211 = vpop.f32.mrb[0].mxu0
  %v212 = vadd.f32 %v34, %v211
  %v213 = vpop.f32.mrb[0].mxu0
  %v214 = vadd.f32 %v34, %v213
  %v215 = vpop.f32.mrb[0].mxu0
  %v216 = vpop.f32.mrb[0].mxu0
  %217 = vdwg.mxu0
  %218 = vmatprep.subr.bf16.mxu0 %v113
  %219 = vmatpush1.bf16.msra.mxu0 %v110
  %220 = vmatprep.subr.bf16.mxu0 0
  %221 = vmatpush1.bf16.msra.mxu0 0
  %222 = vmatprep.subr.bf16.mxu0 0
  %223 = vmatpush1.bf16.msra.mxu0 0
  %224 = vmatprep.subr.bf16.mxu0 0
  %225 = vmatpush1.bf16.msra.mxu0 0
  %226 = vmatprep.subr.bf16.mxu0 0
  %227 = vmatpush1.bf16.msra.mxu0 0
  %228 = vmatprep.subr.bf16.mxu0 0
  %229 = vmatpush1.bf16.msra.mxu0 0
  %230 = vmatprep.subr.bf16.mxu0 0
  %231 = vmatpush1.bf16.msra.mxu0 0
  %232 = vmatprep.subr.bf16.mxu0 0
  %233 = vmatpush1.bf16.msra.mxu0 0
  %234 = vmatprep.subr.bf16.mxu0 0
  %235 = vmatpush1.bf16.msra.mxu0 0
  %236 = vmatprep.subr.bf16.mxu0 0
  %237 = vmatpush1.bf16.msra.mxu0 0
  %238 = vmatprep.subr.bf16.mxu0 0
  %239 = vmatpush1.bf16.msra.mxu0 0
  %240 = vmatprep.subr.bf16.mxu0 0
  %241 = vmatpush1.bf16.msra.mxu0 0
  %242 = vmatprep.subr.bf16.mxu0 0
  %243 = vmatpush1.bf16.msra.mxu0 0
  %244 = vmatprep.subr.bf16.mxu0 0
  %245 = vmatpush1.bf16.msra.mxu0 0
  %246 = vmatprep.subr.bf16.mxu0 0
  %247 = vmatpush1.bf16.msra.mxu0 0
  %248 = vmatprep.subr.bf16.mxu0 0
  %249 = vmatpush1.bf16.msra.mxu0 0
  %250 = vmatprep.mubr.bf16.mxu0 0
  %251 = vmatmul.mubr.bf16.gmra.mrb[0].mxu0 %v91
  %v252 = vpop.f32.mrb[0].mxu0
  %v253 = vadd.f32 %v34, %v252
  %v254 = vpop.f32.mrb[0].mxu0
  %v255 = vadd.f32 %v34, %v254
  %v256 = vpop.f32.mrb[0].mxu0
  %v257 = vpop.f32.mrb[0].mxu0
  %258 = vdwg.mxu0
  %259 = vmatprep.subr.bf16.mxu0 %v119
  %260 = vmatpush1.bf16.msra.mxu0 %v116
  %261 = vmatprep.subr.bf16.mxu0 0
  %262 = vmatpush1.bf16.msra.mxu0 0
  %263 = vmatprep.subr.bf16.mxu0 0
  %264 = vmatpush1.bf16.msra.mxu0 0
  %265 = vmatprep.subr.bf16.mxu0 0
  %266 = vmatpush1.bf16.msra.mxu0 0
  %267 = vmatprep.subr.bf16.mxu0 0
  %268 = vmatpush1.bf16.msra.mxu0 0
  %269 = vmatprep.subr.bf16.mxu0 0
  %270 = vmatpush1.bf16.msra.mxu0 0
  %271 = vmatprep.subr.bf16.mxu0 0
  %272 = vmatpush1.bf16.msra.mxu0 0
  %273 = vmatprep.subr.bf16.mxu0 0
  %274 = vmatpush1.bf16.msra.mxu0 0
  %275 = vmatprep.subr.bf16.mxu0 0
  %276 = vmatpush1.bf16.msra.mxu0 0
  %277 = vmatprep.subr.bf16.mxu0 0
  %278 = vmatpush1.bf16.msra.mxu0 0
  %279 = vmatprep.subr.bf16.mxu0 0
  %280 = vmatpush1.bf16.msra.mxu0 0
  %281 = vmatprep.subr.bf16.mxu0 0
  %282 = vmatpush1.bf16.msra.mxu0 0
  %283 = vmatprep.subr.bf16.mxu0 0
  %284 = vmatpush1.bf16.msra.mxu0 0
  %285 = vmatprep.subr.bf16.mxu0 0
  %286 = vmatpush1.bf16.msra.mxu0 0
  %287 = vmatprep.subr.bf16.mxu0 0
  %288 = vmatpush1.bf16.msra.mxu0 0
  %289 = vmatprep.subr.bf16.mxu0 0
  %290 = vmatpush1.bf16.msra.mxu0 0
  %291 = vmatprep.mubr.bf16.mxu0 0
  %292 = vmatmul.mubr.bf16.gmra.mrb[0].mxu0 %v91
  %v293 = vpop.f32.mrb[0].mxu0
  %v294 = vadd.f32 %v34, %v293
  %v295 = vpop.f32.mrb[0].mxu0
  %v296 = vadd.f32 %v34, %v295
  %v297 = vpop.f32.mrb[0].mxu0
  %v298 = vpop.f32.mrb[0].mxu0
  %299 = vdwg.mxu0
  %300 = vmatprep.subr.bf16.mxu0 %v125
  %301 = vmatpush1.bf16.msra.mxu0 %v122
  %302 = vmatprep.subr.bf16.mxu0 0
  %303 = vmatpush1.bf16.msra.mxu0 0
  %304 = vmatprep.subr.bf16.mxu0 0
  %305 = vmatpush1.bf16.msra.mxu0 0
  %306 = vmatprep.subr.bf16.mxu0 0
  %307 = vmatpush1.bf16.msra.mxu0 0
  %308 = vmatprep.subr.bf16.mxu0 0
  %309 = vmatpush1.bf16.msra.mxu0 0
  %310 = vmatprep.subr.bf16.mxu0 0
  %311 = vmatpush1.bf16.msra.mxu0 0
  %312 = vmatprep.subr.bf16.mxu0 0
  %313 = vmatpush1.bf16.msra.mxu0 0
  %314 = vmatprep.subr.bf16.mxu0 0
  %315 = vmatpush1.bf16.msra.mxu0 0
  %316 = vmatprep.subr.bf16.mxu0 0
  %317 = vmatpush1.bf16.msra.mxu0 0
  %318 = vmatprep.subr.bf16.mxu0 0
  %319 = vmatpush1.bf16.msra.mxu0 0
  %320 = vmatprep.subr.bf16.mxu0 0
  %321 = vmatpush1.bf16.msra.mxu0 0
  %322 = vmatprep.subr.bf16.mxu0 0
  %323 = vmatpush1.bf16.msra.mxu0 0
  %324 = vmatprep.subr.bf16.mxu0 0
  %325 = vmatpush1.bf16.msra.mxu0 0
  %326 = vmatprep.subr.bf16.mxu0 0
  %327 = vmatpush1.bf16.msra.mxu0 0
  %328 = vmatprep.subr.bf16.mxu0 0
  %329 = vmatpush1.bf16.msra.mxu0 0
  %330 = vmatprep.subr.bf16.mxu0 0
  %331 = vmatpush1.bf16.msra.mxu0 0
  %332 = vmatprep.mubr.bf16.mxu0 0
  %333 = vmatmul.mubr.bf16.gmra.mrb[0].mxu0 %v91
  %v334 = vpop.f32.mrb[0].mxu0
  %v335 = vadd.f32 %v34, %v334
  %v336 = vpop.f32.mrb[0].mxu0
  %v337 = vadd.f32 %v34, %v336
  %v338 = vpop.f32.mrb[0].mxu0
  %v339 = vpop.f32.mrb[0].mxu0
  %340 = vdwg.mxu0
  %341 = vmatprep.subr.bf16.mxu0 %v131
  %342 = vmatpush1.bf16.msra.mxu0 %v128
  %343 = vmatprep.subr.bf16.mxu0 0
  %344 = vmatpush1.bf16.msra.mxu0 0
  %345 = vmatprep.subr.bf16.mxu0 0
  %346 = vmatpush1.bf16.msra.mxu0 0
  %347 = vmatprep.subr.bf16.mxu0 0
  %348 = vmatpush1.bf16.msra.mxu0 0
  %349 = vmatprep.subr.bf16.mxu0 0
  %350 = vmatpush1.bf16.msra.mxu0 0
  %351 = vmatprep.subr.bf16.mxu0 0
  %352 = vmatpush1.bf16.msra.mxu0 0
  %353 = vmatprep.subr.bf16.mxu0 0
  %354 = vmatpush1.bf16.msra.mxu0 0
  %355 = vmatprep.subr.bf16.mxu0 0
  %356 = vmatpush1.bf16.msra.mxu0 0
  %357 = vmatprep.subr.bf16.mxu0 0
  %358 = vmatpush1.bf16.msra.mxu0 0
  %359 = vmatprep.subr.bf16.mxu0 0
  %360 = vmatpush1.bf16.msra.mxu0 0
  %361 = vmatprep.subr.bf16.mxu0 0
  %362 = vmatpush1.bf16.msra.mxu0 0
  %363 = vmatprep.subr.bf16.mxu0 0
  %364 = vmatpush1.bf16.msra.mxu0 0
  %365 = vmatprep.subr.bf16.mxu0 0
  %366 = vmatpush1.bf16.msra.mxu0 0
  %367 = vmatprep.subr.bf16.mxu0 0
  %368 = vmatpush1.bf16.msra.mxu0 0
  %369 = vmatprep.subr.bf16.mxu0 0
  %370 = vmatpush1.bf16.msra.mxu0 0
  %371 = vmatprep.subr.bf16.mxu0 0
  %372 = vmatpush1.bf16.msra.mxu0 0
  %373 = vmatprep.mubr.bf16.mxu0 0
  %374 = vmatmul.mubr.bf16.gmra.mrb[0].mxu0 %v91
  %v375 = vpop.f32.mrb[0].mxu0
  %v376 = vadd.f32 %v34, %v375
  %v377 = vpop.f32.mrb[0].mxu0
  %v378 = vadd.f32 %v34, %v377
  %v379 = vpop.f32.mrb[0].mxu0
  %v380 = vpop.f32.mrb[0].mxu0
  %381 = vdwg.mxu0
  %382 = vmatprep.subr.bf16.mxu0 0
  %383 = vmatpush1.bf16.msra.mxu0 %v134
  %384 = vmatprep.subr.bf16.mxu0 0
  %385 = vmatpush1.bf16.msra.mxu0 0
  %386 = vmatprep.subr.bf16.mxu0 0
  %387 = vmatpush1.bf16.msra.mxu0 0
  %388 = vmatprep.subr.bf16.mxu0 0
  %389 = vmatpush1.bf16.msra.mxu0 0
  %390 = vmatprep.subr.bf16.mxu0 0
  %391 = vmatpush1.bf16.msra.mxu0 0
  %392 = vmatprep.subr.bf16.mxu0 0
  %393 = vmatpush1.bf16.msra.mxu0 0
  %394 = vmatprep.subr.bf16.mxu0 0
  %395 = vmatpush1.bf16.msra.mxu0 0
  %396 = vmatprep.subr.bf16.mxu0 0
  %397 = vmatpush1.bf16.msra.mxu0 0
  %398 = vmatprep.subr.bf16.mxu0 0
  %399 = vmatpush1.bf16.msra.mxu0 0
  %400 = vmatprep.subr.bf16.mxu0 0
  %401 = vmatpush1.bf16.msra.mxu0 0
  %402 = vmatprep.subr.bf16.mxu0 0
  %403 = vmatpush1.bf16.msra.mxu0 0
  %404 = vmatprep.subr.bf16.mxu0 0
  %405 = vmatpush1.bf16.msra.mxu0 0
  %406 = vmatprep.subr.bf16.mxu0 0
  %407 = vmatpush1.bf16.msra.mxu0 0
  %408 = vmatprep.subr.bf16.mxu0 0
  %409 = vmatpush1.bf16.msra.mxu0 0
  %410 = vmatprep.subr.bf16.mxu0 0
  %411 = vmatpush1.bf16.msra.mxu0 0
  %412 = vmatprep.subr.bf16.mxu0 0
  %413 = vmatpush1.bf16.msra.mxu0 0
  %414 = vmatprep.mubr.bf16.mxu0 0
  %415 = vmatmul.mubr.bf16.gmra.mrb[0].mxu0 %v91
  %v416 = vpop.f32.mrb[0].mxu0
  %v417 = vadd.f32 %v34, %v416
  %v418 = vpop.f32.mrb[0].mxu0
  %v419 = vpop.f32.mrb[0].mxu0
  %v420 = vpop.f32.mrb[0].mxu0
  %421 = vdwg.mxu0
  %v422 = vmax.f32 %v171, 0.0
  %v423 = vmax.f32 %v173, 0.0
  %v424 = vmax.f32 %v212, 0.0
  %v425 = vmax.f32 %v214, 0.0
  %v426 = vmax.f32 %v253, 0.0
  %v427 = vmax.f32 %v255, 0.0
  %v428 = vmax.f32 %v294, 0.0
  %v429 = vmax.f32 %v296, 0.0
  %v430 = vmax.f32 %v335, 0.0
  %v431 = vmax.f32 %v337, 0.0
  %v432 = vmax.f32 %v376, 0.0
  %v433 = vmax.f32 %v378, 0.0
  %v434 = vmax.f32 %v417, 0.0
  %v435 = vpack.c.bf16 %v422, %v422
  %v436 = vpack.c.bf16 %v423, %v423
  %v437 = vpack.c.bf16 %v424, %v424
  %v438 = vpack.c.bf16 %v425, %v425
  %v439 = vpack.c.bf16 %v426, %v426
  %v440 = vpack.c.bf16 %v427, %v427
  %v441 = vpack.c.bf16 %v428, %v428
  %v442 = vpack.c.bf16 %v429, %v429
  %v443 = vpack.c.bf16 %v430, %v430
  %v444 = vpack.c.bf16 %v431, %v431
  %v445 = vpack.c.bf16 %v432, %v432
  %v446 = vpack.c.bf16 %v433, %v433
  %v447 = vpack.c.bf16 %v434, %v434
  %v461 = vunpack.c.l.b16 %v435
  %v462 = vunpack.c.l.b16 %v436
  %v463 = vunpack.c.l.b16 %v437
  %v464 = vunpack.c.l.b16 %v438
  %v465 = vunpack.c.l.b16 %v439
  %v466 = vunpack.c.l.b16 %v440
  %v467 = vunpack.c.l.b16 %v441
  %v468 = vunpack.c.l.b16 %v442
  %v469 = vunpack.c.l.b16 %v443
  %v470 = vunpack.c.l.b16 %v444
  %v471 = vunpack.c.l.b16 %v445
  %v472 = vunpack.c.l.b16 %v446
  %v473 = vunpack.c.l.b16 %v447
  %v474 = vpack.c.b16 %v462, %v461
  %v475 = vpack.c.b16 %v464, %v463
  %v476 = vpack.c.b16 %v466, %v465
  %v477 = vpack.c.b16 %v468, %v467
  %v478 = vpack.c.b16 %v470, %v469
  %v479 = vpack.c.b16 %v472, %v471
  %v480 = vpack.c.b16 %v473, %v473
  %488 = vst [vmem:[%s3] sm:$0xff] %v474
  %489 = vst [vmem:[%s3 + $0x8] sm:$0xff] %v475
  %490 = vst [vmem:[%s3 + $0x10] sm:$0xff] %v476
  %491 = vst [vmem:[%s3 + $0x18] sm:$0xff] %v477
  %492 = vst [vmem:[%s3 + $0x20] sm:$0xff] %v478
  %493 = vst [vmem:[%s3 + $0x28] sm:$0xff] %v479
  %vm494 = vcmask 257024
  %495 = vst.msk [vmem:[%s3 + $0x30] sm:$0xf] %vm494, %v480
  // Predicated region
  $region14: #{vae_forward.3} parent=0 // pred_check
    _
  $region15: #{vae_forward.3} parent=0 // pred_check_branch
    %497 = sbr.rel (0) target = $region17
  $region16: #{vae_forward.3} parent=0 // pred_region
    _
  $region17: #{vae_forward.3} parent=0 // pred_fallthru
    _
  // Predicated region
  $region18: #{vae_forward.3} parent=0 // pred_check
    _
  $region19: #{vae_forward.3} parent=0 // pred_check_branch
    %499 = sbr.rel (0) target = $region21
  $region20: #{vae_forward.3} parent=0 // pred_region
    _
  $region21: #{vae_forward.3} parent=0 // pred_fallthru
    _

// kernel: vae_forward.4
$region0: #{vae_forward.4}
  #allocation0 [shape = 'u32[]', space=smem, size = 0x4, offset = 0x4, fixed_abs, tag = 'smem constant byte address 0x4 - core index']
  #allocation1 [shape = 'u32[144,128]{1,0:T(1,128)}', space=vmem, size = 0x12000, scoped, tag = 'internal scratch']
  %s0 = inlined_call_operand.vmem [shape: bf16[16,72], index: 0, kind: input, shape index: {}]
  %s1 = inlined_call_operand.vmem [shape: bf16[72,392], index: 1, kind: input, shape index: {}]
  %s2 = inlined_call_operand.vmem [shape: f32[16,1], index: 2, kind: input, shape index: {}]
  %s3 = inlined_call_operand.vmem [shape: bf16[16,392], index: 3, kind: output, shape index: {}]
  %s4 = sld [smem:[#allocation0]]
  $region22: #{vae_forward.4} parent=0
    _
  %s6 = ssub.s32 1, %s4
  %s7 = scalar_select 0, %s6, %s4
  // Predicated region
  $region2: #{vae_forward.4} parent=0 // pred_check
    _
  $region3: #{vae_forward.4} parent=0 // pred_check_branch
    %9 = sbr.rel (0) target = $region5
  $region4: #{vae_forward.4} parent=0 // pred_region
    _
  $region5: #{vae_forward.4} parent=0 // pred_fallthru
    _
  // Predicated region
  $region6: #{vae_forward.4} parent=0 // pred_check
    _
  $region7: #{vae_forward.4} parent=0 // pred_check_branch
    %11 = sbr.rel (0) target = $region9
  $region8: #{vae_forward.4} parent=0 // pred_region
    _
  $region9: #{vae_forward.4} parent=0 // pred_fallthru
    _
  // Predicated region
  $region10: #{vae_forward.4} parent=0 // pred_check
    _
  $region11: #{vae_forward.4} parent=0 // pred_check_branch
    %13 = sbr.rel (0) target = $region13
  $region12: #{vae_forward.4} parent=0 // pred_region
    _
  $region13: #{vae_forward.4} parent=0 // pred_fallthru
    _
  %v15 = vld [vmem:[%s0] sm:$0xf]
  %v16 = vld [vmem:[%s0 + $0x4] sm:$0xf]
  %v17 = vld [vmem:[%s1] sm:$0xff]
  %v18 = vld [vmem:[%s1 + $0x8] sm:$0xff]
  %v19 = vld [vmem:[%s1 + $0x10] sm:$0xff]
  %v20 = vld [vmem:[%s1 + $0x18] sm:$0xff]
  %v21 = vld [vmem:[%s1 + $0x20] sm:$0xff]
  %v22 = vld [vmem:[%s1 + $0x28] sm:$0xff]
  %v23 = vld [vmem:[%s1 + $0x30] sm:$0xff]
  %v24 = vld [vmem:[%s1 + $0x38] sm:$0xff]
  %v25 = vld [vmem:[%s1 + $0x40] sm:$0xff]
  %v26 = vld [vmem:[%s1 + $0x48] sm:$0xff]
  %v27 = vld [vmem:[%s1 + $0x50] sm:$0xff]
  %v28 = vld [vmem:[%s1 + $0x58] sm:$0xff]
  %v29 = vld [vmem:[%s1 + $0x60] sm:$0xff]
  %v30 = vld [vmem:[%s1 + $0x68] sm:$0xff]
  %v31 = vld [vmem:[%s1 + $0x70] sm:$0xff]
  %v32 = vld [vmem:[%s1 + $0x78] sm:$0xff]
  %v33 = vld [vmem:[%s1 + $0x80] sm:$0xff]
  %v34 = vld [vmem:[%s1 + $0x88] sm:$0xff]
  %v35 = vld [vmem:[%s2] sm:$0xff]
  %v36 = vld [vmem:[%s2 + $0x8] sm:$0xff]
  %38 = vset.pattern.permute.xlu0 0
  %39 = vperm.xlu0 %38, %v35
  %v40 = vpop.permute.xlu0 %39
  %43 = vset.pattern.permute.xlu0 0
  %44 = vperm.xlu0 %43, %v36
  %v45 = vpop.permute.xlu0 %44
  %v49 = vunpack.c.l.b16 %v15
  %v50 = vunpack.c.l.b16 %v16
  %v51 = vpack.c.b16 %v50, %v49
  %v70 = vunpack.c.l.b16 %v17
  %v71 = vunpack.c.h.b16 %v17
  %v72 = vunpack.c.l.b16 %v18
  %v73 = vunpack.c.h.b16 %v18
  %v74 = vunpack.c.l.b16 %v19
  %v75 = vunpack.c.h.b16 %v19
  %v76 = vunpack.c.l.b16 %v20
  %v77 = vunpack.c.h.b16 %v20
  %v78 = vunpack.c.l.b16 %v21
  %v79 = vunpack.c.h.b16 %v21
  %v80 = vunpack.c.l.b16 %v22
  %v81 = vunpack.c.h.b16 %v22
  %v82 = vunpack.c.l.b16 %v23
  %v83 = vunpack.c.h.b16 %v23
  %v84 = vunpack.c.l.b16 %v24
  %v85 = vunpack.c.h.b16 %v24
  %v86 = vunpack.c.l.b16 %v25
  %v87 = vunpack.c.h.b16 %v25
  %v88 = vunpack.c.l.b16 %v26
  %v89 = vunpack.c.h.b16 %v26
  %v90 = vunpack.c.l.b16 %v27
  %v91 = vunpack.c.h.b16 %v27
  %v92 = vunpack.c.l.b16 %v28
  %v93 = vunpack.c.h.b16 %v28
  %v94 = vunpack.c.l.b16 %v29
  %v95 = vunpack.c.h.b16 %v29
  %v96 = vunpack.c.l.b16 %v30
  %v97 = vunpack.c.h.b16 %v30
  %v98 = vunpack.c.l.b16 %v31
  %v99 = vunpack.c.h.b16 %v31
  %v100 = vunpack.c.l.b16 %v32
  %v101 = vunpack.c.h.b16 %v32
  %v102 = vunpack.c.l.b16 %v33
  %v103 = vunpack.c.h.b16 %v33
  %v104 = vunpack.c.l.b16 %v34
  %v105 = vunpack.c.h.b16 %v34
  %v106 = vpack.c.b16 %v74, %v70
  %v107 = vpack.c.b16 %v75, %v71
  %v108 = vpack.c.b16 %v76, %v72
  %v109 = vpack.c.b16 %v77, %v73
  %v110 = vpack.c.b16 %v82, %v78
  %v111 = vpack.c.b16 %v83, %v79
  %v112 = vpack.c.b16 %v84, %v80
  %v113 = vpack.c.b16 %v85, %v81
  %v114 = vpack.c.b16 %v90, %v86
  %v115 = vpack.c.b16 %v91, %v87
  %v116 = vpack.c.b16 %v92, %v88
  %v117 = vpack.c.b16 %v93, %v89
  %v118 = vpack.c.b16 %v98, %v94
  %v119 = vpack.c.b16 %v99, %v95
  %v120 = vpack.c.b16 %v100, %v96
  %v121 = vpack.c.b16 %v101, %v97
  %v122 = vpack.c.b16 %v102, %v102
  %v123 = vpack.c.b16 %v103, %v103
  %v124 = vpack.c.b16 %v104, %v104
  %v125 = vpack.c.b16 %v105, %v105
  %vm142 = vcmask 588800
  %v144 = vsel %vm142, %v51, 0
  %vm146 = vcmask 1043456
  %v148 = vsel %vm146, %v122, 0
  %v151 = vsel %vm146, %v123, 0
  %v154 = vsel %vm146, %v124, 0
  %v157 = vsel %vm146, %v125, 0
  %159 = vmatprep.subr.bf16.mxu0 %v107
  %160 = vmatpush1.bf16.msra.mxu0 %v106
  %161 = vmatprep.subr.bf16.mxu0 %v111
  %162 = vmatpush1.bf16.msra.mxu0 %v110
  %163 = vmatprep.subr.bf16.mxu0 %v115
  %164 = vmatpush1.bf16.msra.mxu0 %v114
  %165 = vmatprep.subr.bf16.mxu0 %v119
  %166 = vmatpush1.bf16.msra.mxu0 %v118
  %167 = vmatprep.subr.bf16.mxu0 %v151
  %168 = vmatpush1.bf16.msra.mxu0 %v148
  %169 = vmatprep.subr.bf16.mxu0 0
  %170 = vmatpush1.bf16.msra.mxu0 0
  %171 = vmatprep.subr.bf16.mxu0 0
  %172 = vmatpush1.bf16.msra.mxu0 0
  %173 = vmatprep.subr.bf16.mxu0 0
  %174 = vmatpush1.bf16.msra.mxu0 0
  %175 = vmatprep.subr.bf16.mxu0 0
  %176 = vmatpush1.bf16.msra.mxu0 0
  %177 = vmatprep.subr.bf16.mxu0 0
  %178 = vmatpush1.bf16.msra.mxu0 0
  %179 = vmatprep.subr.bf16.mxu0 0
  %180 = vmatpush1.bf16.msra.mxu0 0
  %181 = vmatprep.subr.bf16.mxu0 0
  %182 = vmatpush1.bf16.msra.mxu0 0
  %183 = vmatprep.subr.bf16.mxu0 0
  %184 = vmatpush1.bf16.msra.mxu0 0
  %185 = vmatprep.subr.bf16.mxu0 0
  %186 = vmatpush1.bf16.msra.mxu0 0
  %187 = vmatprep.subr.bf16.mxu0 0
  %188 = vmatpush1.bf16.msra.mxu0 0
  %189 = vmatprep.subr.bf16.mxu0 0
  %190 = vmatpush1.bf16.msra.mxu0 0
  %191 = vmatprep.mubr.bf16.mxu0 0
  %192 = vmatmul.mubr.bf16.gmra.mrb[0].mxu0 %v144
  %v193 = vpop.f32.mrb[0].mxu0
  %v194 = vadd.f32 %v40, %v193
  %v195 = vpop.f32.mrb[0].mxu0
  %v196 = vadd.f32 %v40, %v195
  %v197 = vpop.f32.mrb[0].mxu0
  %v198 = vadd.f32 %v45, %v197
  %v199 = vpop.f32.mrb[0].mxu0
  %v200 = vadd.f32 %v45, %v199
  %201 = vdwg.mxu0
  %202 = vmatprep.subr.bf16.mxu0 %v109
  %203 = vmatpush1.bf16.msra.mxu0 %v108
  %204 = vmatprep.subr.bf16.mxu0 %v113
  %205 = vmatpush1.bf16.msra.mxu0 %v112
  %206 = vmatprep.subr.bf16.mxu0 %v117
  %207 = vmatpush1.bf16.msra.mxu0 %v116
  %208 = vmatprep.subr.bf16.mxu0 %v121
  %209 = vmatpush1.bf16.msra.mxu0 %v120
  %210 = vmatprep.subr.bf16.mxu0 %v157
  %211 = vmatpush1.bf16.msra.mxu0 %v154
  %212 = vmatprep.subr.bf16.mxu0 0
  %213 = vmatpush1.bf16.msra.mxu0 0
  %214 = vmatprep.subr.bf16.mxu0 0
  %215 = vmatpush1.bf16.msra.mxu0 0
  %216 = vmatprep.subr.bf16.mxu0 0
  %217 = vmatpush1.bf16.msra.mxu0 0
  %218 = vmatprep.subr.bf16.mxu0 0
  %219 = vmatpush1.bf16.msra.mxu0 0
  %220 = vmatprep.subr.bf16.mxu0 0
  %221 = vmatpush1.bf16.msra.mxu0 0
  %222 = vmatprep.subr.bf16.mxu0 0
  %223 = vmatpush1.bf16.msra.mxu0 0
  %224 = vmatprep.subr.bf16.mxu0 0
  %225 = vmatpush1.bf16.msra.mxu0 0
  %226 = vmatprep.subr.bf16.mxu0 0
  %227 = vmatpush1.bf16.msra.mxu0 0
  %228 = vmatprep.subr.bf16.mxu0 0
  %229 = vmatpush1.bf16.msra.mxu0 0
  %230 = vmatprep.subr.bf16.mxu0 0
  %231 = vmatpush1.bf16.msra.mxu0 0
  %232 = vmatprep.subr.bf16.mxu0 0
  %233 = vmatpush1.bf16.msra.mxu0 0
  %234 = vmatprep.mubr.bf16.mxu0 0
  %235 = vmatmul.mubr.bf16.gmra.mrb[0].mxu0 %v144
  %v236 = vpop.f32.mrb[0].mxu0
  %v237 = vadd.f32 %v40, %v236
  %v238 = vpop.f32.mrb[0].mxu0
  %v239 = vadd.f32 %v40, %v238
  %v240 = vpop.f32.mrb[0].mxu0
  %v241 = vadd.f32 %v45, %v240
  %v242 = vpop.f32.mrb[0].mxu0
  %v243 = vadd.f32 %v45, %v242
  %244 = vdwg.mxu0
  %v245 = vmax.f32 %v194, 0.0
  %v246 = vmax.f32 %v196, 0.0
  %v247 = vmax.f32 %v237, 0.0
  %v248 = vmax.f32 %v239, 0.0
  %v249 = vmax.f32 %v198, 0.0
  %v250 = vmax.f32 %v200, 0.0
  %v251 = vmax.f32 %v241, 0.0
  %v252 = vmax.f32 %v243, 0.0
  %v253 = vpack.c.bf16 %v249, %v245
  %v254 = vpack.c.bf16 %v250, %v246
  %v255 = vpack.c.bf16 %v251, %v247
  %v256 = vpack.c.bf16 %v252, %v248
  %v261 = vunpack.c.l.b16 %v253
  %v262 = vunpack.c.l.b16 %v254
  %v263 = vunpack.c.l.b16 %v255
  %v264 = vunpack.c.l.b16 %v256
  %v265 = vunpack.c.h.b16 %v253
  %v266 = vunpack.c.h.b16 %v254
  %v267 = vunpack.c.h.b16 %v255
  %v268 = vunpack.c.h.b16 %v256
  %v269 = vpack.c.b16 %v262, %v261
  %v270 = vpack.c.b16 %v264, %v263
  %v271 = vpack.c.b16 %v266, %v265
  %v272 = vpack.c.b16 %v268, %v267
  %277 = vst [vmem:[%s3] sm:$0xff] %v269
  %vm278 = vcmask 64516
  %vm279 = vmor %vm278, %vm146
  %280 = vst.msk [vmem:[%s3 + $0x8] sm:$0xff] %vm279, %v270
  %281 = vst [vmem:[%s3 + $0x10] sm:$0xff] %v271
  %282 = vst.msk [vmem:[%s3 + $0x18] sm:$0xff] %vm279, %v272
  // Predicated region
  $region14: #{vae_forward.4} parent=0 // pred_check
    _
  $region15: #{vae_forward.4} parent=0 // pred_check_branch
    %284 = sbr.rel (0) target = $region17
  $region16: #{vae_forward.4} parent=0 // pred_region
    _
  $region17: #{vae_forward.4} parent=0 // pred_fallthru
    _
  // Predicated region
  $region18: #{vae_forward.4} parent=0 // pred_check
    _
  $region19: #{vae_forward.4} parent=0 // pred_check_branch
    %286 = sbr.rel (0) target = $region21
  $region20: #{vae_forward.4} parent=0 // pred_region
    _
  $region21: #{vae_forward.4} parent=0 // pred_fallthru
    _

// kernel: vae_forward.5
$region0: #{vae_forward.5}
  #allocation0 [shape = 'u32[]', space=smem, size = 0x4, offset = 0x4, fixed_abs, tag = 'smem constant byte address 0x4 - core index']
  #allocation1 [shape = 'u32[144,128]{1,0:T(1,128)}', space=vmem, size = 0x12000, scoped, tag = 'internal scratch']
  #allocation2 [shape = 'f32[16,128]{1,0:T(8,128)}', space=vmem, size = 0x2000, scoped, tag = 'scratch operand']
  %s0 = inlined_call_operand.vmem [shape: bf16[2,784], index: 0, kind: input, shape index: {}]
  %s1 = inlined_call_operand.vmem [shape: f32[2,256], index: 1, kind: input, shape index: {}]
  %s2 = inlined_call_operand.vmem [shape: bf16[784,512], index: 2, kind: input, shape index: {}]
  %s3 = inlined_call_operand.vmem [shape: f32[1,512], index: 3, kind: input, shape index: {}]
  %s4 = inlined_call_operand.vmem [shape: bf16[256,1024], index: 4, kind: input, shape index: {}]
  %s5 = inlined_call_operand.vmem [shape: f32[1,1024], index: 5, kind: input, shape index: {}]
  %s6 = inlined_call_operand.vmem [shape: bf16[32,16], index: 6, kind: input, shape index: {}]
  %s7 = inlined_call_operand.vmem [shape: f32[32,1], index: 7, kind: input, shape index: {}]
  %s8 = inlined_call_operand.vmem [shape: bf16[16,32], index: 8, kind: input, shape index: {}]
  %s9 = inlined_call_operand.vmem [shape: f32[16,1], index: 9, kind: input, shape index: {}]
  %s10 = inlined_call_operand.hbm [shape: f32[2,256], index: 10, kind: output, shape index: {0}]
  %s11 = inlined_call_operand.hbm [shape: f32[2,256], index: 11, kind: output, shape index: {1}]
  %s12 = inlined_call_operand.vmem [shape: f32[16,128], index: 12, kind: output, shape index: {2}]
  %13 = xla_tuple %s10, %s11, %s12
  %s14 = sld [smem:[#allocation0]]
  $region66: #{vae_forward.5} parent=0
    _
  %s16 = ssub.s32 1, %s14
  %s17 = scalar_select 0, %s16, %s14
  $region1: #{vae_forward.5} parent=0
    #allocation3 [shape = 'u8[2048]{0}', space=vmem, size = 0x800, scoped, tag = 'output window, operand 0, single buffered']
    #allocation4 [shape = 's32[1]{0}', space=sflag, size = 0x4, scoped, tag = 'scoped memory for vae_forward.5']
    #allocation5 [shape = 'u8[2048]{0}', space=vmem, size = 0x800, scoped, tag = 'output window, operand 1, single buffered']
    #allocation6 [shape = 's32[1]{0}', space=sflag, size = 0x4, scoped, tag = 'scoped memory for vae_forward.5']
    %18 = vsyncpa [#allocation4], 0
    %19 = vsyncpa [#allocation6], 0
    // Predicated region
    $region2: #{vae_forward.5} parent=1 // pred_check
      _
    $region3: #{vae_forward.5} parent=1 // pred_check_branch
      %21 = sbr.rel (0) target = $region5
    $region4: #{vae_forward.5} parent=1 // pred_region
      _
    $region5: #{vae_forward.5} parent=1 // pred_fallthru
      _
    // Predicated region
    $region6: #{vae_forward.5} parent=1 // pred_check
      _
    $region7: #{vae_forward.5} parent=1 // pred_check_branch
      %23 = sbr.rel (0) target = $region9
    $region8: #{vae_forward.5} parent=1 // pred_region
      _
    $region9: #{vae_forward.5} parent=1 // pred_fallthru
      _
    // Predicated region
    $region10: #{vae_forward.5} parent=1 // pred_check
      _
    $region11: #{vae_forward.5} parent=1 // pred_check_branch
      %25 = sbr.rel (0) target = $region13
    $region12: #{vae_forward.5} parent=1 // pred_region
      _
    $region13: #{vae_forward.5} parent=1 // pred_fallthru
      _
    // Predicated region
    $region14: #{vae_forward.5} parent=1 // pred_check
      _
    $region15: #{vae_forward.5} parent=1 // pred_check_branch
      %27 = sbr.rel (0) target = $region17
    $region16: #{vae_forward.5} parent=1 // pred_region
      _
    $region17: #{vae_forward.5} parent=1 // pred_fallthru
      _
    // Predicated region
    $region18: #{vae_forward.5} parent=1 // pred_check
      _
    $region19: #{vae_forward.5} parent=1 // pred_check_branch
      %29 = sbr.rel (0) target = $region21
    $region20: #{vae_forward.5} parent=1 // pred_region
      _
    $region21: #{vae_forward.5} parent=1 // pred_fallthru
      _
    // Predicated region
    $region22: #{vae_forward.5} parent=1 // pred_check
      _
    $region23: #{vae_forward.5} parent=1 // pred_check_branch
      %31 = sbr.rel (0) target = $region25
    $region24: #{vae_forward.5} parent=1 // pred_region
      _
    $region25: #{vae_forward.5} parent=1 // pred_fallthru
      _
    // Predicated region
    $region26: #{vae_forward.5} parent=1 // pred_check
      _
    $region27: #{vae_forward.5} parent=1 // pred_check_branch
      %33 = sbr.rel (0) target = $region29
    $region28: #{vae_forward.5} parent=1 // pred_region
      _
    $region29: #{vae_forward.5} parent=1 // pred_fallthru
      _
    // Predicated region
    $region30: #{vae_forward.5} parent=1 // pred_check
      _
    $region31: #{vae_forward.5} parent=1 // pred_check_branch
      %35 = sbr.rel (0) target = $region33
    $region32: #{vae_forward.5} parent=1 // pred_region
      _
    $region33: #{vae_forward.5} parent=1 // pred_fallthru
      _
    // Predicated region
    $region34: #{vae_forward.5} parent=1 // pred_check
      _
    $region35: #{vae_forward.5} parent=1 // pred_check_branch
      %37 = sbr.rel (0) target = $region37
    $region36: #{vae_forward.5} parent=1 // pred_region
      _
    $region37: #{vae_forward.5} parent=1 // pred_fallthru
      _
    // Predicated region
    $region38: #{vae_forward.5} parent=1 // pred_check
      _
    $region39: #{vae_forward.5} parent=1 // pred_check_branch
      %39 = sbr.rel (0) target = $region41
    $region40: #{vae_forward.5} parent=1 // pred_region
      _
    $region41: #{vae_forward.5} parent=1 // pred_fallthru
      _
    %v41 = vld [vmem:[%s0] sm:$0x7f]
    %v42 = vld [vmem:[%s2] sm:$0xff]
    %v43 = vld [vmem:[%s2 + $0x8] sm:$0xff]
    %v44 = vld [vmem:[%s2 + $0x10] sm:$0xff]
    %v45 = vld [vmem:[%s2 + $0x18] sm:$0xff]
    %v46 = vld [vmem:[%s2 + $0x20] sm:$0xff]
    %v47 = vld [vmem:[%s2 + $0x28] sm:$0xff]
    %v48 = vld [vmem:[%s2 + $0x30] sm:$0xff]
    %v49 = vld [vmem:[%s2 + $0x38] sm:$0xff]
    %v50 = vld [vmem:[%s2 + $0x40] sm:$0xff]
    %v51 = vld [vmem:[%s2 + $0x48] sm:$0xff]
    %v52 = vld [vmem:[%s2 + $0x50] sm:$0xff]
    %v53 = vld [vmem:[%s2 + $0x58] sm:$0xff]
    %v54 = vld [vmem:[%s2 + $0x60] sm:$0xff]
    %v55 = vld [vmem:[%s2 + $0x68] sm:$0xff]
    %v56 = vld [vmem:[%s2 + $0x70] sm:$0xff]
    %v57 = vld [vmem:[%s2 + $0x78] sm:$0xff]
    %v58 = vld [vmem:[%s2 + $0x80] sm:$0xff]
    %v59 = vld [vmem:[%s2 + $0x88] sm:$0xff]
    %v60 = vld [vmem:[%s2 + $0x90] sm:$0xff]
    %v61 = vld [vmem:[%s2 + $0x98] sm:$0xff]
    %v62 = vld [vmem:[%s2 + $0xa0] sm:$0xff]
    %v63 = vld [vmem:[%s2 + $0xa8] sm:$0xff]
    %v64 = vld [vmem:[%s2 + $0xb0] sm:$0xff]
    %v65 = vld [vmem:[%s2 + $0xb8] sm:$0xff]
    %v66 = vld [vmem:[%s2 + $0xc0] sm:$0xff]
    %v67 = vld [vmem:[%s2 + $0xc8] sm:$0xff]
    %v68 = vld [vmem:[%s2 + $0xd0] sm:$0xff]
    %v69 = vld [vmem:[%s2 + $0xd8] sm:$0xff]
    %v70 = vld [vmem:[%s2 + $0xe0] sm:$0xff]
    %v71 = vld [vmem:[%s2 + $0xe8] sm:$0xff]
    %v72 = vld [vmem:[%s2 + $0xf0] sm:$0xff]
    %v73 = vld [vmem:[%s2 + $0xf8] sm:$0xff]
    %v74 = vld [vmem:[%s2 + $0x100] sm:$0xff]
    %v75 = vld [vmem:[%s2 + $0x108] sm:$0xff]
    %v76 = vld [vmem:[%s2 + $0x110] sm:$0xff]
    %v77 = vld [vmem:[%s2 + $0x118] sm:$0xff]
    %v78 = vld [vmem:[%s2 + $0x120] sm:$0xff]
    %v79 = vld [vmem:[%s2 + $0x128] sm:$0xff]
    %v80 = vld [vmem:[%s2 + $0x130] sm:$0xff]
    %v81 = vld [vmem:[%s2 + $0x138] sm:$0xff]
    %v82 = vld [vmem:[%s2 + $0x140] sm:$0xff]
    %v83 = vld [vmem:[%s2 + $0x148] sm:$0xff]
    %v84 = vld [vmem:[%s2 + $0x150] sm:$0xff]
    %v85 = vld [vmem:[%s2 + $0x158] sm:$0xff]
    %v86 = vld [vmem:[%s2 + $0x160] sm:$0xff]
    %v87 = vld [vmem:[%s2 + $0x168] sm:$0xff]
    %v88 = vld [vmem:[%s2 + $0x170] sm:$0xff]
    %v89 = vld [vmem:[%s2 + $0x178] sm:$0xff]
    %v90 = vld [vmem:[%s2 + $0x180] sm:$0xff]
    %v91 = vld [vmem:[%s2 + $0x188] sm:$0xff]
    %v92 = vld [vmem:[%s2 + $0x190] sm:$0xff]
    %v93 = vld [vmem:[%s2 + $0x198] sm:$0xff]
    %v94 = vld [vmem:[%s2 + $0x1a0] sm:$0xff]
    %v95 = vld [vmem:[%s2 + $0x1a8] sm:$0xff]
    %v96 = vld [vmem:[%s2 + $0x1b0] sm:$0xff]
    %v97 = vld [vmem:[%s2 + $0x1b8] sm:$0xff]
    %v98 = vld [vmem:[%s2 + $0x1c0] sm:$0xff]
    %v99 = vld [vmem:[%s2 + $0x1c8] sm:$0xff]
    %v100 = vld [vmem:[%s2 + $0x1d0] sm:$0xff]
    %v101 = vld [vmem:[%s2 + $0x1d8] sm:$0xff]
    %v102 = vld [vmem:[%s2 + $0x1e0] sm:$0xff]
    %v103 = vld [vmem:[%s2 + $0x1e8] sm:$0xff]
    %v104 = vld [vmem:[%s2 + $0x1f0] sm:$0xff]
    %v105 = vld [vmem:[%s2 + $0x1f8] sm:$0xff]
    %v106 = vld [vmem:[%s2 + $0x200] sm:$0xff]
    %v107 = vld [vmem:[%s2 + $0x208] sm:$0xff]
    %v108 = vld [vmem:[%s2 + $0x210] sm:$0xff]
    %v109 = vld [vmem:[%s2 + $0x218] sm:$0xff]
    %v110 = vld [vmem:[%s2 + $0x220] sm:$0xff]
    %v111 = vld [vmem:[%s2 + $0x228] sm:$0xff]
    %v112 = vld [vmem:[%s2 + $0x230] sm:$0xff]
    %v113 = vld [vmem:[%s2 + $0x238] sm:$0xff]
    %v114 = vld [vmem:[%s2 + $0x240] sm:$0xff]
    %v115 = vld [vmem:[%s2 + $0x248] sm:$0xff]
    %v116 = vld [vmem:[%s2 + $0x250] sm:$0xff]
    %v117 = vld [vmem:[%s2 + $0x258] sm:$0xff]
    %v118 = vld [vmem:[%s2 + $0x260] sm:$0xff]
    %v119 = vld [vmem:[%s2 + $0x268] sm:$0xff]
    %v120 = vld [vmem:[%s2 + $0x270] sm:$0xff]
    %v121 = vld [vmem:[%s2 + $0x278] sm:$0xff]
    %v122 = vld [vmem:[%s2 + $0x280] sm:$0xff]
    %v123 = vld [vmem:[%s2 + $0x288] sm:$0xff]
    %v124 = vld [vmem:[%s2 + $0x290] sm:$0xff]
    %v125 = vld [vmem:[%s2 + $0x298] sm:$0xff]
    %v126 = vld [vmem:[%s2 + $0x2a0] sm:$0xff]
    %v127 = vld [vmem:[%s2 + $0x2a8] sm:$0xff]
    %v128 = vld [vmem:[%s2 + $0x2b0] sm:$0xff]
    %v129 = vld [vmem:[%s2 + $0x2b8] sm:$0xff]
    %v130 = vld [vmem:[%s2 + $0x2c0] sm:$0xff]
    %v131 = vld [vmem:[%s2 + $0x2c8] sm:$0xff]
    %v132 = vld [vmem:[%s2 + $0x2d0] sm:$0xff]
    %v133 = vld [vmem:[%s2 + $0x2d8] sm:$0xff]
    %v134 = vld [vmem:[%s2 + $0x2e0] sm:$0xff]
    %v135 = vld [vmem:[%s2 + $0x2e8] sm:$0xff]
    %v136 = vld [vmem:[%s2 + $0x2f0] sm:$0xff]
    %v137 = vld [vmem:[%s2 + $0x2f8] sm:$0xff]
    %v138 = vld [vmem:[%s2 + $0x300] sm:$0xff]
    %v139 = vld [vmem:[%s2 + $0x308] sm:$0xff]
    %v140 = vld [vmem:[%s2 + $0x310] sm:$0xff]
    %v141 = vld [vmem:[%s2 + $0x318] sm:$0xff]
    %v142 = vld [vmem:[%s2 + $0x320] sm:$0xff]
    %v143 = vld [vmem:[%s2 + $0x328] sm:$0xff]
    %v144 = vld [vmem:[%s2 + $0x330] sm:$0xff]
    %v145 = vld [vmem:[%s2 + $0x338] sm:$0xff]
    %v146 = vld [vmem:[%s2 + $0x340] sm:$0xff]
    %v147 = vld [vmem:[%s2 + $0x348] sm:$0xff]
    %v148 = vld [vmem:[%s2 + $0x350] sm:$0xff]
    %v149 = vld [vmem:[%s2 + $0x358] sm:$0xff]
    %v150 = vld [vmem:[%s2 + $0x360] sm:$0xff]
    %v151 = vld [vmem:[%s2 + $0x368] sm:$0xff]
    %v152 = vld [vmem:[%s2 + $0x370] sm:$0xff]
    %v153 = vld [vmem:[%s2 + $0x378] sm:$0xff]
    %v154 = vld [vmem:[%s2 + $0x380] sm:$0xff]
    %v155 = vld [vmem:[%s2 + $0x388] sm:$0xff]
    %v156 = vld [vmem:[%s2 + $0x390] sm:$0xff]
    %v157 = vld [vmem:[%s2 + $0x398] sm:$0xff]
    %v158 = vld [vmem:[%s2 + $0x3a0] sm:$0xff]
    %v159 = vld [vmem:[%s2 + $0x3a8] sm:$0xff]
    %v160 = vld [vmem:[%s2 + $0x3b0] sm:$0xff]
    %v161 = vld [vmem:[%s2 + $0x3b8] sm:$0xff]
    %v162 = vld [vmem:[%s2 + $0x3c0] sm:$0xff]
    %v163 = vld [vmem:[%s2 + $0x3c8] sm:$0xff]
    %v164 = vld [vmem:[%s2 + $0x3d0] sm:$0xff]
    %v165 = vld [vmem:[%s2 + $0x3d8] sm:$0xff]
    %v166 = vld [vmem:[%s2 + $0x3e0] sm:$0xff]
    %v167 = vld [vmem:[%s2 + $0x3e8] sm:$0xff]
    %v168 = vld [vmem:[%s2 + $0x3f0] sm:$0xff]
    %v169 = vld [vmem:[%s2 + $0x3f8] sm:$0xff]
    %v170 = vld [vmem:[%s2 + $0x400] sm:$0xff]
    %v171 = vld [vmem:[%s2 + $0x408] sm:$0xff]
    %v172 = vld [vmem:[%s2 + $0x410] sm:$0xff]
    %v173 = vld [vmem:[%s2 + $0x418] sm:$0xff]
    %v174 = vld [vmem:[%s2 + $0x420] sm:$0xff]
    %v175 = vld [vmem:[%s2 + $0x428] sm:$0xff]
    %v176 = vld [vmem:[%s2 + $0x430] sm:$0xff]
    %v177 = vld [vmem:[%s2 + $0x438] sm:$0xff]
    %v178 = vld [vmem:[%s2 + $0x440] sm:$0xff]
    %v179 = vld [vmem:[%s2 + $0x448] sm:$0xff]
    %v180 = vld [vmem:[%s2 + $0x450] sm:$0xff]
    %v181 = vld [vmem:[%s2 + $0x458] sm:$0xff]
    %v182 = vld [vmem:[%s2 + $0x460] sm:$0xff]
    %v183 = vld [vmem:[%s2 + $0x468] sm:$0xff]
    %v184 = vld [vmem:[%s2 + $0x470] sm:$0xff]
    %v185 = vld [vmem:[%s2 + $0x478] sm:$0xff]
    %v186 = vld [vmem:[%s2 + $0x480] sm:$0xff]
    %v187 = vld [vmem:[%s2 + $0x488] sm:$0xff]
    %v188 = vld [vmem:[%s2 + $0x490] sm:$0xff]
    %v189 = vld [vmem:[%s2 + $0x498] sm:$0xff]
    %v190 = vld [vmem:[%s2 + $0x4a0] sm:$0xff]
    %v191 = vld [vmem:[%s2 + $0x4a8] sm:$0xff]
    %v192 = vld [vmem:[%s2 + $0x4b0] sm:$0xff]
    %v193 = vld [vmem:[%s2 + $0x4b8] sm:$0xff]
    %v194 = vld [vmem:[%s2 + $0x4c0] sm:$0xff]
    %v195 = vld [vmem:[%s2 + $0x4c8] sm:$0xff]
    %v196 = vld [vmem:[%s2 + $0x4d0] sm:$0xff]
    %v197 = vld [vmem:[%s2 + $0x4d8] sm:$0xff]
    %v198 = vld [vmem:[%s2 + $0x4e0] sm:$0xff]
    %v199 = vld [vmem:[%s2 + $0x4e8] sm:$0xff]
    %v200 = vld [vmem:[%s2 + $0x4f0] sm:$0xff]
    %v201 = vld [vmem:[%s2 + $0x4f8] sm:$0xff]
    %v202 = vld [vmem:[%s2 + $0x500] sm:$0xff]
    %v203 = vld [vmem:[%s2 + $0x508] sm:$0xff]
    %v204 = vld [vmem:[%s2 + $0x510] sm:$0xff]
    %v205 = vld [vmem:[%s2 + $0x518] sm:$0xff]
    %v206 = vld [vmem:[%s2 + $0x520] sm:$0xff]
    %v207 = vld [vmem:[%s2 + $0x528] sm:$0xff]
    %v208 = vld [vmem:[%s2 + $0x530] sm:$0xff]
    %v209 = vld [vmem:[%s2 + $0x538] sm:$0xff]
    %v210 = vld [vmem:[%s2 + $0x540] sm:$0xff]
    %v211 = vld [vmem:[%s2 + $0x548] sm:$0xff]
    %v212 = vld [vmem:[%s2 + $0x550] sm:$0xff]
    %v213 = vld [vmem:[%s2 + $0x558] sm:$0xff]
    %v214 = vld [vmem:[%s2 + $0x560] sm:$0xff]
    %v215 = vld [vmem:[%s2 + $0x568] sm:$0xff]
    %v216 = vld [vmem:[%s2 + $0x570] sm:$0xff]
    %v217 = vld [vmem:[%s2 + $0x578] sm:$0xff]
    %v218 = vld [vmem:[%s2 + $0x580] sm:$0xff]
    %v219 = vld [vmem:[%s2 + $0x588] sm:$0xff]
    %v220 = vld [vmem:[%s2 + $0x590] sm:$0xff]
    %v221 = vld [vmem:[%s2 + $0x598] sm:$0xff]
    %v222 = vld [vmem:[%s2 + $0x5a0] sm:$0xff]
    %v223 = vld [vmem:[%s2 + $0x5a8] sm:$0xff]
    %v224 = vld [vmem:[%s2 + $0x5b0] sm:$0xff]
    %v225 = vld [vmem:[%s2 + $0x5b8] sm:$0xff]
    %v226 = vld [vmem:[%s2 + $0x5c0] sm:$0xff]
    %v227 = vld [vmem:[%s2 + $0x5c8] sm:$0xff]
    %v228 = vld [vmem:[%s2 + $0x5d0] sm:$0xff]
    %v229 = vld [vmem:[%s2 + $0x5d8] sm:$0xff]
    %v230 = vld [vmem:[%s2 + $0x5e0] sm:$0xff]
    %v231 = vld [vmem:[%s2 + $0x5e8] sm:$0xff]
    %v232 = vld [vmem:[%s2 + $0x5f0] sm:$0xff]
    %v233 = vld [vmem:[%s2 + $0x5f8] sm:$0xff]
    %v234 = vld [vmem:[%s2 + $0x600] sm:$0xff]
    %v235 = vld [vmem:[%s2 + $0x608] sm:$0xff]
    %v236 = vld [vmem:[%s2 + $0x610] sm:$0xff]
    %v237 = vld [vmem:[%s2 + $0x618] sm:$0xff]
    %v238 = vld [vmem:[%s3] sm:$0xf]
    %v240 = vlaneseq
    %v241 = vshrl.u32 %v240, 7
    %v242 = vsub.s32 0, %v241
    %v243 = vrot.slane %v238, %v242
    %v244 = vlaneseq
    %v245 = vshrl.u32 %v244, 7
    %v246 = vsub.s32 1, %v245
    %v247 = vrot.slane %v238, %v246
    %v248 = vlaneseq
    %v249 = vshrl.u32 %v248, 7
    %v250 = vsub.s32 2, %v249
    %v251 = vrot.slane %v238, %v250
    %v252 = vlaneseq
    %v253 = vshrl.u32 %v252, 7
    %v254 = vsub.s32 3, %v253
    %v255 = vrot.slane %v238, %v254
    %v261 = vcombine.high %v41, %v41
    %v263 = vunpack.c.l.s4 1966171168
    %v264 = vunpack.c.0.s8 %v263
    %v265 = vlaneseq
    %v266 = vshrl.u32 %v265, 7
    %v267 = vsub.s32 %v264, %v266
    %v268 = vrot.slane %v41, %v267
    %v270 = vunpack.c.l.s4 1966171168
    %v271 = vunpack.c.0.s8 %v270
    %v272 = vlaneseq
    %v273 = vshrl.u32 %v272, 7
    %v274 = vsub.s32 %v271, %v273
    %v275 = vrot.slane %v261, %v274
    %v276 = vcombine.high %v268, %v268
    %v277 = vcombine.high %v275, %v275
    %v279 = vunpack.c.l.s4 1966171168
    %v280 = vunpack.c.0.s8 %v279
    %v281 = vlaneseq
    %v282 = vshrl.u32 %v281, 7
    %v283 = vsub.s32 %v280, %v282
    %v284 = vrot.slane %v268, %v283
    %v286 = vunpack.c.l.s4 1966171168
    %v287 = vunpack.c.0.s8 %v286
    %v288 = vlaneseq
    %v289 = vshrl.u32 %v288, 7
    %v290 = vsub.s32 %v287, %v289
    %v291 = vrot.slane %v275, %v290
    %v293 = vunpack.c.l.s4 1966171168
    %v294 = vunpack.c.0.s8 %v293
    %v295 = vlaneseq
    %v296 = vshrl.u32 %v295, 7
    %v297 = vsub.s32 %v294, %v296
    %v298 = vrot.slane %v276, %v297
    %v300 = vunpack.c.l.s4 1966171168
    %v301 = vunpack.c.0.s8 %v300
    %v302 = vlaneseq
    %v303 = vshrl.u32 %v302, 7
    %v304 = vsub.s32 %v301, %v303
    %v305 = vrot.slane %v277, %v304
    %v306 = vcombine.high %v284, %v284
    %v307 = vcombine.high %v291, %v291
    %v308 = vcombine.high %v298, %v298
    %v511 = vunpack.c.l.b16 %v42
    %v512 = vunpack.c.h.b16 %v42
    %v513 = vunpack.c.l.b16 %v43
    %v514 = vunpack.c.h.b16 %v43
    %v515 = vunpack.c.l.b16 %v44
    %v516 = vunpack.c.h.b16 %v44
    %v517 = vunpack.c.l.b16 %v45
    %v518 = vunpack.c.h.b16 %v45
    %v519 = vunpack.c.l.b16 %v46
    %v520 = vunpack.c.h.b16 %v46
    %v521 = vunpack.c.l.b16 %v47
    %v522 = vunpack.c.h.b16 %v47
    %v523 = vunpack.c.l.b16 %v48
    %v524 = vunpack.c.h.b16 %v48
    %v525 = vunpack.c.l.b16 %v49
    %v526 = vunpack.c.h.b16 %v49
    %v527 = vunpack.c.l.b16 %v50
    %v528 = vunpack.c.h.b16 %v50
    %v529 = vunpack.c.l.b16 %v51
    %v530 = vunpack.c.h.b16 %v51
    %v531 = vunpack.c.l.b16 %v52
    %v532 = vunpack.c.h.b16 %v52
    %v533 = vunpack.c.l.b16 %v53
    %v534 = vunpack.c.h.b16 %v53
    %v535 = vunpack.c.l.b16 %v54
    %v536 = vunpack.c.h.b16 %v54
    %v537 = vunpack.c.l.b16 %v55
    %v538 = vunpack.c.h.b16 %v55
    %v539 = vunpack.c.l.b16 %v56
    %v540 = vunpack.c.h.b16 %v56
    %v541 = vunpack.c.l.b16 %v57
    %v542 = vunpack.c.h.b16 %v57
    %v543 = vunpack.c.l.b16 %v58
    %v544 = vunpack.c.h.b16 %v58
    %v545 = vunpack.c.l.b16 %v59
    %v546 = vunpack.c.h.b16 %v59
    %v547 = vunpack.c.l.b16 %v60
    %v548 = vunpack.c.h.b16 %v60
    %v549 = vunpack.c.l.b16 %v61
    %v550 = vunpack.c.h.b16 %v61
    %v551 = vunpack.c.l.b16 %v62
    %v552 = vunpack.c.h.b16 %v62
    %v553 = vunpack.c.l.b16 %v63
    %v554 = vunpack.c.h.b16 %v63
    %v555 = vunpack.c.l.b16 %v64
    %v556 = vunpack.c.h.b16 %v64
    %v557 = vunpack.c.l.b16 %v65
    %v558 = vunpack.c.h.b16 %v65
    %v559 = vunpack.c.l.b16 %v66
    %v560 = vunpack.c.h.b16 %v66
    %v561 = vunpack.c.l.b16 %v67
    %v562 = vunpack.c.h.b16 %v67
    %v563 = vunpack.c.l.b16 %v68
    %v564 = vunpack.c.h.b16 %v68
    %v565 = vunpack.c.l.b16 %v69
    %v566 = vunpack.c.h.b16 %v69
    %v567 = vunpack.c.l.b16 %v70
    %v568 = vunpack.c.h.b16 %v70
    %v569 = vunpack.c.l.b16 %v71
    %v570 = vunpack.c.h.b16 %v71
    %v571 = vunpack.c.l.b16 %v72
    %v572 = vunpack.c.h.b16 %v72
    %v573 = vunpack.c.l.b16 %v73
    %v574 = vunpack.c.h.b16 %v73
    %v575 = vunpack.c.l.b16 %v74
    %v576 = vunpack.c.h.b16 %v74
    %v577 = vunpack.c.l.b16 %v75
    %v578 = vunpack.c.h.b16 %v75
    %v579 = vunpack.c.l.b16 %v76
    %v580 = vunpack.c.h.b16 %v76
    %v581 = vunpack.c.l.b16 %v77
    %v582 = vunpack.c.h.b16 %v77
    %v583 = vunpack.c.l.b16 %v78
    %v584 = vunpack.c.h.b16 %v78
    %v585 = vunpack.c.l.b16 %v79
    %v586 = vunpack.c.h.b16 %v79
    %v587 = vunpack.c.l.b16 %v80
    %v588 = vunpack.c.h.b16 %v80
    %v589 = vunpack.c.l.b16 %v81
    %v590 = vunpack.c.h.b16 %v81
    %v591 = vunpack.c.l.b16 %v82
    %v592 = vunpack.c.h.b16 %v82
    %v593 = vunpack.c.l.b16 %v83
    %v594 = vunpack.c.h.b16 %v83
    %v595 = vunpack.c.l.b16 %v84
    %v596 = vunpack.c.h.b16 %v84
    %v597 = vunpack.c.l.b16 %v85
    %v598 = vunpack.c.h.b16 %v85
    %v599 = vunpack.c.l.b16 %v86
    %v600 = vunpack.c.h.b16 %v86
    %v601 = vunpack.c.l.b16 %v87
    %v602 = vunpack.c.h.b16 %v87
    %v603 = vunpack.c.l.b16 %v88
    %v604 = vunpack.c.h.b16 %v88
    %v605 = vunpack.c.l.b16 %v89
    %v606 = vunpack.c.h.b16 %v89
    %v607 = vunpack.c.l.b16 %v90
    %v608 = vunpack.c.h.b16 %v90
    %v609 = vunpack.c.l.b16 %v91
    %v610 = vunpack.c.h.b16 %v91
    %v611 = vunpack.c.l.b16 %v92
    %v612 = vunpack.c.h.b16 %v92
    %v613 = vunpack.c.l.b16 %v93
    %v614 = vunpack.c.h.b16 %v93
    %v615 = vunpack.c.l.b16 %v94
    %v616 = vunpack.c.h.b16 %v94
    %v617 = vunpack.c.l.b16 %v95
    %v618 = vunpack.c.h.b16 %v95
    %v619 = vunpack.c.l.b16 %v96
    %v620 = vunpack.c.h.b16 %v96
    %v621 = vunpack.c.l.b16 %v97
    %v622 = vunpack.c.h.b16 %v97
    %v623 = vunpack.c.l.b16 %v98
    %v624 = vunpack.c.h.b16 %v98
    %v625 = vunpack.c.l.b16 %v99
    %v626 = vunpack.c.h.b16 %v99
    %v627 = vunpack.c.l.b16 %v100
    %v628 = vunpack.c.h.b16 %v100
    %v629 = vunpack.c.l.b16 %v101
    %v630 = vunpack.c.h.b16 %v101
    %v631 = vunpack.c.l.b16 %v102
    %v632 = vunpack.c.h.b16 %v102
    %v633 = vunpack.c.l.b16 %v103
    %v634 = vunpack.c.h.b16 %v103
    %v635 = vunpack.c.l.b16 %v104
    %v636 = vunpack.c.h.b16 %v104
    %v637 = vunpack.c.l.b16 %v105
    %v638 = vunpack.c.h.b16 %v105
    %v639 = vunpack.c.l.b16 %v106
    %v640 = vunpack.c.h.b16 %v106
    %v641 = vunpack.c.l.b16 %v107
    %v642 = vunpack.c.h.b16 %v107
    %v643 = vunpack.c.l.b16 %v108
    %v644 = vunpack.c.h.b16 %v108
    %v645 = vunpack.c.l.b16 %v109
    %v646 = vunpack.c.h.b16 %v109
    %v647 = vunpack.c.l.b16 %v110
    %v648 = vunpack.c.h.b16 %v110
    %v649 = vunpack.c.l.b16 %v111
    %v650 = vunpack.c.h.b16 %v111
    %v651 = vunpack.c.l.b16 %v112
    %v652 = vunpack.c.h.b16 %v112
    %v653 = vunpack.c.l.b16 %v113
    %v654 = vunpack.c.h.b16 %v113
    %v655 = vunpack.c.l.b16 %v114
    %v656 = vunpack.c.h.b16 %v114
    %v657 = vunpack.c.l.b16 %v115
    %v658 = vunpack.c.h.b16 %v115
    %v659 = vunpack.c.l.b16 %v116
    %v660 = vunpack.c.h.b16 %v116
    %v661 = vunpack.c.l.b16 %v117
    %v662 = vunpack.c.h.b16 %v117
    %v663 = vunpack.c.l.b16 %v118
    %v664 = vunpack.c.h.b16 %v118
    %v665 = vunpack.c.l.b16 %v119
    %v666 = vunpack.c.h.b16 %v119
    %v667 = vunpack.c.l.b16 %v120
    %v668 = vunpack.c.h.b16 %v120
    %v669 = vunpack.c.l.b16 %v121
    %v670 = vunpack.c.h.b16 %v121
    %v671 = vunpack.c.l.b16 %v122
    %v672 = vunpack.c.h.b16 %v122
    %v673 = vunpack.c.l.b16 %v123
    %v674 = vunpack.c.h.b16 %v123
    %v675 = vunpack.c.l.b16 %v124
    %v676 = vunpack.c.h.b16 %v124
    %v677 = vunpack.c.l.b16 %v125
    %v678 = vunpack.c.h.b16 %v125
    %v679 = vunpack.c.l.b16 %v126
    %v680 = vunpack.c.h.b16 %v126
    %v681 = vunpack.c.l.b16 %v127
    %v682 = vunpack.c.h.b16 %v127
    %v683 = vunpack.c.l.b16 %v128
    %v684 = vunpack.c.h.b16 %v128
    %v685 = vunpack.c.l.b16 %v129
    %v686 = vunpack.c.h.b16 %v129
    %v687 = vunpack.c.l.b16 %v130
    %v688 = vunpack.c.h.b16 %v130
    %v689 = vunpack.c.l.b16 %v131
    %v690 = vunpack.c.h.b16 %v131
    %v691 = vunpack.c.l.b16 %v132
    %v692 = vunpack.c.h.b16 %v132
    %v693 = vunpack.c.l.b16 %v133
    %v694 = vunpack.c.h.b16 %v133
    %v695 = vunpack.c.l.b16 %v134
    %v696 = vunpack.c.h.b16 %v134
    %v697 = vunpack.c.l.b16 %v135
    %v698 = vunpack.c.h.b16 %v135
    %v699 = vunpack.c.l.b16 %v136
    %v700 = vunpack.c.h.b16 %v136
    %v701 = vunpack.c.l.b16 %v137
    %v702 = vunpack.c.h.b16 %v137
    %v703 = vunpack.c.l.b16 %v138
    %v704 = vunpack.c.h.b16 %v138
    %v705 = vunpack.c.l.b16 %v139
    %v706 = vunpack.c.h.b16 %v139
    %v707 = vunpack.c.l.b16 %v140
    %v708 = vunpack.c.h.b16 %v140
    %v709 = vunpack.c.l.b16 %v141
    %v710 = vunpack.c.h.b16 %v141
    %v711 = vunpack.c.l.b16 %v142
    %v712 = vunpack.c.h.b16 %v142
    %v713 = vunpack.c.l.b16 %v143
    %v714 = vunpack.c.h.b16 %v143
    %v715 = vunpack.c.l.b16 %v144
    %v716 = vunpack.c.h.b16 %v144
    %v717 = vunpack.c.l.b16 %v145
    %v718 = vunpack.c.h.b16 %v145
    %v719 = vunpack.c.l.b16 %v146
    %v720 = vunpack.c.h.b16 %v146
    %v721 = vunpack.c.l.b16 %v147
    %v722 = vunpack.c.h.b16 %v147
    %v723 = vunpack.c.l.b16 %v148
    %v724 = vunpack.c.h.b16 %v148
    %v725 = vunpack.c.l.b16 %v149
    %v726 = vunpack.c.h.b16 %v149
    %v727 = vunpack.c.l.b16 %v150
    %v728 = vunpack.c.h.b16 %v150
    %v729 = vunpack.c.l.b16 %v151
    %v730 = vunpack.c.h.b16 %v151
    %v731 = vunpack.c.l.b16 %v152
    %v732 = vunpack.c.h.b16 %v152
    %v733 = vunpack.c.l.b16 %v153
    %v734 = vunpack.c.h.b16 %v153
    %v735 = vunpack.c.l.b16 %v154
    %v736 = vunpack.c.h.b16 %v154
    %v737 = vunpack.c.l.b16 %v155
    %v738 = vunpack.c.h.b16 %v155
    %v739 = vunpack.c.l.b16 %v156
    %v740 = vunpack.c.h.b16 %v156
    %v741 = vunpack.c.l.b16 %v157
    %v742 = vunpack.c.h.b16 %v157
    %v743 = vunpack.c.l.b16 %v158
    %v744 = vunpack.c.h.b16 %v158
    %v745 = vunpack.c.l.b16 %v159
    %v746 = vunpack.c.h.b16 %v159
    %v747 = vunpack.c.l.b16 %v160
    %v748 = vunpack.c.h.b16 %v160
    %v749 = vunpack.c.l.b16 %v161
    %v750 = vunpack.c.h.b16 %v161
    %v751 = vunpack.c.l.b16 %v162
    %v752 = vunpack.c.h.b16 %v162
    %v753 = vunpack.c.l.b16 %v163
    %v754 = vunpack.c.h.b16 %v163
    %v755 = vunpack.c.l.b16 %v164
    %v756 = vunpack.c.h.b16 %v164
    %v757 = vunpack.c.l.b16 %v165
    %v758 = vunpack.c.h.b16 %v165
    %v759 = vunpack.c.l.b16 %v166
    %v760 = vunpack.c.h.b16 %v166
    %v761 = vunpack.c.l.b16 %v167
    %v762 = vunpack.c.h.b16 %v167
    %v763 = vunpack.c.l.b16 %v168
    %v764 = vunpack.c.h.b16 %v168
    %v765 = vunpack.c.l.b16 %v169
    %v766 = vunpack.c.h.b16 %v169
    %v767 = vunpack.c.l.b16 %v170
    %v768 = vunpack.c.h.b16 %v170
    %v769 = vunpack.c.l.b16 %v171
    %v770 = vunpack.c.h.b16 %v171
    %v771 = vunpack.c.l.b16 %v172
    %v772 = vunpack.c.h.b16 %v172
    %v773 = vunpack.c.l.b16 %v173
    %v774 = vunpack.c.h.b16 %v173
    %v775 = vunpack.c.l.b16 %v174
    %v776 = vunpack.c.h.b16 %v174
    %v777 = vunpack.c.l.b16 %v175
    %v778 = vunpack.c.h.b16 %v175
    %v779 = vunpack.c.l.b16 %v176
    %v780 = vunpack.c.h.b16 %v176
    %v781 = vunpack.c.l.b16 %v177
    %v782 = vunpack.c.h.b16 %v177
    %v783 = vunpack.c.l.b16 %v178
    %v784 = vunpack.c.h.b16 %v178
    %v785 = vunpack.c.l.b16 %v179
    %v786 = vunpack.c.h.b16 %v179
    %v787 = vunpack.c.l.b16 %v180
    %v788 = vunpack.c.h.b16 %v180
    %v789 = vunpack.c.l.b16 %v181
    %v790 = vunpack.c.h.b16 %v181
    %v791 = vunpack.c.l.b16 %v182
    %v792 = vunpack.c.h.b16 %v182
    %v793 = vunpack.c.l.b16 %v183
    %v794 = vunpack.c.h.b16 %v183
    %v795 = vunpack.c.l.b16 %v184
    %v796 = vunpack.c.h.b16 %v184
    %v797 = vunpack.c.l.b16 %v185
    %v798 = vunpack.c.h.b16 %v185
    %v799 = vunpack.c.l.b16 %v186
    %v800 = vunpack.c.h.b16 %v186
    %v801 = vunpack.c.l.b16 %v187
    %v802 = vunpack.c.h.b16 %v187
    %v803 = vunpack.c.l.b16 %v188
    %v804 = vunpack.c.h.b16 %v188
    %v805 = vunpack.c.l.b16 %v189
    %v806 = vunpack.c.h.b16 %v189
    %v807 = vunpack.c.l.b16 %v190
    %v808 = vunpack.c.h.b16 %v190
    %v809 = vunpack.c.l.b16 %v191
    %v810 = vunpack.c.h.b16 %v191
    %v811 = vunpack.c.l.b16 %v192
    %v812 = vunpack.c.h.b16 %v192
    %v813 = vunpack.c.l.b16 %v193
    %v814 = vunpack.c.h.b16 %v193
    %v815 = vunpack.c.l.b16 %v194
    %v816 = vunpack.c.h.b16 %v194
    %v817 = vunpack.c.l.b16 %v195
    %v818 = vunpack.c.h.b16 %v195
    %v819 = vunpack.c.l.b16 %v196
    %v820 = vunpack.c.h.b16 %v196
    %v821 = vunpack.c.l.b16 %v197
    %v822 = vunpack.c.h.b16 %v197
    %v823 = vunpack.c.l.b16 %v198
    %v824 = vunpack.c.h.b16 %v198
    %v825 = vunpack.c.l.b16 %v199
    %v826 = vunpack.c.h.b16 %v199
    %v827 = vunpack.c.l.b16 %v200
    %v828 = vunpack.c.h.b16 %v200
    %v829 = vunpack.c.l.b16 %v201
    %v830 = vunpack.c.h.b16 %v201
    %v831 = vunpack.c.l.b16 %v202
    %v832 = vunpack.c.h.b16 %v202
    %v833 = vunpack.c.l.b16 %v203
    %v834 = vunpack.c.h.b16 %v203
    %v835 = vunpack.c.l.b16 %v204
    %v836 = vunpack.c.h.b16 %v204
    %v837 = vunpack.c.l.b16 %v205
    %v838 = vunpack.c.h.b16 %v205
    %v839 = vunpack.c.l.b16 %v206
    %v840 = vunpack.c.h.b16 %v206
    %v841 = vunpack.c.l.b16 %v207
    %v842 = vunpack.c.h.b16 %v207
    %v843 = vunpack.c.l.b16 %v208
    %v844 = vunpack.c.h.b16 %v208
    %v845 = vunpack.c.l.b16 %v209
    %v846 = vunpack.c.h.b16 %v209
    %v847 = vunpack.c.l.b16 %v210
    %v848 = vunpack.c.h.b16 %v210
    %v849 = vunpack.c.l.b16 %v211
    %v850 = vunpack.c.h.b16 %v211
    %v851 = vunpack.c.l.b16 %v212
    %v852 = vunpack.c.h.b16 %v212
    %v853 = vunpack.c.l.b16 %v213
    %v854 = vunpack.c.h.b16 %v213
    %v855 = vunpack.c.l.b16 %v214
    %v856 = vunpack.c.h.b16 %v214
    %v857 = vunpack.c.l.b16 %v215
    %v858 = vunpack.c.h.b16 %v215
    %v859 = vunpack.c.l.b16 %v216
    %v860 = vunpack.c.h.b16 %v216
    %v861 = vunpack.c.l.b16 %v217
    %v862 = vunpack.c.h.b16 %v217
    %v863 = vunpack.c.l.b16 %v218
    %v864 = vunpack.c.h.b16 %v218
    %v865 = vunpack.c.l.b16 %v219
    %v866 = vunpack.c.h.b16 %v219
    %v867 = vunpack.c.l.b16 %v220
    %v868 = vunpack.c.h.b16 %v220
    %v869 = vunpack.c.l.b16 %v221
    %v870 = vunpack.c.h.b16 %v221
    %v871 = vunpack.c.l.b16 %v222
    %v872 = vunpack.c.h.b16 %v222
    %v873 = vunpack.c.l.b16 %v223
    %v874 = vunpack.c.h.b16 %v223
    %v875 = vunpack.c.l.b16 %v224
    %v876 = vunpack.c.h.b16 %v224
    %v877 = vunpack.c.l.b16 %v225
    %v878 = vunpack.c.h.b16 %v225
    %v879 = vunpack.c.l.b16 %v226
    %v880 = vunpack.c.h.b16 %v226
    %v881 = vunpack.c.l.b16 %v227
    %v882 = vunpack.c.h.b16 %v227
    %v883 = vunpack.c.l.b16 %v228
    %v884 = vunpack.c.h.b16 %v228
    %v885 = vunpack.c.l.b16 %v229
    %v886 = vunpack.c.h.b16 %v229
    %v887 = vunpack.c.l.b16 %v230
    %v888 = vunpack.c.h.b16 %v230
    %v889 = vunpack.c.l.b16 %v231
    %v890 = vunpack.c.h.b16 %v231
    %v891 = vunpack.c.l.b16 %v232
    %v892 = vunpack.c.h.b16 %v232
    %v893 = vunpack.c.l.b16 %v233
    %v894 = vunpack.c.h.b16 %v233
    %v895 = vunpack.c.l.b16 %v234
    %v896 = vunpack.c.h.b16 %v234
    %v897 = vunpack.c.l.b16 %v235
    %v898 = vunpack.c.h.b16 %v235
    %v899 = vunpack.c.l.b16 %v236
    %v900 = vunpack.c.h.b16 %v236
    %v901 = vunpack.c.l.b16 %v237
    %v902 = vunpack.c.h.b16 %v237
    %v903 = vpack.c.b16 %v515, %v511
    %v904 = vpack.c.b16 %v516, %v512
    %v905 = vpack.c.b16 %v517, %v513
    %v906 = vpack.c.b16 %v518, %v514
    %v907 = vpack.c.b16 %v523, %v519
    %v908 = vpack.c.b16 %v524, %v520
    %v909 = vpack.c.b16 %v525, %v521
    %v910 = vpack.c.b16 %v526, %v522
    %v911 = vpack.c.b16 %v531, %v527
    %v912 = vpack.c.b16 %v532, %v528
    %v913 = vpack.c.b16 %v533, %v529
    %v914 = vpack.c.b16 %v534, %v530
    %v915 = vpack.c.b16 %v539, %v535
    %v916 = vpack.c.b16 %v540, %v536
    %v917 = vpack.c.b16 %v541, %v537
    %v918 = vpack.c.b16 %v542, %v538
    %v919 = vpack.c.b16 %v547, %v543
    %v920 = vpack.c.b16 %v548, %v544
    %v921 = vpack.c.b16 %v549, %v545
    %v922 = vpack.c.b16 %v550, %v546
    %v923 = vpack.c.b16 %v555, %v551
    %v924 = vpack.c.b16 %v556, %v552
    %v925 = vpack.c.b16 %v557, %v553
    %v926 = vpack.c.b16 %v558, %v554
    %v927 = vpack.c.b16 %v563, %v559
    %v928 = vpack.c.b16 %v564, %v560
    %v929 = vpack.c.b16 %v565, %v561
    %v930 = vpack.c.b16 %v566, %v562
    %v931 = vpack.c.b16 %v571, %v567
    %v932 = vpack.c.b16 %v572, %v568
    %v933 = vpack.c.b16 %v573, %v569
    %v934 = vpack.c.b16 %v574, %v570
    %v935 = vpack.c.b16 %v579, %v575
    %v936 = vpack.c.b16 %v580, %v576
    %v937 = vpack.c.b16 %v581, %v577
    %v938 = vpack.c.b16 %v582, %v578
    %v939 = vpack.c.b16 %v587, %v583
    %v940 = vpack.c.b16 %v588, %v584
    %v941 = vpack.c.b16 %v589, %v585
    %v942 = vpack.c.b16 %v590, %v586
    %v943 = vpack.c.b16 %v595, %v591
    %v944 = vpack.c.b16 %v596, %v592
    %v945 = vpack.c.b16 %v597, %v593
    %v946 = vpack.c.b16 %v598, %v594
    %v947 = vpack.c.b16 %v603, %v599
    %v948 = vpack.c.b16 %v604, %v600
    %v949 = vpack.c.b16 %v605, %v601
    %v950 = vpack.c.b16 %v606, %v602
    %v951 = vpack.c.b16 %v611, %v607
    %v952 = vpack.c.b16 %v612, %v608
    %v953 = vpack.c.b16 %v613, %v609
    %v954 = vpack.c.b16 %v614, %v610
    %v955 = vpack.c.b16 %v619, %v615
    %v956 = vpack.c.b16 %v620, %v616
    %v957 = vpack.c.b16 %v621, %v617
    %v958 = vpack.c.b16 %v622, %v618
    %v959 = vpack.c.b16 %v627, %v623
    %v960 = vpack.c.b16 %v628, %v624
    %v961 = vpack.c.b16 %v629, %v625
    %v962 = vpack.c.b16 %v630, %v626
    %v963 = vpack.c.b16 %v635, %v631
    %v964 = vpack.c.b16 %v636, %v632
    %v965 = vpack.c.b16 %v637, %v633
    %v966 = vpack.c.b16 %v638, %v634
    %v967 = vpack.c.b16 %v643, %v639
    %v968 = vpack.c.b16 %v644, %v640
    %v969 = vpack.c.b16 %v645, %v641
    %v970 = vpack.c.b16 %v646, %v642
    %v971 = vpack.c.b16 %v651, %v647
    %v972 = vpack.c.b16 %v652, %v648
    %v973 = vpack.c.b16 %v653, %v649
    %v974 = vpack.c.b16 %v654, %v650
    %v975 = vpack.c.b16 %v659, %v655
    %v976 = vpack.c.b16 %v660, %v656
    %v977 = vpack.c.b16 %v661, %v657
    %v978 = vpack.c.b16 %v662, %v658
    %v979 = vpack.c.b16 %v667, %v663
    %v980 = vpack.c.b16 %v668, %v664
    %v981 = vpack.c.b16 %v669, %v665
    %v982 = vpack.c.b16 %v670, %v666
    %v983 = vpack.c.b16 %v675, %v671
    %v984 = vpack.c.b16 %v676, %v672
    %v985 = vpack.c.b16 %v677, %v673
    %v986 = vpack.c.b16 %v678, %v674
    %v987 = vpack.c.b16 %v683, %v679
    %v988 = vpack.c.b16 %v684, %v680
    %v989 = vpack.c.b16 %v685, %v681
    %v990 = vpack.c.b16 %v686, %v682
    %v991 = vpack.c.b16 %v691, %v687
    %v992 = vpack.c.b16 %v692, %v688
    %v993 = vpack.c.b16 %v693, %v689
    %v994 = vpack.c.b16 %v694, %v690
    %v995 = vpack.c.b16 %v699, %v695
    %v996 = vpack.c.b16 %v700, %v696
    %v997 = vpack.c.b16 %v701, %v697
    %v998 = vpack.c.b16 %v702, %v698
    %v999 = vpack.c.b16 %v707, %v703
    %v1000 = vpack.c.b16 %v708, %v704
    %v1001 = vpack.c.b16 %v709, %v705
    %v1002 = vpack.c.b16 %v710, %v706
    %v1003 = vpack.c.b16 %v715, %v711
    %v1004 = vpack.c.b16 %v716, %v712
    %v1005 = vpack.c.b16 %v717, %v713
    %v1006 = vpack.c.b16 %v718, %v714
    %v1007 = vpack.c.b16 %v723, %v719
    %v1008 = vpack.c.b16 %v724, %v720
    %v1009 = vpack.c.b16 %v725, %v721
    %v1010 = vpack.c.b16 %v726, %v722
    %v1011 = vpack.c.b16 %v731, %v727
    %v1012 = vpack.c.b16 %v732, %v728
    %v1013 = vpack.c.b16 %v733, %v729
    %v1014 = vpack.c.b16 %v734, %v730
    %v1015 = vpack.c.b16 %v739, %v735
    %v1016 = vpack.c.b16 %v740, %v736
    %v1017 = vpack.c.b16 %v741, %v737
    %v1018 = vpack.c.b16 %v742, %v738
    %v1019 = vpack.c.b16 %v747, %v743
    %v1020 = vpack.c.b16 %v748, %v744
    %v1021 = vpack.c.b16 %v749, %v745
    %v1022 = vpack.c.b16 %v750, %v746
    %v1023 = vpack.c.b16 %v755, %v751
    %v1024 = vpack.c.b16 %v756, %v752
    %v1025 = vpack.c.b16 %v757, %v753
    %v1026 = vpack.c.b16 %v758, %v754
    %v1027 = vpack.c.b16 %v763, %v759
    %v1028 = vpack.c.b16 %v764, %v760
    %v1029 = vpack.c.b16 %v765, %v761
    %v1030 = vpack.c.b16 %v766, %v762
    %v1031 = vpack.c.b16 %v771, %v767
    %v1032 = vpack.c.b16 %v772, %v768
    %v1033 = vpack.c.b16 %v773, %v769
    %v1034 = vpack.c.b16 %v774, %v770
    %v1035 = vpack.c.b16 %v779, %v775
    %v1036 = vpack.c.b16 %v780, %v776
    %v1037 = vpack.c.b16 %v781, %v777
    %v1038 = vpack.c.b16 %v782, %v778
    %v1039 = vpack.c.b16 %v787, %v783
    %v1040 = vpack.c.b16 %v788, %v784
    %v1041 = vpack.c.b16 %v789, %v785
    %v1042 = vpack.c.b16 %v790, %v786
    %v1043 = vpack.c.b16 %v795, %v791
    %v1044 = vpack.c.b16 %v796, %v792
    %v1045 = vpack.c.b16 %v797, %v793
    %v1046 = vpack.c.b16 %v798, %v794
    %v1047 = vpack.c.b16 %v803, %v799
    %v1048 = vpack.c.b16 %v804, %v800
    %v1049 = vpack.c.b16 %v805, %v801
    %v1050 = vpack.c.b16 %v806, %v802
    %v1051 = vpack.c.b16 %v811, %v807
    %v1052 = vpack.c.b16 %v812, %v808
    %v1053 = vpack.c.b16 %v813, %v809
    %v1054 = vpack.c.b16 %v814, %v810
    %v1055 = vpack.c.b16 %v819, %v815
    %v1056 = vpack.c.b16 %v820, %v816
    %v1057 = vpack.c.b16 %v821, %v817
    %v1058 = vpack.c.b16 %v822, %v818
    %v1059 = vpack.c.b16 %v827, %v823
    %v1060 = vpack.c.b16 %v828, %v824
    %v1061 = vpack.c.b16 %v829, %v825
    %v1062 = vpack.c.b16 %v830, %v826
    %v1063 = vpack.c.b16 %v835, %v831
    %v1064 = vpack.c.b16 %v836, %v832
    %v1065 = vpack.c.b16 %v837, %v833
    %v1066 = vpack.c.b16 %v838, %v834
    %v1067 = vpack.c.b16 %v843, %v839
    %v1068 = vpack.c.b16 %v844, %v840
    %v1069 = vpack.c.b16 %v845, %v841
    %v1070 = vpack.c.b16 %v846, %v842
    %v1071 = vpack.c.b16 %v851, %v847
    %v1072 = vpack.c.b16 %v852, %v848
    %v1073 = vpack.c.b16 %v853, %v849
    %v1074 = vpack.c.b16 %v854, %v850
    %v1075 = vpack.c.b16 %v859, %v855
    %v1076 = vpack.c.b16 %v860, %v856
    %v1077 = vpack.c.b16 %v861, %v857
    %v1078 = vpack.c.b16 %v862, %v858
    %v1079 = vpack.c.b16 %v867, %v863
    %v1080 = vpack.c.b16 %v868, %v864
    %v1081 = vpack.c.b16 %v869, %v865
    %v1082 = vpack.c.b16 %v870, %v866
    %v1083 = vpack.c.b16 %v875, %v871
    %v1084 = vpack.c.b16 %v876, %v872
    %v1085 = vpack.c.b16 %v877, %v873
    %v1086 = vpack.c.b16 %v878, %v874
    %v1087 = vpack.c.b16 %v883, %v879
    %v1088 = vpack.c.b16 %v884, %v880
    %v1089 = vpack.c.b16 %v885, %v881
    %v1090 = vpack.c.b16 %v886, %v882
    %v1091 = vpack.c.b16 %v891, %v887
    %v1092 = vpack.c.b16 %v892, %v888
    %v1093 = vpack.c.b16 %v893, %v889
    %v1094 = vpack.c.b16 %v894, %v890
    %v1095 = vpack.c.b16 %v899, %v895
    %v1096 = vpack.c.b16 %v900, %v896
    %v1097 = vpack.c.b16 %v901, %v897
    %v1098 = vpack.c.b16 %v902, %v898
    %vm1295 = vcmask 130048
    %v1297 = vsel %vm1295, %v307, 0
    %1299 = vmatprep.subr.bf16.mxu0 %v904
    %1300 = vmatpush1.bf16.msra.mxu0 %v903
    %1301 = vmatprep.subr.bf16.mxu0 %v908
    %1302 = vmatpush1.bf16.msra.mxu0 %v907
    %1303 = vmatprep.subr.bf16.mxu0 %v912
    %1304 = vmatpush1.bf16.msra.mxu0 %v911
    %1305 = vmatprep.subr.bf16.mxu0 %v916
    %1306 = vmatpush1.bf16.msra.mxu0 %v915
    %1307 = vmatprep.subr.bf16.mxu0 %v920
    %1308 = vmatpush1.bf16.msra.mxu0 %v919
    %1309 = vmatprep.subr.bf16.mxu0 %v924
    %1310 = vmatpush1.bf16.msra.mxu0 %v923
    %1311 = vmatprep.subr.bf16.mxu0 %v928
    %1312 = vmatpush1.bf16.msra.mxu0 %v927
    %1313 = vmatprep.subr.bf16.mxu0 %v932
    %1314 = vmatpush1.bf16.msra.mxu0 %v931
    %1315 = vmatprep.subr.bf16.mxu0 %v936
    %1316 = vmatpush1.bf16.msra.mxu0 %v935
    %1317 = vmatprep.subr.bf16.mxu0 %v940
    %1318 = vmatpush1.bf16.msra.mxu0 %v939
    %1319 = vmatprep.subr.bf16.mxu0 %v944
    %1320 = vmatpush1.bf16.msra.mxu0 %v943
    %1321 = vmatprep.subr.bf16.mxu0 %v948
    %1322 = vmatpush1.bf16.msra.mxu0 %v947
    %1323 = vmatprep.subr.bf16.mxu0 %v952
    %1324 = vmatpush1.bf16.msra.mxu0 %v951
    %1325 = vmatprep.subr.bf16.mxu0 %v956
    %1326 = vmatpush1.bf16.msra.mxu0 %v955
    %1327 = vmatprep.subr.bf16.mxu0 %v960
    %1328 = vmatpush1.bf16.msra.mxu0 %v959
    %1329 = vmatprep.subr.bf16.mxu0 %v964
    %1330 = vmatpush1.bf16.msra.mxu0 %v963
    %1331 = vmatprep.mubr.bf16.mxu0 %v298
    %1332 = vmatmul.mubr.bf16.gmra.mrb[0].mxu0 %v284
    %v1333 = vpop.f32.mrb[0].mxu0
    %v1334 = vadd.f32 %v243, %v1333
    %v1335 = vpop.f32.mrb[0].mxu0
    %v1336 = vadd.f32 %v247, %v1335
    %v1337 = vpop.f32.mrb[0].mxu0
    %v1338 = vpop.f32.mrb[0].mxu0
    %1339 = vdwg.mxu0
    %1340 = vmatprep.subr.bf16.mxu0 %v968
    %1341 = vmatpush1.bf16.msra.mxu0 %v967
    %1342 = vmatprep.subr.bf16.mxu0 %v972
    %1343 = vmatpush1.bf16.msra.mxu0 %v971
    %1344 = vmatprep.subr.bf16.mxu0 %v976
    %1345 = vmatpush1.bf16.msra.mxu0 %v975
    %1346 = vmatprep.subr.bf16.mxu0 %v980
    %1347 = vmatpush1.bf16.msra.mxu0 %v979
    %1348 = vmatprep.subr.bf16.mxu0 %v984
    %1349 = vmatpush1.bf16.msra.mxu0 %v983
    %1350 = vmatprep.subr.bf16.mxu0 %v988
    %1351 = vmatpush1.bf16.msra.mxu0 %v987
    %1352 = vmatprep.subr.bf16.mxu0 %v992
    %1353 = vmatpush1.bf16.msra.mxu0 %v991
    %1354 = vmatprep.subr.bf16.mxu0 %v996
    %1355 = vmatpush1.bf16.msra.mxu0 %v995
    %1356 = vmatprep.subr.bf16.mxu0 %v1000
    %1357 = vmatpush1.bf16.msra.mxu0 %v999
    %1358 = vmatprep.subr.bf16.mxu0 %v1004
    %1359 = vmatpush1.bf16.msra.mxu0 %v1003
    %1360 = vmatprep.subr.bf16.mxu0 %v1008
    %1361 = vmatpush1.bf16.msra.mxu0 %v1007
    %1362 = vmatprep.subr.bf16.mxu0 %v1012
    %1363 = vmatpush1.bf16.msra.mxu0 %v1011
    %1364 = vmatprep.subr.bf16.mxu0 %v1016
    %1365 = vmatpush1.bf16.msra.mxu0 %v1015
    %1366 = vmatprep.subr.bf16.mxu0 %v1020
    %1367 = vmatpush1.bf16.msra.mxu0 %v1019
    %1368 = vmatprep.subr.bf16.mxu0 %v1024
    %1369 = vmatpush1.bf16.msra.mxu0 %v1023
    %1370 = vmatprep.subr.bf16.mxu0 %v1028
    %1371 = vmatpush1.bf16.msra.mxu0 %v1027
    %1372 = vmatprep.mubr.bf16.mxu0 %v308
    %1373 = vmatmul.mubr.bf16.gmra.mrb[0].mxu0 %v306
    %v1374 = vpop.f32.mrb[0].mxu0
    %v1375 = vadd.f32 %v1334, %v1374
    %v1376 = vpop.f32.mrb[0].mxu0
    %v1377 = vadd.f32 %v1336, %v1376
    %v1378 = vpop.f32.mrb[0].mxu0
    %v1379 = vpop.f32.mrb[0].mxu0
    %1380 = vdwg.mxu0
    %1381 = vmatprep.subr.bf16.mxu0 %v1032
    %1382 = vmatpush1.bf16.msra.mxu0 %v1031
    %1383 = vmatprep.subr.bf16.mxu0 %v1036
    %1384 = vmatpush1.bf16.msra.mxu0 %v1035
    %1385 = vmatprep.subr.bf16.mxu0 %v1040
    %1386 = vmatpush1.bf16.msra.mxu0 %v1039
    %1387 = vmatprep.subr.bf16.mxu0 %v1044
    %1388 = vmatpush1.bf16.msra.mxu0 %v1043
    %1389 = vmatprep.subr.bf16.mxu0 %v1048
    %1390 = vmatpush1.bf16.msra.mxu0 %v1047
    %1391 = vmatprep.subr.bf16.mxu0 %v1052
    %1392 = vmatpush1.bf16.msra.mxu0 %v1051
    %1393 = vmatprep.subr.bf16.mxu0 %v1056
    %1394 = vmatpush1.bf16.msra.mxu0 %v1055
    %1395 = vmatprep.subr.bf16.mxu0 %v1060
    %1396 = vmatpush1.bf16.msra.mxu0 %v1059
    %1397 = vmatprep.subr.bf16.mxu0 %v1064
    %1398 = vmatpush1.bf16.msra.mxu0 %v1063
    %1399 = vmatprep.subr.bf16.mxu0 %v1068
    %1400 = vmatpush1.bf16.msra.mxu0 %v1067
    %1401 = vmatprep.subr.bf16.mxu0 %v1072
    %1402 = vmatpush1.bf16.msra.mxu0 %v1071
    %1403 = vmatprep.subr.bf16.mxu0 %v1076
    %1404 = vmatpush1.bf16.msra.mxu0 %v1075
    %1405 = vmatprep.subr.bf16.mxu0 %v1080
    %1406 = vmatpush1.bf16.msra.mxu0 %v1079
    %1407 = vmatprep.subr.bf16.mxu0 %v1084
    %1408 = vmatpush1.bf16.msra.mxu0 %v1083
    %1409 = vmatprep.subr.bf16.mxu0 %v1088
    %1410 = vmatpush1.bf16.msra.mxu0 %v1087
    %1411 = vmatprep.subr.bf16.mxu0 %v1092
    %1412 = vmatpush1.bf16.msra.mxu0 %v1091
    %1413 = vmatprep.mubr.bf16.mxu0 %v305
    %1414 = vmatmul.mubr.bf16.gmra.mrb[0].mxu0 %v291
    %v1415 = vpop.f32.mrb[0].mxu0
    %v1416 = vadd.f32 %v1375, %v1415
    %v1417 = vpop.f32.mrb[0].mxu0
    %v1418 = vadd.f32 %v1377, %v1417
    %v1419 = vpop.f32.mrb[0].mxu0
    %v1420 = vpop.f32.mrb[0].mxu0
    %1421 = vdwg.mxu0
    %1422 = vmatprep.subr.bf16.mxu0 %v1096
    %1423 = vmatpush1.bf16.msra.mxu0 %v1095
    %1424 = vmatprep.subr.bf16.mxu0 0
    %1425 = vmatpush1.bf16.msra.mxu0 0
    %1426 = vmatprep.subr.bf16.mxu0 0
    %1427 = vmatpush1.bf16.msra.mxu0 0
    %1428 = vmatprep.subr.bf16.mxu0 0
    %1429 = vmatpush1.bf16.msra.mxu0 0
    %1430 = vmatprep.subr.bf16.mxu0 0
    %1431 = vmatpush1.bf16.msra.mxu0 0
    %1432 = vmatprep.subr.bf16.mxu0 0
    %1433 = vmatpush1.bf16.msra.mxu0 0
    %1434 = vmatprep.subr.bf16.mxu0 0
    %1435 = vmatpush1.bf16.msra.mxu0 0
    %1436 = vmatprep.subr.bf16.mxu0 0
    %1437 = vmatpush1.bf16.msra.mxu0 0
    %1438 = vmatprep.subr.bf16.mxu0 0
    %1439 = vmatpush1.bf16.msra.mxu0 0
    %1440 = vmatprep.subr.bf16.mxu0 0
    %1441 = vmatpush1.bf16.msra.mxu0 0
    %1442 = vmatprep.subr.bf16.mxu0 0
    %1443 = vmatpush1.bf16.msra.mxu0 0
    %1444 = vmatprep.subr.bf16.mxu0 0
    %1445 = vmatpush1.bf16.msra.mxu0 0
    %1446 = vmatprep.subr.bf16.mxu0 0
    %1447 = vmatpush1.bf16.msra.mxu0 0
    %1448 = vmatprep.subr.bf16.mxu0 0
    %1449 = vmatpush1.bf16.msra.mxu0 0
    %1450 = vmatprep.subr.bf16.mxu0 0
    %1451 = vmatpush1.bf16.msra.mxu0 0
    %1452 = vmatprep.subr.bf16.mxu0 0
    %1453 = vmatpush1.bf16.msra.mxu0 0
    %1454 = vmatprep.mubr.bf16.mxu0 0
    %1455 = vmatmul.mubr.bf16.gmra.mrb[0].mxu0 %v1297
    %v1456 = vpop.f32.mrb[0].mxu0
    %v1457 = vadd.f32 %v1416, %v1456
    %v1458 = vpop.f32.mrb[0].mxu0
    %v1459 = vadd.f32 %v1418, %v1458
    %v1460 = vpop.f32.mrb[0].mxu0
    %v1461 = vpop.f32.mrb[0].mxu0
    %1462 = vdwg.mxu0
    %1463 = vmatprep.subr.bf16.mxu0 %v906
    %1464 = vmatpush1.bf16.msra.mxu0 %v905
    %1465 = vmatprep.subr.bf16.mxu0 %v910
    %1466 = vmatpush1.bf16.msra.mxu0 %v909
    %1467 = vmatprep.subr.bf16.mxu0 %v914
    %1468 = vmatpush1.bf16.msra.mxu0 %v913
    %1469 = vmatprep.subr.bf16.mxu0 %v918
    %1470 = vmatpush1.bf16.msra.mxu0 %v917
    %1471 = vmatprep.subr.bf16.mxu0 %v922
    %1472 = vmatpush1.bf16.msra.mxu0 %v921
    %1473 = vmatprep.subr.bf16.mxu0 %v926
    %1474 = vmatpush1.bf16.msra.mxu0 %v925
    %1475 = vmatprep.subr.bf16.mxu0 %v930
    %1476 = vmatpush1.bf16.msra.mxu0 %v929
    %1477 = vmatprep.subr.bf16.mxu0 %v934
    %1478 = vmatpush1.bf16.msra.mxu0 %v933
    %1479 = vmatprep.subr.bf16.mxu0 %v938
    %1480 = vmatpush1.bf16.msra.mxu0 %v937
    %1481 = vmatprep.subr.bf16.mxu0 %v942
    %1482 = vmatpush1.bf16.msra.mxu0 %v941
    %1483 = vmatprep.subr.bf16.mxu0 %v946
    %1484 = vmatpush1.bf16.msra.mxu0 %v945
    %1485 = vmatprep.subr.bf16.mxu0 %v950
    %1486 = vmatpush1.bf16.msra.mxu0 %v949
    %1487 = vmatprep.subr.bf16.mxu0 %v954
    %1488 = vmatpush1.bf16.msra.mxu0 %v953
    %1489 = vmatprep.subr.bf16.mxu0 %v958
    %1490 = vmatpush1.bf16.msra.mxu0 %v957
    %1491 = vmatprep.subr.bf16.mxu0 %v962
    %1492 = vmatpush1.bf16.msra.mxu0 %v961
    %1493 = vmatprep.subr.bf16.mxu0 %v966
    %1494 = vmatpush1.bf16.msra.mxu0 %v965
    %1495 = vmatprep.mubr.bf16.mxu0 %v298
    %1496 = vmatmul.mubr.bf16.gmra.mrb[0].mxu0 %v284
    %v1497 = vpop.f32.mrb[0].mxu0
    %v1498 = vadd.f32 %v251, %v1497
    %v1499 = vpop.f32.mrb[0].mxu0
    %v1500 = vadd.f32 %v255, %v1499
    %v1501 = vpop.f32.mrb[0].mxu0
    %v1502 = vpop.f32.mrb[0].mxu0
    %1503 = vdwg.mxu0
    %1504 = vmatprep.subr.bf16.mxu0 %v970
    %1505 = vmatpush1.bf16.msra.mxu0 %v969
    %1506 = vmatprep.subr.bf16.mxu0 %v974
    %1507 = vmatpush1.bf16.msra.mxu0 %v973
    %1508 = vmatprep.subr.bf16.mxu0 %v978
    %1509 = vmatpush1.bf16.msra.mxu0 %v977
    %1510 = vmatprep.subr.bf16.mxu0 %v982
    %1511 = vmatpush1.bf16.msra.mxu0 %v981
    %1512 = vmatprep.subr.bf16.mxu0 %v986
    %1513 = vmatpush1.bf16.msra.mxu0 %v985
    %1514 = vmatprep.subr.bf16.mxu0 %v990
    %1515 = vmatpush1.bf16.msra.mxu0 %v989
    %1516 = vmatprep.subr.bf16.mxu0 %v994
    %1517 = vmatpush1.bf16.msra.mxu0 %v993
    %1518 = vmatprep.subr.bf16.mxu0 %v998
    %1519 = vmatpush1.bf16.msra.mxu0 %v997
    %1520 = vmatprep.subr.bf16.mxu0 %v1002
    %1521 = vmatpush1.bf16.msra.mxu0 %v1001
    %1522 = vmatprep.subr.bf16.mxu0 %v1006
    %1523 = vmatpush1.bf16.msra.mxu0 %v1005
    %1524 = vmatprep.subr.bf16.mxu0 %v1010
    %1525 = vmatpush1.bf16.msra.mxu0 %v1009
    %1526 = vmatprep.subr.bf16.mxu0 %v1014
    %1527 = vmatpush1.bf16.msra.mxu0 %v1013
    %1528 = vmatprep.subr.bf16.mxu0 %v1018
    %1529 = vmatpush1.bf16.msra.mxu0 %v1017
    %1530 = vmatprep.subr.bf16.mxu0 %v1022
    %1531 = vmatpush1.bf16.msra.mxu0 %v1021
    %1532 = vmatprep.subr.bf16.mxu0 %v1026
    %1533 = vmatpush1.bf16.msra.mxu0 %v1025
    %1534 = vmatprep.subr.bf16.mxu0 %v1030
    %1535 = vmatpush1.bf16.msra.mxu0 %v1029
    %1536 = vmatprep.mubr.bf16.mxu0 %v308
    %1537 = vmatmul.mubr.bf16.gmra.mrb[0].mxu0 %v306
    %v1538 = vpop.f32.mrb[0].mxu0
    %v1539 = vadd.f32 %v1498, %v1538
    %v1540 = vpop.f32.mrb[0].mxu0
    %v1541 = vadd.f32 %v1500, %v1540
    %v1542 = vpop.f32.mrb[0].mxu0
    %v1543 = vpop.f32.mrb[0].mxu0
    %1544 = vdwg.mxu0
    %1545 = vmatprep.subr.bf16.mxu0 %v1034
    %1546 = vmatpush1.bf16.msra.mxu0 %v1033
    %1547 = vmatprep.subr.bf16.mxu0 %v1038
    %1548 = vmatpush1.bf16.msra.mxu0 %v1037
    %1549 = vmatprep.subr.bf16.mxu0 %v1042
    %1550 = vmatpush1.bf16.msra.mxu0 %v1041
    %1551 = vmatprep.subr.bf16.mxu0 %v1046
    %1552 = vmatpush1.bf16.msra.mxu0 %v1045
    %1553 = vmatprep.subr.bf16.mxu0 %v1050
    %1554 = vmatpush1.bf16.msra.mxu0 %v1049
    %1555 = vmatprep.subr.bf16.mxu0 %v1054
    %1556 = vmatpush1.bf16.msra.mxu0 %v1053
    %1557 = vmatprep.subr.bf16.mxu0 %v1058
    %1558 = vmatpush1.bf16.msra.mxu0 %v1057
    %1559 = vmatprep.subr.bf16.mxu0 %v1062
    %1560 = vmatpush1.bf16.msra.mxu0 %v1061
    %1561 = vmatprep.subr.bf16.mxu0 %v1066
    %1562 = vmatpush1.bf16.msra.mxu0 %v1065
    %1563 = vmatprep.subr.bf16.mxu0 %v1070
    %1564 = vmatpush1.bf16.msra.mxu0 %v1069
    %1565 = vmatprep.subr.bf16.mxu0 %v1074
    %1566 = vmatpush1.bf16.msra.mxu0 %v1073
    %1567 = vmatprep.subr.bf16.mxu0 %v1078
    %1568 = vmatpush1.bf16.msra.mxu0 %v1077
    %1569 = vmatprep.subr.bf16.mxu0 %v1082
    %1570 = vmatpush1.bf16.msra.mxu0 %v1081
    %1571 = vmatprep.subr.bf16.mxu0 %v1086
    %1572 = vmatpush1.bf16.msra.mxu0 %v1085
    %1573 = vmatprep.subr.bf16.mxu0 %v1090
    %1574 = vmatpush1.bf16.msra.mxu0 %v1089
    %1575 = vmatprep.subr.bf16.mxu0 %v1094
    %1576 = vmatpush1.bf16.msra.mxu0 %v1093
    %1577 = vmatprep.mubr.bf16.mxu0 %v305
    %1578 = vmatmul.mubr.bf16.gmra.mrb[0].mxu0 %v291
    %v1579 = vpop.f32.mrb[0].mxu0
    %v1580 = vadd.f32 %v1539, %v1579
    %v1581 = vpop.f32.mrb[0].mxu0
    %v1582 = vadd.f32 %v1541, %v1581
    %v1583 = vpop.f32.mrb[0].mxu0
    %v1584 = vpop.f32.mrb[0].mxu0
    %1585 = vdwg.mxu0
    %1586 = vmatprep.subr.bf16.mxu0 %v1098
    %1587 = vmatpush1.bf16.msra.mxu0 %v1097
    %1588 = vmatprep.subr.bf16.mxu0 0
    %1589 = vmatpush1.bf16.msra.mxu0 0
    %1590 = vmatprep.subr.bf16.mxu0 0
    %1591 = vmatpush1.bf16.msra.mxu0 0
    %1592 = vmatprep.subr.bf16.mxu0 0
    %1593 = vmatpush1.bf16.msra.mxu0 0
    %1594 = vmatprep.subr.bf16.mxu0 0
    %1595 = vmatpush1.bf16.msra.mxu0 0
    %1596 = vmatprep.subr.bf16.mxu0 0
    %1597 = vmatpush1.bf16.msra.mxu0 0
    %1598 = vmatprep.subr.bf16.mxu0 0
    %1599 = vmatpush1.bf16.msra.mxu0 0
    %1600 = vmatprep.subr.bf16.mxu0 0
    %1601 = vmatpush1.bf16.msra.mxu0 0
    %1602 = vmatprep.subr.bf16.mxu0 0
    %1603 = vmatpush1.bf16.msra.mxu0 0
    %1604 = vmatprep.subr.bf16.mxu0 0
    %1605 = vmatpush1.bf16.msra.mxu0 0
    %1606 = vmatprep.subr.bf16.mxu0 0
    %1607 = vmatpush1.bf16.msra.mxu0 0
    %1608 = vmatprep.subr.bf16.mxu0 0
    %1609 = vmatpush1.bf16.msra.mxu0 0
    %1610 = vmatprep.subr.bf16.mxu0 0
    %1611 = vmatpush1.bf16.msra.mxu0 0
    %1612 = vmatprep.subr.bf16.mxu0 0
    %1613 = vmatpush1.bf16.msra.mxu0 0
    %1614 = vmatprep.subr.bf16.mxu0 0
    %1615 = vmatpush1.bf16.msra.mxu0 0
    %1616 = vmatprep.subr.bf16.mxu0 0
    %1617 = vmatpush1.bf16.msra.mxu0 0
    %1618 = vmatprep.mubr.bf16.mxu0 0
    %1619 = vmatmul.mubr.bf16.gmra.mrb[0].mxu0 %v1297
    %v1620 = vpop.f32.mrb[0].mxu0
    %v1621 = vadd.f32 %v1580, %v1620
    %v1622 = vpop.f32.mrb[0].mxu0
    %v1623 = vadd.f32 %v1582, %v1622
    %v1624 = vpop.f32.mrb[0].mxu0
    %v1625 = vpop.f32.mrb[0].mxu0
    %1626 = vdwg.mxu0
    %v1629 = vcombine.low %v1457, %v1459
    %v1631 = vunpack.c.l.s4 1983009808
    %v1632 = vunpack.c.0.s8 %v1631
    %v1633 = vlaneseq
    %v1634 = vshrl.u32 %v1633, 7
    %v1635 = vsub.s32 %v1632, %v1634
    %v1636 = vrot.slane %v1629, %v1635
    %1638 = vst [vmem:[#allocation3] sm:$0xf] %v1636
    %v1641 = vcombine.low %v1621, %v1623
    %v1643 = vunpack.c.l.s4 1983009808
    %v1644 = vunpack.c.0.s8 %v1643
    %v1645 = vlaneseq
    %v1646 = vshrl.u32 %v1645, 7
    %v1647 = vsub.s32 %v1644, %v1646
    %v1648 = vrot.slane %v1641, %v1647
    %1650 = vst [vmem:[#allocation5] sm:$0xf] %v1648
    %v1651 = vmul.f32 %v1621, 0.5
    %v1652 = vmul.f32 %v1623, 0.5
    %v1653 = vmul.f32 %v1651, 1.442695
    %v1654 = vpow.pop %v1653
    %v1655 = vmul.f32 %v1652, 1.442695
    %v1656 = vpow.pop %v1655
    %v1657 = vld [vmem:[%s1] sm:$0xf]
    %v1660 = vcombine.low %v1654, %v1656
    %v1662 = vunpack.c.l.s4 1983009808
    %v1663 = vunpack.c.0.s8 %v1662
    %v1664 = vlaneseq
    %v1665 = vshrl.u32 %v1664, 7
    %v1666 = vsub.s32 %v1663, %v1665
    %v1667 = vrot.slane %v1660, %v1666
    %v1669 = vmul.f32 %v1657, %v1667
    %v1672 = vunpack.c.l.s4 1983009808
    %v1673 = vunpack.c.0.s8 %v1672
    %v1674 = vlaneseq
    %v1675 = vshrl.u32 %v1674, 7
    %v1676 = vsub.s32 %v1673, %v1675
    %v1677 = vrot.slane %v1669, %v1676
    %v1678 = vcombine.high %v1677, %v1677
    %v1681 = vadd.f32 %v1457, %v1677
    %v1682 = vadd.f32 %v1459, %v1678
    %v1683 = vpack.c.bf16 %v1681, %v1681
    %v1684 = vpack.c.bf16 %v1682, %v1682
    %v1685 = vld [vmem:[%s4] sm:$0xff]
    %v1686 = vld [vmem:[%s4 + $0x8] sm:$0xff]
    %v1687 = vld [vmem:[%s4 + $0x10] sm:$0xff]
    %v1688 = vld [vmem:[%s4 + $0x18] sm:$0xff]
    %v1689 = vld [vmem:[%s4 + $0x20] sm:$0xff]
    %v1690 = vld [vmem:[%s4 + $0x28] sm:$0xff]
    %v1691 = vld [vmem:[%s4 + $0x30] sm:$0xff]
    %v1692 = vld [vmem:[%s4 + $0x38] sm:$0xff]
    %v1693 = vld [vmem:[%s4 + $0x40] sm:$0xff]
    %v1694 = vld [vmem:[%s4 + $0x48] sm:$0xff]
    %v1695 = vld [vmem:[%s4 + $0x50] sm:$0xff]
    %v1696 = vld [vmem:[%s4 + $0x58] sm:$0xff]
    %v1697 = vld [vmem:[%s4 + $0x60] sm:$0xff]
    %v1698 = vld [vmem:[%s4 + $0x68] sm:$0xff]
    %v1699 = vld [vmem:[%s4 + $0x70] sm:$0xff]
    %v1700 = vld [vmem:[%s4 + $0x78] sm:$0xff]
    %v1701 = vld [vmem:[%s4 + $0x80] sm:$0xff]
    %v1702 = vld [vmem:[%s4 + $0x88] sm:$0xff]
    %v1703 = vld [vmem:[%s4 + $0x90] sm:$0xff]
    %v1704 = vld [vmem:[%s4 + $0x98] sm:$0xff]
    %v1705 = vld [vmem:[%s4 + $0xa0] sm:$0xff]
    %v1706 = vld [vmem:[%s4 + $0xa8] sm:$0xff]
    %v1707 = vld [vmem:[%s4 + $0xb0] sm:$0xff]
    %v1708 = vld [vmem:[%s4 + $0xb8] sm:$0xff]
    %v1709 = vld [vmem:[%s4 + $0xc0] sm:$0xff]
    %v1710 = vld [vmem:[%s4 + $0xc8] sm:$0xff]
    %v1711 = vld [vmem:[%s4 + $0xd0] sm:$0xff]
    %v1712 = vld [vmem:[%s4 + $0xd8] sm:$0xff]
    %v1713 = vld [vmem:[%s4 + $0xe0] sm:$0xff]
    %v1714 = vld [vmem:[%s4 + $0xe8] sm:$0xff]
    %v1715 = vld [vmem:[%s4 + $0xf0] sm:$0xff]
    %v1716 = vld [vmem:[%s4 + $0xf8] sm:$0xff]
    %v1717 = vld [vmem:[%s4 + $0x100] sm:$0xff]
    %v1718 = vld [vmem:[%s4 + $0x108] sm:$0xff]
    %v1719 = vld [vmem:[%s4 + $0x110] sm:$0xff]
    %v1720 = vld [vmem:[%s4 + $0x118] sm:$0xff]
    %v1721 = vld [vmem:[%s4 + $0x120] sm:$0xff]
    %v1722 = vld [vmem:[%s4 + $0x128] sm:$0xff]
    %v1723 = vld [vmem:[%s4 + $0x130] sm:$0xff]
    %v1724 = vld [vmem:[%s4 + $0x138] sm:$0xff]
    %v1725 = vld [vmem:[%s4 + $0x140] sm:$0xff]
    %v1726 = vld [vmem:[%s4 + $0x148] sm:$0xff]
    %v1727 = vld [vmem:[%s4 + $0x150] sm:$0xff]
    %v1728 = vld [vmem:[%s4 + $0x158] sm:$0xff]
    %v1729 = vld [vmem:[%s4 + $0x160] sm:$0xff]
    %v1730 = vld [vmem:[%s4 + $0x168] sm:$0xff]
    %v1731 = vld [vmem:[%s4 + $0x170] sm:$0xff]
    %v1732 = vld [vmem:[%s4 + $0x178] sm:$0xff]
    %v1733 = vld [vmem:[%s4 + $0x180] sm:$0xff]
    %v1734 = vld [vmem:[%s4 + $0x188] sm:$0xff]
    %v1735 = vld [vmem:[%s4 + $0x190] sm:$0xff]
    %v1736 = vld [vmem:[%s4 + $0x198] sm:$0xff]
    %v1737 = vld [vmem:[%s4 + $0x1a0] sm:$0xff]
    %v1738 = vld [vmem:[%s4 + $0x1a8] sm:$0xff]
    %v1739 = vld [vmem:[%s4 + $0x1b0] sm:$0xff]
    %v1740 = vld [vmem:[%s4 + $0x1b8] sm:$0xff]
    %v1741 = vld [vmem:[%s4 + $0x1c0] sm:$0xff]
    %v1742 = vld [vmem:[%s4 + $0x1c8] sm:$0xff]
    %v1743 = vld [vmem:[%s4 + $0x1d0] sm:$0xff]
    %v1744 = vld [vmem:[%s4 + $0x1d8] sm:$0xff]
    %v1745 = vld [vmem:[%s4 + $0x1e0] sm:$0xff]
    %v1746 = vld [vmem:[%s4 + $0x1e8] sm:$0xff]
    %v1747 = vld [vmem:[%s4 + $0x1f0] sm:$0xff]
    %v1748 = vld [vmem:[%s4 + $0x1f8] sm:$0xff]
    %v1749 = vld [vmem:[%s4 + $0x200] sm:$0xff]
    %v1750 = vld [vmem:[%s4 + $0x208] sm:$0xff]
    %v1751 = vld [vmem:[%s4 + $0x210] sm:$0xff]
    %v1752 = vld [vmem:[%s4 + $0x218] sm:$0xff]
    %v1753 = vld [vmem:[%s4 + $0x220] sm:$0xff]
    %v1754 = vld [vmem:[%s4 + $0x228] sm:$0xff]
    %v1755 = vld [vmem:[%s4 + $0x230] sm:$0xff]
    %v1756 = vld [vmem:[%s4 + $0x238] sm:$0xff]
    %v1757 = vld [vmem:[%s4 + $0x240] sm:$0xff]
    %v1758 = vld [vmem:[%s4 + $0x248] sm:$0xff]
    %v1759 = vld [vmem:[%s4 + $0x250] sm:$0xff]
    %v1760 = vld [vmem:[%s4 + $0x258] sm:$0xff]
    %v1761 = vld [vmem:[%s4 + $0x260] sm:$0xff]
    %v1762 = vld [vmem:[%s4 + $0x268] sm:$0xff]
    %v1763 = vld [vmem:[%s4 + $0x270] sm:$0xff]
    %v1764 = vld [vmem:[%s4 + $0x278] sm:$0xff]
    %v1765 = vld [vmem:[%s4 + $0x280] sm:$0xff]
    %v1766 = vld [vmem:[%s4 + $0x288] sm:$0xff]
    %v1767 = vld [vmem:[%s4 + $0x290] sm:$0xff]
    %v1768 = vld [vmem:[%s4 + $0x298] sm:$0xff]
    %v1769 = vld [vmem:[%s4 + $0x2a0] sm:$0xff]
    %v1770 = vld [vmem:[%s4 + $0x2a8] sm:$0xff]
    %v1771 = vld [vmem:[%s4 + $0x2b0] sm:$0xff]
    %v1772 = vld [vmem:[%s4 + $0x2b8] sm:$0xff]
    %v1773 = vld [vmem:[%s4 + $0x2c0] sm:$0xff]
    %v1774 = vld [vmem:[%s4 + $0x2c8] sm:$0xff]
    %v1775 = vld [vmem:[%s4 + $0x2d0] sm:$0xff]
    %v1776 = vld [vmem:[%s4 + $0x2d8] sm:$0xff]
    %v1777 = vld [vmem:[%s4 + $0x2e0] sm:$0xff]
    %v1778 = vld [vmem:[%s4 + $0x2e8] sm:$0xff]
    %v1779 = vld [vmem:[%s4 + $0x2f0] sm:$0xff]
    %v1780 = vld [vmem:[%s4 + $0x2f8] sm:$0xff]
    %v1781 = vld [vmem:[%s4 + $0x300] sm:$0xff]
    %v1782 = vld [vmem:[%s4 + $0x308] sm:$0xff]
    %v1783 = vld [vmem:[%s4 + $0x310] sm:$0xff]
    %v1784 = vld [vmem:[%s4 + $0x318] sm:$0xff]
    %v1785 = vld [vmem:[%s4 + $0x320] sm:$0xff]
    %v1786 = vld [vmem:[%s4 + $0x328] sm:$0xff]
    %v1787 = vld [vmem:[%s4 + $0x330] sm:$0xff]
    %v1788 = vld [vmem:[%s4 + $0x338] sm:$0xff]
    %v1789 = vld [vmem:[%s4 + $0x340] sm:$0xff]
    %v1790 = vld [vmem:[%s4 + $0x348] sm:$0xff]
    %v1791 = vld [vmem:[%s4 + $0x350] sm:$0xff]
    %v1792 = vld [vmem:[%s4 + $0x358] sm:$0xff]
    %v1793 = vld [vmem:[%s4 + $0x360] sm:$0xff]
    %v1794 = vld [vmem:[%s4 + $0x368] sm:$0xff]
    %v1795 = vld [vmem:[%s4 + $0x370] sm:$0xff]
    %v1796 = vld [vmem:[%s4 + $0x378] sm:$0xff]
    %v1797 = vld [vmem:[%s4 + $0x380] sm:$0xff]
    %v1798 = vld [vmem:[%s4 + $0x388] sm:$0xff]
    %v1799 = vld [vmem:[%s4 + $0x390] sm:$0xff]
    %v1800 = vld [vmem:[%s4 + $0x398] sm:$0xff]
    %v1801 = vld [vmem:[%s4 + $0x3a0] sm:$0xff]
    %v1802 = vld [vmem:[%s4 + $0x3a8] sm:$0xff]
    %v1803 = vld [vmem:[%s4 + $0x3b0] sm:$0xff]
    %v1804 = vld [vmem:[%s4 + $0x3b8] sm:$0xff]
    %v1805 = vld [vmem:[%s4 + $0x3c0] sm:$0xff]
    %v1806 = vld [vmem:[%s4 + $0x3c8] sm:$0xff]
    %v1807 = vld [vmem:[%s4 + $0x3d0] sm:$0xff]
    %v1808 = vld [vmem:[%s4 + $0x3d8] sm:$0xff]
    %v1809 = vld [vmem:[%s4 + $0x3e0] sm:$0xff]
    %v1810 = vld [vmem:[%s4 + $0x3e8] sm:$0xff]
    %v1811 = vld [vmem:[%s4 + $0x3f0] sm:$0xff]
    %v1812 = vld [vmem:[%s4 + $0x3f8] sm:$0xff]
    %v1813 = vld [vmem:[%s5] sm:$0xff]
    %v1815 = vlaneseq
    %v1816 = vshrl.u32 %v1815, 7
    %v1817 = vsub.s32 0, %v1816
    %v1818 = vrot.slane %v1813, %v1817
    %v1819 = vlaneseq
    %v1820 = vshrl.u32 %v1819, 7
    %v1821 = vsub.s32 1, %v1820
    %v1822 = vrot.slane %v1813, %v1821
    %v1823 = vlaneseq
    %v1824 = vshrl.u32 %v1823, 7
    %v1825 = vsub.s32 2, %v1824
    %v1826 = vrot.slane %v1813, %v1825
    %v1827 = vlaneseq
    %v1828 = vshrl.u32 %v1827, 7
    %v1829 = vsub.s32 3, %v1828
    %v1830 = vrot.slane %v1813, %v1829
    %v1831 = vlaneseq
    %v1832 = vshrl.u32 %v1831, 7
    %v1833 = vsub.s32 4, %v1832
    %v1834 = vrot.slane %v1813, %v1833
    %v1835 = vlaneseq
    %v1836 = vshrl.u32 %v1835, 7
    %v1837 = vsub.s32 5, %v1836
    %v1838 = vrot.slane %v1813, %v1837
    %v1839 = vlaneseq
    %v1840 = vshrl.u32 %v1839, 7
    %v1841 = vsub.s32 6, %v1840
    %v1842 = vrot.slane %v1813, %v1841
    %v1843 = vlaneseq
    %v1844 = vshrl.u32 %v1843, 7
    %v1845 = vsub.s32 7, %v1844
    %v1846 = vrot.slane %v1813, %v1845
    %v1983 = vunpack.c.l.b16 %v1685
    %v1984 = vunpack.c.h.b16 %v1685
    %v1985 = vunpack.c.l.b16 %v1686
    %v1986 = vunpack.c.h.b16 %v1686
    %v1987 = vunpack.c.l.b16 %v1687
    %v1988 = vunpack.c.h.b16 %v1687
    %v1989 = vunpack.c.l.b16 %v1688
    %v1990 = vunpack.c.h.b16 %v1688
    %v1991 = vunpack.c.l.b16 %v1689
    %v1992 = vunpack.c.h.b16 %v1689
    %v1993 = vunpack.c.l.b16 %v1690
    %v1994 = vunpack.c.h.b16 %v1690
    %v1995 = vunpack.c.l.b16 %v1691
    %v1996 = vunpack.c.h.b16 %v1691
    %v1997 = vunpack.c.l.b16 %v1692
    %v1998 = vunpack.c.h.b16 %v1692
    %v1999 = vunpack.c.l.b16 %v1693
    %v2000 = vunpack.c.h.b16 %v1693
    %v2001 = vunpack.c.l.b16 %v1694
    %v2002 = vunpack.c.h.b16 %v1694
    %v2003 = vunpack.c.l.b16 %v1695
    %v2004 = vunpack.c.h.b16 %v1695
    %v2005 = vunpack.c.l.b16 %v1696
    %v2006 = vunpack.c.h.b16 %v1696
    %v2007 = vunpack.c.l.b16 %v1697
    %v2008 = vunpack.c.h.b16 %v1697
    %v2009 = vunpack.c.l.b16 %v1698
    %v2010 = vunpack.c.h.b16 %v1698
    %v2011 = vunpack.c.l.b16 %v1699
    %v2012 = vunpack.c.h.b16 %v1699
    %v2013 = vunpack.c.l.b16 %v1700
    %v2014 = vunpack.c.h.b16 %v1700
    %v2015 = vunpack.c.l.b16 %v1701
    %v2016 = vunpack.c.h.b16 %v1701
    %v2017 = vunpack.c.l.b16 %v1702
    %v2018 = vunpack.c.h.b16 %v1702
    %v2019 = vunpack.c.l.b16 %v1703
    %v2020 = vunpack.c.h.b16 %v1703
    %v2021 = vunpack.c.l.b16 %v1704
    %v2022 = vunpack.c.h.b16 %v1704
    %v2023 = vunpack.c.l.b16 %v1705
    %v2024 = vunpack.c.h.b16 %v1705
    %v2025 = vunpack.c.l.b16 %v1706
    %v2026 = vunpack.c.h.b16 %v1706
    %v2027 = vunpack.c.l.b16 %v1707
    %v2028 = vunpack.c.h.b16 %v1707
    %v2029 = vunpack.c.l.b16 %v1708
    %v2030 = vunpack.c.h.b16 %v1708
    %v2031 = vunpack.c.l.b16 %v1709
    %v2032 = vunpack.c.h.b16 %v1709
    %v2033 = vunpack.c.l.b16 %v1710
    %v2034 = vunpack.c.h.b16 %v1710
    %v2035 = vunpack.c.l.b16 %v1711
    %v2036 = vunpack.c.h.b16 %v1711
    %v2037 = vunpack.c.l.b16 %v1712
    %v2038 = vunpack.c.h.b16 %v1712
    %v2039 = vunpack.c.l.b16 %v1713
    %v2040 = vunpack.c.h.b16 %v1713
    %v2041 = vunpack.c.l.b16 %v1714
    %v2042 = vunpack.c.h.b16 %v1714
    %v2043 = vunpack.c.l.b16 %v1715
    %v2044 = vunpack.c.h.b16 %v1715
    %v2045 = vunpack.c.l.b16 %v1716
    %v2046 = vunpack.c.h.b16 %v1716
    %v2047 = vunpack.c.l.b16 %v1717
    %v2048 = vunpack.c.h.b16 %v1717
    %v2049 = vunpack.c.l.b16 %v1718
    %v2050 = vunpack.c.h.b16 %v1718
    %v2051 = vunpack.c.l.b16 %v1719
    %v2052 = vunpack.c.h.b16 %v1719
    %v2053 = vunpack.c.l.b16 %v1720
    %v2054 = vunpack.c.h.b16 %v1720
    %v2055 = vunpack.c.l.b16 %v1721
    %v2056 = vunpack.c.h.b16 %v1721
    %v2057 = vunpack.c.l.b16 %v1722
    %v2058 = vunpack.c.h.b16 %v1722
    %v2059 = vunpack.c.l.b16 %v1723
    %v2060 = vunpack.c.h.b16 %v1723
    %v2061 = vunpack.c.l.b16 %v1724
    %v2062 = vunpack.c.h.b16 %v1724
    %v2063 = vunpack.c.l.b16 %v1725
    %v2064 = vunpack.c.h.b16 %v1725
    %v2065 = vunpack.c.l.b16 %v1726
    %v2066 = vunpack.c.h.b16 %v1726
    %v2067 = vunpack.c.l.b16 %v1727
    %v2068 = vunpack.c.h.b16 %v1727
    %v2069 = vunpack.c.l.b16 %v1728
    %v2070 = vunpack.c.h.b16 %v1728
    %v2071 = vunpack.c.l.b16 %v1729
    %v2072 = vunpack.c.h.b16 %v1729
    %v2073 = vunpack.c.l.b16 %v1730
    %v2074 = vunpack.c.h.b16 %v1730
    %v2075 = vunpack.c.l.b16 %v1731
    %v2076 = vunpack.c.h.b16 %v1731
    %v2077 = vunpack.c.l.b16 %v1732
    %v2078 = vunpack.c.h.b16 %v1732
    %v2079 = vunpack.c.l.b16 %v1733
    %v2080 = vunpack.c.h.b16 %v1733
    %v2081 = vunpack.c.l.b16 %v1734
    %v2082 = vunpack.c.h.b16 %v1734
    %v2083 = vunpack.c.l.b16 %v1735
    %v2084 = vunpack.c.h.b16 %v1735
    %v2085 = vunpack.c.l.b16 %v1736
    %v2086 = vunpack.c.h.b16 %v1736
    %v2087 = vunpack.c.l.b16 %v1737
    %v2088 = vunpack.c.h.b16 %v1737
    %v2089 = vunpack.c.l.b16 %v1738
    %v2090 = vunpack.c.h.b16 %v1738
    %v2091 = vunpack.c.l.b16 %v1739
    %v2092 = vunpack.c.h.b16 %v1739
    %v2093 = vunpack.c.l.b16 %v1740
    %v2094 = vunpack.c.h.b16 %v1740
    %v2095 = vunpack.c.l.b16 %v1741
    %v2096 = vunpack.c.h.b16 %v1741
    %v2097 = vunpack.c.l.b16 %v1742
    %v2098 = vunpack.c.h.b16 %v1742
    %v2099 = vunpack.c.l.b16 %v1743
    %v2100 = vunpack.c.h.b16 %v1743
    %v2101 = vunpack.c.l.b16 %v1744
    %v2102 = vunpack.c.h.b16 %v1744
    %v2103 = vunpack.c.l.b16 %v1745
    %v2104 = vunpack.c.h.b16 %v1745
    %v2105 = vunpack.c.l.b16 %v1746
    %v2106 = vunpack.c.h.b16 %v1746
    %v2107 = vunpack.c.l.b16 %v1747
    %v2108 = vunpack.c.h.b16 %v1747
    %v2109 = vunpack.c.l.b16 %v1748
    %v2110 = vunpack.c.h.b16 %v1748
    %v2111 = vunpack.c.l.b16 %v1749
    %v2112 = vunpack.c.h.b16 %v1749
    %v2113 = vunpack.c.l.b16 %v1750
    %v2114 = vunpack.c.h.b16 %v1750
    %v2115 = vunpack.c.l.b16 %v1751
    %v2116 = vunpack.c.h.b16 %v1751
    %v2117 = vunpack.c.l.b16 %v1752
    %v2118 = vunpack.c.h.b16 %v1752
    %v2119 = vunpack.c.l.b16 %v1753
    %v2120 = vunpack.c.h.b16 %v1753
    %v2121 = vunpack.c.l.b16 %v1754
    %v2122 = vunpack.c.h.b16 %v1754
    %v2123 = vunpack.c.l.b16 %v1755
    %v2124 = vunpack.c.h.b16 %v1755
    %v2125 = vunpack.c.l.b16 %v1756
    %v2126 = vunpack.c.h.b16 %v1756
    %v2127 = vunpack.c.l.b16 %v1757
    %v2128 = vunpack.c.h.b16 %v1757
    %v2129 = vunpack.c.l.b16 %v1758
    %v2130 = vunpack.c.h.b16 %v1758
    %v2131 = vunpack.c.l.b16 %v1759
    %v2132 = vunpack.c.h.b16 %v1759
    %v2133 = vunpack.c.l.b16 %v1760
    %v2134 = vunpack.c.h.b16 %v1760
    %v2135 = vunpack.c.l.b16 %v1761
    %v2136 = vunpack.c.h.b16 %v1761
    %v2137 = vunpack.c.l.b16 %v1762
    %v2138 = vunpack.c.h.b16 %v1762
    %v2139 = vunpack.c.l.b16 %v1763
    %v2140 = vunpack.c.h.b16 %v1763
    %v2141 = vunpack.c.l.b16 %v1764
    %v2142 = vunpack.c.h.b16 %v1764
    %v2143 = vunpack.c.l.b16 %v1765
    %v2144 = vunpack.c.h.b16 %v1765
    %v2145 = vunpack.c.l.b16 %v1766
    %v2146 = vunpack.c.h.b16 %v1766
    %v2147 = vunpack.c.l.b16 %v1767
    %v2148 = vunpack.c.h.b16 %v1767
    %v2149 = vunpack.c.l.b16 %v1768
    %v2150 = vunpack.c.h.b16 %v1768
    %v2151 = vunpack.c.l.b16 %v1769
    %v2152 = vunpack.c.h.b16 %v1769
    %v2153 = vunpack.c.l.b16 %v1770
    %v2154 = vunpack.c.h.b16 %v1770
    %v2155 = vunpack.c.l.b16 %v1771
    %v2156 = vunpack.c.h.b16 %v1771
    %v2157 = vunpack.c.l.b16 %v1772
    %v2158 = vunpack.c.h.b16 %v1772
    %v2159 = vunpack.c.l.b16 %v1773
    %v2160 = vunpack.c.h.b16 %v1773
    %v2161 = vunpack.c.l.b16 %v1774
    %v2162 = vunpack.c.h.b16 %v1774
    %v2163 = vunpack.c.l.b16 %v1775
    %v2164 = vunpack.c.h.b16 %v1775
    %v2165 = vunpack.c.l.b16 %v1776
    %v2166 = vunpack.c.h.b16 %v1776
    %v2167 = vunpack.c.l.b16 %v1777
    %v2168 = vunpack.c.h.b16 %v1777
    %v2169 = vunpack.c.l.b16 %v1778
    %v2170 = vunpack.c.h.b16 %v1778
    %v2171 = vunpack.c.l.b16 %v1779
    %v2172 = vunpack.c.h.b16 %v1779
    %v2173 = vunpack.c.l.b16 %v1780
    %v2174 = vunpack.c.h.b16 %v1780
    %v2175 = vunpack.c.l.b16 %v1781
    %v2176 = vunpack.c.h.b16 %v1781
    %v2177 = vunpack.c.l.b16 %v1782
    %v2178 = vunpack.c.h.b16 %v1782
    %v2179 = vunpack.c.l.b16 %v1783
    %v2180 = vunpack.c.h.b16 %v1783
    %v2181 = vunpack.c.l.b16 %v1784
    %v2182 = vunpack.c.h.b16 %v1784
    %v2183 = vunpack.c.l.b16 %v1785
    %v2184 = vunpack.c.h.b16 %v1785
    %v2185 = vunpack.c.l.b16 %v1786
    %v2186 = vunpack.c.h.b16 %v1786
    %v2187 = vunpack.c.l.b16 %v1787
    %v2188 = vunpack.c.h.b16 %v1787
    %v2189 = vunpack.c.l.b16 %v1788
    %v2190 = vunpack.c.h.b16 %v1788
    %v2191 = vunpack.c.l.b16 %v1789
    %v2192 = vunpack.c.h.b16 %v1789
    %v2193 = vunpack.c.l.b16 %v1790
    %v2194 = vunpack.c.h.b16 %v1790
    %v2195 = vunpack.c.l.b16 %v1791
    %v2196 = vunpack.c.h.b16 %v1791
    %v2197 = vunpack.c.l.b16 %v1792
    %v2198 = vunpack.c.h.b16 %v1792
    %v2199 = vunpack.c.l.b16 %v1793
    %v2200 = vunpack.c.h.b16 %v1793
    %v2201 = vunpack.c.l.b16 %v1794
    %v2202 = vunpack.c.h.b16 %v1794
    %v2203 = vunpack.c.l.b16 %v1795
    %v2204 = vunpack.c.h.b16 %v1795
    %v2205 = vunpack.c.l.b16 %v1796
    %v2206 = vunpack.c.h.b16 %v1796
    %v2207 = vunpack.c.l.b16 %v1797
    %v2208 = vunpack.c.h.b16 %v1797
    %v2209 = vunpack.c.l.b16 %v1798
    %v2210 = vunpack.c.h.b16 %v1798
    %v2211 = vunpack.c.l.b16 %v1799
    %v2212 = vunpack.c.h.b16 %v1799
    %v2213 = vunpack.c.l.b16 %v1800
    %v2214 = vunpack.c.h.b16 %v1800
    %v2215 = vunpack.c.l.b16 %v1801
    %v2216 = vunpack.c.h.b16 %v1801
    %v2217 = vunpack.c.l.b16 %v1802
    %v2218 = vunpack.c.h.b16 %v1802
    %v2219 = vunpack.c.l.b16 %v1803
    %v2220 = vunpack.c.h.b16 %v1803
    %v2221 = vunpack.c.l.b16 %v1804
    %v2222 = vunpack.c.h.b16 %v1804
    %v2223 = vunpack.c.l.b16 %v1805
    %v2224 = vunpack.c.h.b16 %v1805
    %v2225 = vunpack.c.l.b16 %v1806
    %v2226 = vunpack.c.h.b16 %v1806
    %v2227 = vunpack.c.l.b16 %v1807
    %v2228 = vunpack.c.h.b16 %v1807
    %v2229 = vunpack.c.l.b16 %v1808
    %v2230 = vunpack.c.h.b16 %v1808
    %v2231 = vunpack.c.l.b16 %v1809
    %v2232 = vunpack.c.h.b16 %v1809
    %v2233 = vunpack.c.l.b16 %v1810
    %v2234 = vunpack.c.h.b16 %v1810
    %v2235 = vunpack.c.l.b16 %v1811
    %v2236 = vunpack.c.h.b16 %v1811
    %v2237 = vunpack.c.l.b16 %v1812
    %v2238 = vunpack.c.h.b16 %v1812
    %v2239 = vpack.c.b16 %v1991, %v1983
    %v2240 = vpack.c.b16 %v1992, %v1984
    %v2241 = vpack.c.b16 %v1993, %v1985
    %v2242 = vpack.c.b16 %v1994, %v1986
    %v2243 = vpack.c.b16 %v1995, %v1987
    %v2244 = vpack.c.b16 %v1996, %v1988
    %v2245 = vpack.c.b16 %v1997, %v1989
    %v2246 = vpack.c.b16 %v1998, %v1990
    %v2247 = vpack.c.b16 %v2007, %v1999
    %v2248 = vpack.c.b16 %v2008, %v2000
    %v2249 = vpack.c.b16 %v2009, %v2001
    %v2250 = vpack.c.b16 %v2010, %v2002
    %v2251 = vpack.c.b16 %v2011, %v2003
    %v2252 = vpack.c.b16 %v2012, %v2004
    %v2253 = vpack.c.b16 %v2013, %v2005
    %v2254 = vpack.c.b16 %v2014, %v2006
    %v2255 = vpack.c.b16 %v2023, %v2015
    %v2256 = vpack.c.b16 %v2024, %v2016
    %v2257 = vpack.c.b16 %v2025, %v2017
    %v2258 = vpack.c.b16 %v2026, %v2018
    %v2259 = vpack.c.b16 %v2027, %v2019
    %v2260 = vpack.c.b16 %v2028, %v2020
    %v2261 = vpack.c.b16 %v2029, %v2021
    %v2262 = vpack.c.b16 %v2030, %v2022
    %v2263 = vpack.c.b16 %v2039, %v2031
    %v2264 = vpack.c.b16 %v2040, %v2032
    %v2265 = vpack.c.b16 %v2041, %v2033
    %v2266 = vpack.c.b16 %v2042, %v2034
    %v2267 = vpack.c.b16 %v2043, %v2035
    %v2268 = vpack.c.b16 %v2044, %v2036
    %v2269 = vpack.c.b16 %v2045, %v2037
    %v2270 = vpack.c.b16 %v2046, %v2038
    %v2271 = vpack.c.b16 %v2055, %v2047
    %v2272 = vpack.c.b16 %v2056, %v2048
    %v2273 = vpack.c.b16 %v2057, %v2049
    %v2274 = vpack.c.b16 %v2058, %v2050
    %v2275 = vpack.c.b16 %v2059, %v2051
    %v2276 = vpack.c.b16 %v2060, %v2052
    %v2277 = vpack.c.b16 %v2061, %v2053
    %v2278 = vpack.c.b16 %v2062, %v2054
    %v2279 = vpack.c.b16 %v2071, %v2063
    %v2280 = vpack.c.b16 %v2072, %v2064
    %v2281 = vpack.c.b16 %v2073, %v2065
    %v2282 = vpack.c.b16 %v2074, %v2066
    %v2283 = vpack.c.b16 %v2075, %v2067
    %v2284 = vpack.c.b16 %v2076, %v2068
    %v2285 = vpack.c.b16 %v2077, %v2069
    %v2286 = vpack.c.b16 %v2078, %v2070
    %v2287 = vpack.c.b16 %v2087, %v2079
    %v2288 = vpack.c.b16 %v2088, %v2080
    %v2289 = vpack.c.b16 %v2089, %v2081
    %v2290 = vpack.c.b16 %v2090, %v2082
    %v2291 = vpack.c.b16 %v2091, %v2083
    %v2292 = vpack.c.b16 %v2092, %v2084
    %v2293 = vpack.c.b16 %v2093, %v2085
    %v2294 = vpack.c.b16 %v2094, %v2086
    %v2295 = vpack.c.b16 %v2103, %v2095
    %v2296 = vpack.c.b16 %v2104, %v2096
    %v2297 = vpack.c.b16 %v2105, %v2097
    %v2298 = vpack.c.b16 %v2106, %v2098
    %v2299 = vpack.c.b16 %v2107, %v2099
    %v2300 = vpack.c.b16 %v2108, %v2100
    %v2301 = vpack.c.b16 %v2109, %v2101
    %v2302 = vpack.c.b16 %v2110, %v2102
    %v2303 = vpack.c.b16 %v2119, %v2111
    %v2304 = vpack.c.b16 %v2120, %v2112
    %v2305 = vpack.c.b16 %v2121, %v2113
    %v2306 = vpack.c.b16 %v2122, %v2114
    %v2307 = vpack.c.b16 %v2123, %v2115
    %v2308 = vpack.c.b16 %v2124, %v2116
    %v2309 = vpack.c.b16 %v2125, %v2117
    %v2310 = vpack.c.b16 %v2126, %v2118
    %v2311 = vpack.c.b16 %v2135, %v2127
    %v2312 = vpack.c.b16 %v2136, %v2128
    %v2313 = vpack.c.b16 %v2137, %v2129
    %v2314 = vpack.c.b16 %v2138, %v2130
    %v2315 = vpack.c.b16 %v2139, %v2131
    %v2316 = vpack.c.b16 %v2140, %v2132
    %v2317 = vpack.c.b16 %v2141, %v2133
    %v2318 = vpack.c.b16 %v2142, %v2134
    %v2319 = vpack.c.b16 %v2151, %v2143
    %v2320 = vpack.c.b16 %v2152, %v2144
    %v2321 = vpack.c.b16 %v2153, %v2145
    %v2322 = vpack.c.b16 %v2154, %v2146
    %v2323 = vpack.c.b16 %v2155, %v2147
    %v2324 = vpack.c.b16 %v2156, %v2148
    %v2325 = vpack.c.b16 %v2157, %v2149
    %v2326 = vpack.c.b16 %v2158, %v2150
    %v2327 = vpack.c.b16 %v2167, %v2159
    %v2328 = vpack.c.b16 %v2168, %v2160
    %v2329 = vpack.c.b16 %v2169, %v2161
    %v2330 = vpack.c.b16 %v2170, %v2162
    %v2331 = vpack.c.b16 %v2171, %v2163
    %v2332 = vpack.c.b16 %v2172, %v2164
    %v2333 = vpack.c.b16 %v2173, %v2165
    %v2334 = vpack.c.b16 %v2174, %v2166
    %v2335 = vpack.c.b16 %v2183, %v2175
    %v2336 = vpack.c.b16 %v2184, %v2176
    %v2337 = vpack.c.b16 %v2185, %v2177
    %v2338 = vpack.c.b16 %v2186, %v2178
    %v2339 = vpack.c.b16 %v2187, %v2179
    %v2340 = vpack.c.b16 %v2188, %v2180
    %v2341 = vpack.c.b16 %v2189, %v2181
    %v2342 = vpack.c.b16 %v2190, %v2182
    %v2343 = vpack.c.b16 %v2199, %v2191
    %v2344 = vpack.c.b16 %v2200, %v2192
    %v2345 = vpack.c.b16 %v2201, %v2193
    %v2346 = vpack.c.b16 %v2202, %v2194
    %v2347 = vpack.c.b16 %v2203, %v2195
    %v2348 = vpack.c.b16 %v2204, %v2196
    %v2349 = vpack.c.b16 %v2205, %v2197
    %v2350 = vpack.c.b16 %v2206, %v2198
    %v2351 = vpack.c.b16 %v2215, %v2207
    %v2352 = vpack.c.b16 %v2216, %v2208
    %v2353 = vpack.c.b16 %v2217, %v2209
    %v2354 = vpack.c.b16 %v2218, %v2210
    %v2355 = vpack.c.b16 %v2219, %v2211
    %v2356 = vpack.c.b16 %v2220, %v2212
    %v2357 = vpack.c.b16 %v2221, %v2213
    %v2358 = vpack.c.b16 %v2222, %v2214
    %v2359 = vpack.c.b16 %v2231, %v2223
    %v2360 = vpack.c.b16 %v2232, %v2224
    %v2361 = vpack.c.b16 %v2233, %v2225
    %v2362 = vpack.c.b16 %v2234, %v2226
    %v2363 = vpack.c.b16 %v2235, %v2227
    %v2364 = vpack.c.b16 %v2236, %v2228
    %v2365 = vpack.c.b16 %v2237, %v2229
    %v2366 = vpack.c.b16 %v2238, %v2230
    %2495 = vmatprep.subr.bf16.mxu0 %v2240
    %2496 = vmatpush1.bf16.msra.mxu0 %v2239
    %2497 = vmatprep.subr.bf16.mxu0 %v2248
    %2498 = vmatpush1.bf16.msra.mxu0 %v2247
    %2499 = vmatprep.subr.bf16.mxu0 %v2256
    %2500 = vmatpush1.bf16.msra.mxu0 %v2255
    %2501 = vmatprep.subr.bf16.mxu0 %v2264
    %2502 = vmatpush1.bf16.msra.mxu0 %v2263
    %2503 = vmatprep.subr.bf16.mxu0 %v2272
    %2504 = vmatpush1.bf16.msra.mxu0 %v2271
    %2505 = vmatprep.subr.bf16.mxu0 %v2280
    %2506 = vmatpush1.bf16.msra.mxu0 %v2279
    %2507 = vmatprep.subr.bf16.mxu0 %v2288
    %2508 = vmatpush1.bf16.msra.mxu0 %v2287
    %2509 = vmatprep.subr.bf16.mxu0 %v2296
    %2510 = vmatpush1.bf16.msra.mxu0 %v2295
    %2511 = vmatprep.subr.bf16.mxu0 %v2304
    %2512 = vmatpush1.bf16.msra.mxu0 %v2303
    %2513 = vmatprep.subr.bf16.mxu0 %v2312
    %2514 = vmatpush1.bf16.msra.mxu0 %v2311
    %2515 = vmatprep.subr.bf16.mxu0 %v2320
    %2516 = vmatpush1.bf16.msra.mxu0 %v2319
    %2517 = vmatprep.subr.bf16.mxu0 %v2328
    %2518 = vmatpush1.bf16.msra.mxu0 %v2327
    %2519 = vmatprep.subr.bf16.mxu0 %v2336
    %2520 = vmatpush1.bf16.msra.mxu0 %v2335
    %2521 = vmatprep.subr.bf16.mxu0 %v2344
    %2522 = vmatpush1.bf16.msra.mxu0 %v2343
    %2523 = vmatprep.subr.bf16.mxu0 %v2352
    %2524 = vmatpush1.bf16.msra.mxu0 %v2351
    %2525 = vmatprep.subr.bf16.mxu0 %v2360
    %2526 = vmatpush1.bf16.msra.mxu0 %v2359
    %2527 = vmatprep.mubr.bf16.mxu0 %v1684
    %2528 = vmatmul.mubr.bf16.gmra.mrb[0].mxu0 %v1683
    %v2529 = vpop.f32.mrb[0].mxu0
    %v2530 = vadd.f32 %v1818, %v2529
    %v2531 = vpop.f32.mrb[0].mxu0
    %v2532 = vadd.f32 %v1822, %v2531
    %v2533 = vpop.f32.mrb[0].mxu0
    %v2534 = vpop.f32.mrb[0].mxu0
    %2535 = vdwg.mxu0
    %2536 = vmatprep.subr.bf16.mxu0 %v2242
    %2537 = vmatpush1.bf16.msra.mxu0 %v2241
    %2538 = vmatprep.subr.bf16.mxu0 %v2250
    %2539 = vmatpush1.bf16.msra.mxu0 %v2249
    %2540 = vmatprep.subr.bf16.mxu0 %v2258
    %2541 = vmatpush1.bf16.msra.mxu0 %v2257
    %2542 = vmatprep.subr.bf16.mxu0 %v2266
    %2543 = vmatpush1.bf16.msra.mxu0 %v2265
    %2544 = vmatprep.subr.bf16.mxu0 %v2274
    %2545 = vmatpush1.bf16.msra.mxu0 %v2273
    %2546 = vmatprep.subr.bf16.mxu0 %v2282
    %2547 = vmatpush1.bf16.msra.mxu0 %v2281
    %2548 = vmatprep.subr.bf16.mxu0 %v2290
    %2549 = vmatpush1.bf16.msra.mxu0 %v2289
    %2550 = vmatprep.subr.bf16.mxu0 %v2298
    %2551 = vmatpush1.bf16.msra.mxu0 %v2297
    %2552 = vmatprep.subr.bf16.mxu0 %v2306
    %2553 = vmatpush1.bf16.msra.mxu0 %v2305
    %2554 = vmatprep.subr.bf16.mxu0 %v2314
    %2555 = vmatpush1.bf16.msra.mxu0 %v2313
    %2556 = vmatprep.subr.bf16.mxu0 %v2322
    %2557 = vmatpush1.bf16.msra.mxu0 %v2321
    %2558 = vmatprep.subr.bf16.mxu0 %v2330
    %2559 = vmatpush1.bf16.msra.mxu0 %v2329
    %2560 = vmatprep.subr.bf16.mxu0 %v2338
    %2561 = vmatpush1.bf16.msra.mxu0 %v2337
    %2562 = vmatprep.subr.bf16.mxu0 %v2346
    %2563 = vmatpush1.bf16.msra.mxu0 %v2345
    %2564 = vmatprep.subr.bf16.mxu0 %v2354
    %2565 = vmatpush1.bf16.msra.mxu0 %v2353
    %2566 = vmatprep.subr.bf16.mxu0 %v2362
    %2567 = vmatpush1.bf16.msra.mxu0 %v2361
    %2568 = vmatprep.mubr.bf16.mxu0 %v1684
    %2569 = vmatmul.mubr.bf16.gmra.mrb[0].mxu0 %v1683
    %v2570 = vpop.f32.mrb[0].mxu0
    %v2571 = vadd.f32 %v1826, %v2570
    %v2572 = vpop.f32.mrb[0].mxu0
    %v2573 = vadd.f32 %v1830, %v2572
    %v2574 = vpop.f32.mrb[0].mxu0
    %v2575 = vpop.f32.mrb[0].mxu0
    %2576 = vdwg.mxu0
    %2577 = vmatprep.subr.bf16.mxu0 %v2244
    %2578 = vmatpush1.bf16.msra.mxu0 %v2243
    %2579 = vmatprep.subr.bf16.mxu0 %v2252
    %2580 = vmatpush1.bf16.msra.mxu0 %v2251
    %2581 = vmatprep.subr.bf16.mxu0 %v2260
    %2582 = vmatpush1.bf16.msra.mxu0 %v2259
    %2583 = vmatprep.subr.bf16.mxu0 %v2268
    %2584 = vmatpush1.bf16.msra.mxu0 %v2267
    %2585 = vmatprep.subr.bf16.mxu0 %v2276
    %2586 = vmatpush1.bf16.msra.mxu0 %v2275
    %2587 = vmatprep.subr.bf16.mxu0 %v2284
    %2588 = vmatpush1.bf16.msra.mxu0 %v2283
    %2589 = vmatprep.subr.bf16.mxu0 %v2292
    %2590 = vmatpush1.bf16.msra.mxu0 %v2291
    %2591 = vmatprep.subr.bf16.mxu0 %v2300
    %2592 = vmatpush1.bf16.msra.mxu0 %v2299
    %2593 = vmatprep.subr.bf16.mxu0 %v2308
    %2594 = vmatpush1.bf16.msra.mxu0 %v2307
    %2595 = vmatprep.subr.bf16.mxu0 %v2316
    %2596 = vmatpush1.bf16.msra.mxu0 %v2315
    %2597 = vmatprep.subr.bf16.mxu0 %v2324
    %2598 = vmatpush1.bf16.msra.mxu0 %v2323
    %2599 = vmatprep.subr.bf16.mxu0 %v2332
    %2600 = vmatpush1.bf16.msra.mxu0 %v2331
    %2601 = vmatprep.subr.bf16.mxu0 %v2340
    %2602 = vmatpush1.bf16.msra.mxu0 %v2339
    %2603 = vmatprep.subr.bf16.mxu0 %v2348
    %2604 = vmatpush1.bf16.msra.mxu0 %v2347
    %2605 = vmatprep.subr.bf16.mxu0 %v2356
    %2606 = vmatpush1.bf16.msra.mxu0 %v2355
    %2607 = vmatprep.subr.bf16.mxu0 %v2364
    %2608 = vmatpush1.bf16.msra.mxu0 %v2363
    %2609 = vmatprep.mubr.bf16.mxu0 %v1684
    %2610 = vmatmul.mubr.bf16.gmra.mrb[0].mxu0 %v1683
    %v2611 = vpop.f32.mrb[0].mxu0
    %v2612 = vadd.f32 %v1834, %v2611
    %v2613 = vpop.f32.mrb[0].mxu0
    %v2614 = vadd.f32 %v1838, %v2613
    %v2615 = vpop.f32.mrb[0].mxu0
    %v2616 = vpop.f32.mrb[0].mxu0
    %2617 = vdwg.mxu0
    %2618 = vmatprep.subr.bf16.mxu0 %v2246
    %2619 = vmatpush1.bf16.msra.mxu0 %v2245
    %2620 = vmatprep.subr.bf16.mxu0 %v2254
    %2621 = vmatpush1.bf16.msra.mxu0 %v2253
    %2622 = vmatprep.subr.bf16.mxu0 %v2262
    %2623 = vmatpush1.bf16.msra.mxu0 %v2261
    %2624 = vmatprep.subr.bf16.mxu0 %v2270
    %2625 = vmatpush1.bf16.msra.mxu0 %v2269
    %2626 = vmatprep.subr.bf16.mxu0 %v2278
    %2627 = vmatpush1.bf16.msra.mxu0 %v2277
    %2628 = vmatprep.subr.bf16.mxu0 %v2286
    %2629 = vmatpush1.bf16.msra.mxu0 %v2285
    %2630 = vmatprep.subr.bf16.mxu0 %v2294
    %2631 = vmatpush1.bf16.msra.mxu0 %v2293
    %2632 = vmatprep.subr.bf16.mxu0 %v2302
    %2633 = vmatpush1.bf16.msra.mxu0 %v2301
    %2634 = vmatprep.subr.bf16.mxu0 %v2310
    %2635 = vmatpush1.bf16.msra.mxu0 %v2309
    %2636 = vmatprep.subr.bf16.mxu0 %v2318
    %2637 = vmatpush1.bf16.msra.mxu0 %v2317
    %2638 = vmatprep.subr.bf16.mxu0 %v2326
    %2639 = vmatpush1.bf16.msra.mxu0 %v2325
    %2640 = vmatprep.subr.bf16.mxu0 %v2334
    %2641 = vmatpush1.bf16.msra.mxu0 %v2333
    %2642 = vmatprep.subr.bf16.mxu0 %v2342
    %2643 = vmatpush1.bf16.msra.mxu0 %v2341
    %2644 = vmatprep.subr.bf16.mxu0 %v2350
    %2645 = vmatpush1.bf16.msra.mxu0 %v2349
    %2646 = vmatprep.subr.bf16.mxu0 %v2358
    %2647 = vmatpush1.bf16.msra.mxu0 %v2357
    %2648 = vmatprep.subr.bf16.mxu0 %v2366
    %2649 = vmatpush1.bf16.msra.mxu0 %v2365
    %2650 = vmatprep.mubr.bf16.mxu0 %v1684
    %2651 = vmatmul.mubr.bf16.gmra.mrb[0].mxu0 %v1683
    %v2652 = vpop.f32.mrb[0].mxu0
    %v2653 = vadd.f32 %v1842, %v2652
    %v2654 = vpop.f32.mrb[0].mxu0
    %v2655 = vadd.f32 %v1846, %v2654
    %v2656 = vpop.f32.mrb[0].mxu0
    %v2657 = vpop.f32.mrb[0].mxu0
    %2658 = vdwg.mxu0
    %vm2659 = vcmask 516096
    %2660 = vst.msk [vmem:[#allocation2] sm:$0x1] %vm2659, %v2530
    %2662 = vrot.lane.b32.xlu0 %v2530, 64
    %v2663 = vpop.permute.xlu0 %2662
    %vm2665 = vcmask 1041921
    %2666 = vst.msk [vmem:[#allocation2 - $0x1] sm:$0x2] %vm2665, %v2663
    %2667 = vst.msk [vmem:[#allocation2 + $0x1] sm:$0x1] %vm2659, %v2663
    %2668 = vst.msk [vmem:[#allocation2] sm:$0x2] %vm2665, %v2530
    %2669 = vst.msk [vmem:[#allocation2 + $0x2] sm:$0x1] %vm2659, %v2532
    %2671 = vrot.lane.b32.xlu0 %v2532, 64
    %v2672 = vpop.permute.xlu0 %2671
    %2674 = vst.msk [vmem:[#allocation2 + $0x1] sm:$0x2] %vm2665, %v2672
    %2675 = vst.msk [vmem:[#allocation2 + $0x3] sm:$0x1] %vm2659, %v2672
    %2676 = vst.msk [vmem:[#allocation2 + $0x2] sm:$0x2] %vm2665, %v2532
    %2677 = vst.msk [vmem:[#allocation2 + $0x4] sm:$0x1] %vm2659, %v2571
    %2679 = vrot.lane.b32.xlu0 %v2571, 64
    %v2680 = vpop.permute.xlu0 %2679
    %2682 = vst.msk [vmem:[#allocation2 + $0x3] sm:$0x2] %vm2665, %v2680
    %2683 = vst.msk [vmem:[#allocation2 + $0x5] sm:$0x1] %vm2659, %v2680
    %2684 = vst.msk [vmem:[#allocation2 + $0x4] sm:$0x2] %vm2665, %v2571
    %2685 = vst.msk [vmem:[#allocation2 + $0x6] sm:$0x1] %vm2659, %v2573
    %2687 = vrot.lane.b32.xlu0 %v2573, 64
    %v2688 = vpop.permute.xlu0 %2687
    %2690 = vst.msk [vmem:[#allocation2 + $0x5] sm:$0x2] %vm2665, %v2688
    %2691 = vst.msk [vmem:[#allocation2 + $0x7] sm:$0x1] %vm2659, %v2688
    %2692 = vst.msk [vmem:[#allocation2 + $0x6] sm:$0x2] %vm2665, %v2573
    %2693 = vst.msk [vmem:[#allocation2 + $0x8] sm:$0x1] %vm2659, %v2612
    %2695 = vrot.lane.b32.xlu0 %v2612, 64
    %v2696 = vpop.permute.xlu0 %2695
    %2698 = vst.msk [vmem:[#allocation2 + $0x7] sm:$0x2] %vm2665, %v2696
    %2699 = vst.msk [vmem:[#allocation2 + $0x9] sm:$0x1] %vm2659, %v2696
    %2700 = vst.msk [vmem:[#allocation2 + $0x8] sm:$0x2] %vm2665, %v2612
    %2701 = vst.msk [vmem:[#allocation2 + $0xa] sm:$0x1] %vm2659, %v2614
    %2703 = vrot.lane.b32.xlu0 %v2614, 64
    %v2704 = vpop.permute.xlu0 %2703
    %2706 = vst.msk [vmem:[#allocation2 + $0x9] sm:$0x2] %vm2665, %v2704
    %2707 = vst.msk [vmem:[#allocation2 + $0xb] sm:$0x1] %vm2659, %v2704
    %2708 = vst.msk [vmem:[#allocation2 + $0xa] sm:$0x2] %vm2665, %v2614
    %2709 = vst.msk [vmem:[#allocation2 + $0xc] sm:$0x1] %vm2659, %v2653
    %2711 = vrot.lane.b32.xlu0 %v2653, 64
    %v2712 = vpop.permute.xlu0 %2711
    %2714 = vst.msk [vmem:[#allocation2 + $0xb] sm:$0x2] %vm2665, %v2712
    %2715 = vst.msk [vmem:[#allocation2 + $0xd] sm:$0x1] %vm2659, %v2712
    %2716 = vst.msk [vmem:[#allocation2 + $0xc] sm:$0x2] %vm2665, %v2653
    %2717 = vst.msk [vmem:[#allocation2 + $0xe] sm:$0x1] %vm2659, %v2655
    %2719 = vrot.lane.b32.xlu0 %v2655, 64
    %v2720 = vpop.permute.xlu0 %2719
    %2722 = vst.msk [vmem:[#allocation2 + $0xd] sm:$0x2] %vm2665, %v2720
    %2723 = vst.msk [vmem:[#allocation2 + $0xf] sm:$0x1] %vm2659, %v2720
    %2724 = vst.msk [vmem:[#allocation2 + $0xe] sm:$0x2] %vm2665, %v2655
    %v2725 = vld [vmem:[#allocation2] sm:$0xff]
    %v2726 = vld [vmem:[#allocation2 + $0x8] sm:$0xff]
    %v2727 = vpack.c.bf16 %v2726, %v2725
    %v2728 = vld [vmem:[%s6] sm:$0xf]
    %v2729 = vld [vmem:[%s6 + $0x4] sm:$0xf]
    %v2730 = vld [vmem:[%s6 + $0x8] sm:$0xf]
    %v2731 = vld [vmem:[%s6 + $0xc] sm:$0xf]
    %v2732 = vld [vmem:[%s7] sm:$0xff]
    %v2733 = vld [vmem:[%s7 + $0x8] sm:$0xff]
    %v2734 = vld [vmem:[%s7 + $0x10] sm:$0xff]
    %v2735 = vld [vmem:[%s7 + $0x18] sm:$0xff]
    %2737 = vset.pattern.permute.xlu0 0
    %2738 = vperm.xlu0 %2737, %v2732
    %v2739 = vpop.permute.xlu0 %2738
    %2742 = vset.pattern.permute.xlu0 0
    %2743 = vperm.xlu0 %2742, %v2733
    %v2744 = vpop.permute.xlu0 %2743
    %2747 = vset.pattern.permute.xlu0 0
    %2748 = vperm.xlu0 %2747, %v2734
    %v2749 = vpop.permute.xlu0 %2748
    %2752 = vset.pattern.permute.xlu0 0
    %2753 = vperm.xlu0 %2752, %v2735
    %v2754 = vpop.permute.xlu0 %2753
    %v2760 = vunpack.c.l.b16 %v2728
    %v2761 = vunpack.c.l.b16 %v2729
    %v2762 = vunpack.c.l.b16 %v2730
    %v2763 = vunpack.c.l.b16 %v2731
    %v2764 = vpack.c.b16 %v2761, %v2760
    %v2765 = vpack.c.b16 %v2763, %v2762
    %v2767 = vsel %vm1295, %v2764, 0
    %v2770 = vsel %vm1295, %v2765, 0
    %2772 = vmatprep.subr.bf16.mxu0 0
    %2773 = vmatpush1.bf16.msra.mxu0 %v2727
    %2774 = vmatprep.subr.bf16.mxu0 0
    %2775 = vmatpush1.bf16.msra.mxu0 0
    %2776 = vmatprep.subr.bf16.mxu0 0
    %2777 = vmatpush1.bf16.msra.mxu0 0
    %2778 = vmatprep.subr.bf16.mxu0 0
    %2779 = vmatpush1.bf16.msra.mxu0 0
    %2780 = vmatprep.subr.bf16.mxu0 0
    %2781 = vmatpush1.bf16.msra.mxu0 0
    %2782 = vmatprep.subr.bf16.mxu0 0
    %2783 = vmatpush1.bf16.msra.mxu0 0
    %2784 = vmatprep.subr.bf16.mxu0 0
    %2785 = vmatpush1.bf16.msra.mxu0 0
    %2786 = vmatprep.subr.bf16.mxu0 0
    %2787 = vmatpush1.bf16.msra.mxu0 0
    %2788 = vmatprep.subr.bf16.mxu0 0
    %2789 = vmatpush1.bf16.msra.mxu0 0
    %2790 = vmatprep.subr.bf16.mxu0 0
    %2791 = vmatpush1.bf16.msra.mxu0 0
    %2792 = vmatprep.subr.bf16.mxu0 0
    %2793 = vmatpush1.bf16.msra.mxu0 0
    %2794 = vmatprep.subr.bf16.mxu0 0
    %2795 = vmatpush1.bf16.msra.mxu0 0
    %2796 = vmatprep.subr.bf16.mxu0 0
    %2797 = vmatpush1.bf16.msra.mxu0 0
    %2798 = vmatprep.subr.bf16.mxu0 0
    %2799 = vmatpush1.bf16.msra.mxu0 0
    %2800 = vmatprep.subr.bf16.mxu0 0
    %2801 = vmatpush1.bf16.msra.mxu0 0
    %2802 = vmatprep.subr.bf16.mxu0 0
    %2803 = vmatpush1.bf16.msra.mxu0 0
    %2804 = vmatprep.mubr.bf16.mxu0 0
    %2805 = vmatmul.mubr.bf16.gmra.mrb[0].mxu0 %v2767
    %v2806 = vpop.f32.mrb[0].mxu0
    %v2807 = vadd.f32 %v2739, %v2806
    %v2808 = vpop.f32.mrb[0].mxu0
    %v2809 = vpop.f32.mrb[0].mxu0
    %v2810 = vadd.f32 %v2744, %v2809
    %v2811 = vpop.f32.mrb[0].mxu0
    %2812 = vmatprep.mubr.bf16.mxu0 0
    %2813 = vmatmul.mubr.bf16.gmra.mrb[0].mxu0 %v2770
    %v2814 = vpop.f32.mrb[0].mxu0
    %v2815 = vadd.f32 %v2749, %v2814
    %v2816 = vpop.f32.mrb[0].mxu0
    %v2817 = vpop.f32.mrb[0].mxu0
    %v2818 = vadd.f32 %v2754, %v2817
    %v2819 = vpop.f32.mrb[0].mxu0
    %2820 = vdwg.mxu0
    %v2821 = vmax.f32 %v2807, 0.0
    %v2822 = vmax.f32 %v2810, 0.0
    %v2823 = vmax.f32 %v2815, 0.0
    %v2824 = vmax.f32 %v2818, 0.0
    %v2825 = vld [vmem:[%s8] sm:$0xf]
    %v2826 = vld [vmem:[%s8 + $0x4] sm:$0xf]
    %v2827 = vpack.c.bf16 %v2822, %v2821
    %v2828 = vpack.c.bf16 %v2824, %v2823
    %v2829 = vld [vmem:[%s9] sm:$0xff]
    %v2830 = vld [vmem:[%s9 + $0x8] sm:$0xff]
    %2832 = vset.pattern.permute.xlu0 0
    %2833 = vperm.xlu0 %2832, %v2829
    %v2834 = vpop.permute.xlu0 %2833
    %2837 = vset.pattern.permute.xlu0 0
    %2838 = vperm.xlu0 %2837, %v2830
    %v2839 = vpop.permute.xlu0 %2838
    %v2843 = vunpack.c.l.b16 %v2825
    %v2844 = vunpack.c.l.b16 %v2826
    %v2845 = vpack.c.b16 %v2844, %v2843
    %vm2846 = vcmask 261120
    %v2848 = vsel %vm2846, %v2845, 0
    %2850 = vmatprep.subr.bf16.mxu0 0
    %2851 = vmatpush1.bf16.msra.mxu0 %v2827
    %2852 = vmatprep.subr.bf16.mxu0 0
    %2853 = vmatpush1.bf16.msra.mxu0 %v2828
    %2854 = vmatprep.subr.bf16.mxu0 0
    %2855 = vmatpush1.bf16.msra.mxu0 0
    %2856 = vmatprep.subr.bf16.mxu0 0
    %2857 = vmatpush1.bf16.msra.mxu0 0
    %2858 = vmatprep.subr.bf16.mxu0 0
    %2859 = vmatpush1.bf16.msra.mxu0 0
    %2860 = vmatprep.subr.bf16.mxu0 0
    %2861 = vmatpush1.bf16.msra.mxu0 0
    %2862 = vmatprep.subr.bf16.mxu0 0
    %2863 = vmatpush1.bf16.msra.mxu0 0
    %2864 = vmatprep.subr.bf16.mxu0 0
    %2865 = vmatpush1.bf16.msra.mxu0 0
    %2866 = vmatprep.subr.bf16.mxu0 0
    %2867 = vmatpush1.bf16.msra.mxu0 0
    %2868 = vmatprep.subr.bf16.mxu0 0
    %2869 = vmatpush1.bf16.msra.mxu0 0
    %2870 = vmatprep.subr.bf16.mxu0 0
    %2871 = vmatpush1.bf16.msra.mxu0 0
    %2872 = vmatprep.subr.bf16.mxu0 0
    %2873 = vmatpush1.bf16.msra.mxu0 0
    %2874 = vmatprep.subr.bf16.mxu0 0
    %2875 = vmatpush1.bf16.msra.mxu0 0
    %2876 = vmatprep.subr.bf16.mxu0 0
    %2877 = vmatpush1.bf16.msra.mxu0 0
    %2878 = vmatprep.subr.bf16.mxu0 0
    %2879 = vmatpush1.bf16.msra.mxu0 0
    %2880 = vmatprep.subr.bf16.mxu0 0
    %2881 = vmatpush1.bf16.msra.mxu0 0
    %2882 = vmatprep.mubr.bf16.mxu0 0
    %2883 = vmatmul.mubr.bf16.gmra.mrb[0].mxu0 %v2848
    %v2884 = vpop.f32.mrb[0].mxu0
    %v2885 = vadd.f32 %v2834, %v2884
    %v2886 = vpop.f32.mrb[0].mxu0
    %v2887 = vpop.f32.mrb[0].mxu0
    %v2888 = vadd.f32 %v2839, %v2887
    %v2889 = vpop.f32.mrb[0].mxu0
    %2890 = vdwg.mxu0
    %v2891 = vxor.u32 %v2885, 2147483648
    %v2892 = vxor.u32 %v2888, 2147483648
    %v2893 = vmul.f32 %v2891, 1.442695
    %v2894 = vpow.pop %v2893
    %v2895 = vmul.f32 %v2892, 1.442695
    %v2896 = vpow.pop %v2895
    %v2897 = vadd.f32 %v2894, 1.0
    %v2898 = vadd.f32 %v2896, 1.0
    %v2899 = vrcp.pop %v2897
    %v2900 = vmul.f32 1.0, %v2899
    %v2901 = vrcp.pop %v2898
    %v2902 = vmul.f32 1.0, %v2901
    %2903 = vst [vmem:[%s12] sm:$0xff] %v2900
    %2904 = vst [vmem:[%s12 + $0x8] sm:$0xff] %v2902
    // Predicated region
    $region42: #{vae_forward.5} parent=1 // pred_check
      _
    $region43: #{vae_forward.5} parent=1 // pred_check_branch
      %2906 = sbr.rel (0) target = $region45
    $region44: #{vae_forward.5} parent=1 // pred_region
      %s2908 = ssub.s32 64, 64
      %2909 = vsyncadd [#allocation4], %s2908
      %s2911 = sshll.u32 [#allocation3], 4
      %s2912 = int_to_ptr.vmem [resolvable:$true] %s2911
      %2914 = dma.vmem_to_hbm [thread:$0]  %s2912, 64, %s10, [#allocation4]
    $region45: #{vae_forward.5} parent=1 // pred_fallthru
      _
    // Predicated region
    $region46: #{vae_forward.5} parent=1 // pred_check
      _
    $region47: #{vae_forward.5} parent=1 // pred_check_branch
      %2916 = sbr.rel (0) target = $region49
    $region48: #{vae_forward.5} parent=1 // pred_region
      %s2918 = ssub.s32 64, 64
      %2919 = vsyncadd [#allocation6], %s2918
      %s2921 = sshll.u32 [#allocation5], 4
      %s2922 = int_to_ptr.vmem [resolvable:$true] %s2921
      %2924 = dma.vmem_to_hbm [thread:$0]  %s2922, 64, %s11, [#allocation6]
    $region49: #{vae_forward.5} parent=1 // pred_fallthru
      _
    // Predicated region
    $region50: #{vae_forward.5} parent=1 // pred_check
      _
    $region51: #{vae_forward.5} parent=1 // pred_check_branch
      %2926 = sbr.rel (0) target = $region53
    $region52: #{vae_forward.5} parent=1 // pred_region
      _
    $region53: #{vae_forward.5} parent=1 // pred_fallthru
      _
    // Predicated region
    $region54: #{vae_forward.5} parent=1 // pred_check
      _
    $region55: #{vae_forward.5} parent=1 // pred_check_branch
      %2928 = sbr.rel (0) target = $region57
    $region56: #{vae_forward.5} parent=1 // pred_region
      %2929 = dma.done [#allocation4], 64
    $region57: #{vae_forward.5} parent=1 // pred_fallthru
      _
    // Predicated region
    $region58: #{vae_forward.5} parent=1 // pred_check
      _
    $region59: #{vae_forward.5} parent=1 // pred_check_branch
      %2931 = sbr.rel (0) target = $region61
    $region60: #{vae_forward.5} parent=1 // pred_region
      %2932 = dma.done [#allocation6], 64
    $region61: #{vae_forward.5} parent=1 // pred_fallthru
      _
    // Predicated region
    $region62: #{vae_forward.5} parent=1 // pred_check
      _
    $region63: #{vae_forward.5} parent=1 // pred_check_branch
      %2934 = sbr.rel (0) target = $region65
    $region64: #{vae_forward.5} parent=1 // pred_region
      _
    $region65: #{vae_forward.5} parent=1 // pred_fallthru
      _
    %2935 = vsyncpa [#allocation4], 1
    %2936 = vsyncpa [#allocation6], 1

</llo_original>
